<compile_context>
chip_gen: v7x
topology: tpu7x:2x2x1
jax: 0.10.0
libtpu: 0.0.40
codegen_flags: <defaults>
</compile_context>

<pallas_src>
import numpy as np
import jax
import jax.numpy as jnp
from jax.experimental import pallas as pl
from jax.experimental.pallas import tpu as pltpu  # noqa: F401  (TPU backend)

EPS = 1e-5     # nn.BatchNorm2d default eps
LANES = 128    # every activation / operand lane axis is zero-padded to 128 (lane-dense stores)


# --------------------------- in-kernel conv block ---------------------------

def _bn_conv_pool_elu(a, gamma_b, beta_b, chan_sum, m_top, m_bot, w2_ref, cbias,
                      sel_even, inv_count):
    """BatchNorm2d(train stats) -> Conv2d(3x3,pad1,stride1) -> MaxPool2d(2) -> ELU.

    a         : (N*H, 128) f32, rows=(n,h), lanes=(w,ci) zero-padded to 128
    gamma_b   : (1, 128)   BN weight tiled over w (padded lanes = 0)
    beta_b    : (1, 128)   BN bias tiled over w   (padded lanes = 0)
    chan_sum  : (128, 128) 0/1 matrix summing lanes of the same channel
    m_top     : (N*H, 1)   0 at the first row of every image, else 1
    m_bot     : (N*H, 1)   0 at the last  row of every image, else 1
    w2_ref    : (6, 128, 128) bf16 ref; conv weights with kw shift, col zero-pad and the 2x
                column pool-select folded in; leading index = kh*2 + dw
    cbias     : (1, 128)   conv bias tiled over wo (padded lanes = 0)
    sel_even  : (N*Ho, N*H) 0/1 even-row selector (the 2x row pool-select)
    inv_count : python float, 1/(N*H*W)
    returns   : (N*Ho, 128) f32, rows=(n,ho), lanes=(wo,co) zero-padded to 128
    """
    # BatchNorm2d: per-channel batch stats via row-reduce + tiny matvec (f32, numerically safe
    # two-pass variance).
    col_sum = jnp.sum(a, axis=0, keepdims=True)                                   # (1, 128)
    mean = jnp.dot(col_sum, chan_sum, preferred_element_type=jnp.float32) * inv_count
    d = a - mean
    sq_sum = jnp.sum(d * d, axis=0, keepdims=True)
    var = jnp.dot(sq_sum, chan_sum, preferred_element_type=jnp.float32) * inv_count
    an = d * (gamma_b * jax.lax.rsqrt(var + EPS)) + beta_b                        # (N*H, 128)

    # kh row shifts with zero padding at image boundaries: concat + mask (no gather matmuls).
    zrow = jnp.zeros((1, an.shape[1]), an.dtype)
    s_m1 = (jnp.concatenate([zrow, an[:-1, :]], axis=0) * m_top).astype(jnp.bfloat16)  # an[r-1]
    s_00 = an.astype(jnp.bfloat16)                                                      # an[r]
    s_p1 = (jnp.concatenate([an[1:, :], zrow], axis=0) * m_bot).astype(jnp.bfloat16)    # an[r+1]

    # Conv2d(3x3, pad1): 3 kh x 2 dw bf16 MXU matmuls; keep each per-dw accumulation chain.
    def conv_cols(dw):
        acc = jnp.dot(s_m1, w2_ref[0 * 2 + dw], preferred_element_type=jnp.float32)
        acc = acc + jnp.dot(s_00, w2_ref[1 * 2 + dw], preferred_element_type=jnp.float32)
        acc = acc + jnp.dot(s_p1, w2_ref[2 * 2 + dw], preferred_element_type=jnp.float32)
        return acc                                                                # (N*H, 128)

    # MaxPool2d(2): column-pair max, then shifted row-pair max, then pick even rows.
    m = jnp.maximum(conv_cols(0), conv_cols(1))
    m = jnp.maximum(m, jnp.concatenate([m[1:, :], m[-1:, :]], axis=0))            # rows 2o vs 2o+1
    pooled = jnp.dot(sel_even, m, preferred_element_type=jnp.float32)             # (N*Ho, 128)
    pooled = pooled + cbias

    # ELU(alpha=1); clamp exp arg so the discarded branch never overflows.
    return jnp.where(pooled > 0, pooled, jnp.exp(jnp.minimum(pooled, 0.0)) - 1.0)


# --------------------------- constant builders (pure numpy) ---------------------------

def _col_onehot(w, wo):
    """M[dw, src, o, kw] = 1 where src = 2*o + dw + kw - 1 (missing entries = column zero-pad)."""
    m = np.zeros((2, w, wo, 3), np.float32)
    for dw in range(2):
        for o in range(wo):
            for kw in range(3):
                src = 2 * o + dw + kw - 1
                if 0 <= src < w:
                    m[dw, src, o, kw] = 1.0
    return m


def _boundary_masks(n_batch, h):
    """(N*H,1) masks: m_top zero at each image's first row, m_bot zero at each image's last row."""
    nh = n_batch * h
    r = np.arange(nh)
    m_top = (r % h != 0).astype(np.float32).reshape(nh, 1)
    m_bot = (r % h != h - 1).astype(np.float32).reshape(nh, 1)
    return m_top, m_bot


def _sel_even(n_batch, h, ho):
    """(N*Ho, N*H) 0/1 selector of rows n*h + 2*o (the 2x row-pool downselect)."""
    s = np.zeros((n_batch * ho, n_batch * h), np.float32)
    for n in range(n_batch):
        for o in range(ho):
            s[n * ho + o, n * h + 2 * o] = 1.0
    return s


# --------------------------- fused forward pass ---------------------------

def unit_cnn_encoder(x_nchw, params):
    N, c0, h0, w0 = x_nchw.shape

    # static per-layer geometry: (cin, h, w, cout, ho, wo)
    dims = []
    cin, h, w = c0, h0, w0
    for i in (1, 2, 3):
        cout = params[f"conv{i}"][2].shape[0]
        dims.append((cin, h, w, cout, h // 2, w // 2))
        cin, h, w = cout, h // 2, w // 2

    # ---------- kernel operands (activation layout: rows=(n,h), lanes=(w,c) padded to 128) ----
    x2 = jnp.transpose(x_nchw, (0, 2, 3, 1)).reshape(N * h0, w0 * c0).astype(jnp.float32)
    ops = [jnp.pad(x2, ((0, 0), (0, LANES - w0 * c0)))]

    inv_counts = []
    for i, (cin, h, w, cout, ho, wo) in enumerate(dims, start=1):
        gamma, beta, wconv, bconv = params[f"conv{i}"]
        kin, kout = w * cin, wo * cout
        assert kin <= LANES and kout <= LANES
        ops.append(jnp.pad(jnp.tile(gamma, w), (0, LANES - kin)).reshape(1, LANES))    # BN gamma
        ops.append(jnp.pad(jnp.tile(beta, w), (0, LANES - kin)).reshape(1, LANES))     # BN beta
        cs = np.zeros((LANES, LANES), np.float32)                                      # chan sum
        cs[:kin, :kin] = np.tile(np.eye(cin, dtype=np.float32), (w, w))
        ops.append(jnp.asarray(cs))
        m_top, m_bot = _boundary_masks(N, h)                                           # row masks
        ops.append(jnp.asarray(m_top))
        ops.append(jnp.asarray(m_bot))
        # W2[kh*2+dw][w*cin+ci, wo*cout+co] = K[co,ci,kh,kw] at w == 2*wo+dw+kw-1 (else 0)
        w2 = jnp.einsum('dwux,oiyx->ydwiuo', jnp.asarray(_col_onehot(w, wo)), wconv)
        w2 = w2.reshape(6, kin, kout)
        w2 = jnp.pad(w2, ((0, 0), (0, LANES - kin), (0, LANES - kout)))
        ops.append(w2.astype(jnp.bfloat16))                                            # conv W
        ops.append(jnp.pad(jnp.tile(bconv, wo), (0, LANES - kout)).reshape(1, LANES))  # conv bias
        ops.append(jnp.asarray(_sel_even(N, h, ho)))                                   # row pool
        inv_counts.append(1.0 / float(N * h * w))

    # -------- Flatten(NCHW)+Linear epilogue operands (2 matmuls inside the kernel) -----------
    _, _, _, c3, ho3, wo3 = dims[-1]
    w_l, b_l = params["l1"]
    lat = w_l.shape[1]
    assert lat <= LANES
    s_stack = np.zeros((ho3 * N, N * ho3), np.float32)     # restack rows (n,ho) -> (ho,n)
    for o in range(ho3):
        for n in range(N):
            s_stack[o * N + n, n * ho3 + o] = 1.0
    ops.append(jnp.asarray(s_stack))
    # wl[ho][wo*c3+c, l] = w_l[c*ho3*wo3 + ho*wo3 + wo, l]   (PyTorch NCHW-flatten order)
    wl = jnp.transpose(w_l.reshape(c3, ho3, wo3, lat), (1, 2, 0, 3)).reshape(ho3, wo3 * c3, lat)
    wl = jnp.pad(wl, ((0, 0), (0, LANES - wo3 * c3), (0, LANES - lat)))
    ops.append(wl.reshape(ho3 * LANES, LANES).astype(jnp.bfloat16))
    ops.append(jnp.pad(b_l, (0, LANES - lat)).reshape(1, LANES))

    n_in = len(ops)
    n_layer_ops = 8

    def kernel(*refs):
        a = refs[0][...]
        for li in range(3):
            g, b, cs, mt, mb, w2, cb, se = \
                refs[1 + n_layer_ops * li: 1 + n_layer_ops * (li + 1)]
            a = _bn_conv_pool_elu(a, g[...], b[...], cs[...], mt[...], mb[...],
                                  w2, cb[...], se[...], inv_counts[li])
            refs[n_in + li][...] = a                      # c{li+1} output, lane-dense 128 store
        s_ref, wl_ref, bl_ref = refs[n_in - 3], refs[n_in - 2], refs[n_in - 1]
        # Flatten(NCHW) + Linear: restack rows (n,ho)->(ho,n), fold ho into lanes, one matmul.
        xs = jnp.dot(s_ref[...], a, preferred_element_type=jnp.float32)       # (ho3*N, 128)
        xb = jnp.concatenate([xs[o * N:(o + 1) * N, :] for o in range(ho3)], axis=1)
        l1 = jnp.dot(xb.astype(jnp.bfloat16), wl_ref[...],
                     preferred_element_type=jnp.float32) + bl_ref[...]
        refs[n_in + 3][...] = l1

    out_shape = tuple(
        [jax.ShapeDtypeStruct((N * ho, LANES), jnp.float32) for (_, _, _, _, ho, _) in dims]
        + [jax.ShapeDtypeStruct((N, LANES), jnp.float32)]
    )

    # Single fused, gridless kernel: all activations stay in VMEM / vregs (no HBM round trips).
    a1, a2, a3, l1p = pl.pallas_call(kernel, out_shape=out_shape)(*ops)

    # wrapper-side layout plumbing back to NCHW (matches the PyTorch module outputs)
    def to_nchw(act, cout, ho, wo):
        return jnp.transpose(act[:, :wo * cout].reshape(N, ho, wo, cout), (0, 3, 1, 2))

    c1 = to_nchw(a1, dims[0][3], dims[0][4], dims[0][5])
    c2 = to_nchw(a2, dims[1][3], dims[1][4], dims[1][5])
    c3o = to_nchw(a3, dims[2][3], dims[2][4], dims[2][5])
    return c1, c2, c3o, l1p[:, :lat]


# --------------------------- params / main ---------------------------

def init_params(key, in_shape=(4, 16, 16), filters=(8, 16, 32), lat_dim=32):
    C, H, W = in_shape
    params = {}
    last_c, last_h, last_w = C, H, W
    for i, f in enumerate(filters, start=1):
        key, k1, k2, k3, k4 = jax.random.split(key, 5)
        gamma = 1.0 + 0.1 * jax.random.normal(k1, (last_c,), jnp.float32)
        beta = 0.1 * jax.random.normal(k2, (last_c,), jnp.float32)
        wconv = 0.1 * jax.random.normal(k3, (f, last_c, 3, 3), jnp.float32)  # (Cout,Cin,Kh,Kw)
        bconv = 0.1 * jax.random.normal(k4, (f,), jnp.float32)
        params[f"conv{i}"] = (gamma, beta, wconv, bconv)
        last_c, last_h, last_w = f, last_h // 2, last_w // 2
    flat_dim = last_c * last_h * last_w
    key, k1, k2 = jax.random.split(key, 3)
    w_l = 0.1 * jax.random.normal(k1, (flat_dim, lat_dim), jnp.float32)
    b_l = 0.1 * jax.random.normal(k2, (lat_dim,), jnp.float32)
    params["l1"] = (w_l, b_l)
    return params


if __name__ == "__main__":
    key = jax.random.PRNGKey(0)
    key, kx = jax.random.split(key)
    x = jax.random.normal(kx, (2, 4, 16, 16), jnp.float32)   # NCHW, in_shape=(4,16,16)
    params = init_params(key, in_shape=(4, 16, 16), filters=(8, 16, 32), lat_dim=32)

    fwd = jax.jit(unit_cnn_encoder)
    c1, c2, c3, l1 = fwd(x, params)
    jax.block_until_ready((c1, c2, c3, l1))

    assert c1.shape == (2, 8, 8, 8)
    assert c2.shape == (2, 16, 4, 4)
    assert c3.shape == (2, 32, 2, 2)
    assert l1.shape == (2, 32)
    assert bool(jnp.all(jnp.isfinite(l1)))
    print("KERNEL_OK")
</pallas_src>

<mosaic_0001>
module attributes {stable_mosaic.version = 11 : i64} {
  func.func @kernel(%arg0: memref<32x128xf32, #tpu.memory_space<vmem>>, %arg1: memref<1x128xf32, #tpu.memory_space<vmem>>, %arg2: memref<1x128xf32, #tpu.memory_space<vmem>>, %arg3: memref<128x128xf32, #tpu.memory_space<vmem>>, %arg4: memref<32x1xf32, #tpu.memory_space<vmem>>, %arg5: memref<32x1xf32, #tpu.memory_space<vmem>>, %arg6: memref<6x128x128xbf16, #tpu.memory_space<vmem>>, %arg7: memref<1x128xf32, #tpu.memory_space<vmem>>, %arg8: memref<16x32xf32, #tpu.memory_space<vmem>>, %arg9: memref<1x128xf32, #tpu.memory_space<vmem>>, %arg10: memref<1x128xf32, #tpu.memory_space<vmem>>, %arg11: memref<128x128xf32, #tpu.memory_space<vmem>>, %arg12: memref<16x1xf32, #tpu.memory_space<vmem>>, %arg13: memref<16x1xf32, #tpu.memory_space<vmem>>, %arg14: memref<6x128x128xbf16, #tpu.memory_space<vmem>>, %arg15: memref<1x128xf32, #tpu.memory_space<vmem>>, %arg16: memref<8x16xf32, #tpu.memory_space<vmem>>, %arg17: memref<1x128xf32, #tpu.memory_space<vmem>>, %arg18: memref<1x128xf32, #tpu.memory_space<vmem>>, %arg19: memref<128x128xf32, #tpu.memory_space<vmem>>, %arg20: memref<8x1xf32, #tpu.memory_space<vmem>>, %arg21: memref<8x1xf32, #tpu.memory_space<vmem>>, %arg22: memref<6x128x128xbf16, #tpu.memory_space<vmem>>, %arg23: memref<1x128xf32, #tpu.memory_space<vmem>>, %arg24: memref<4x8xf32, #tpu.memory_space<vmem>>, %arg25: memref<4x4xf32, #tpu.memory_space<vmem>>, %arg26: memref<256x128xbf16, #tpu.memory_space<vmem>>, %arg27: memref<1x128xf32, #tpu.memory_space<vmem>>, %arg28: memref<16x128xf32, #tpu.memory_space<vmem>>, %arg29: memref<8x128xf32, #tpu.memory_space<vmem>>, %arg30: memref<4x128xf32, #tpu.memory_space<vmem>>, %arg31: memref<2x128xf32, #tpu.memory_space<vmem>>) attributes {dimension_semantics = [], scalar_prefetch = 0 : i64, scratch_operands = 0 : i64, tpu.core_type = #tpu.core_type<tc>} {
    %c0 = arith.constant 0 : index
    %c0_0 = arith.constant 0 : index
    %0 = vector.load %arg0[%c0, %c0_0] : memref<32x128xf32, #tpu.memory_space<vmem>>, vector<32x128xf32>
    %c0_1 = arith.constant 0 : index
    %c0_2 = arith.constant 0 : index
    %1 = vector.load %arg1[%c0_1, %c0_2] : memref<1x128xf32, #tpu.memory_space<vmem>>, vector<1x128xf32>
    %c0_3 = arith.constant 0 : index
    %c0_4 = arith.constant 0 : index
    %2 = vector.load %arg2[%c0_3, %c0_4] : memref<1x128xf32, #tpu.memory_space<vmem>>, vector<1x128xf32>
    %c0_5 = arith.constant 0 : index
    %c0_6 = arith.constant 0 : index
    %3 = vector.load %arg3[%c0_5, %c0_6] : memref<128x128xf32, #tpu.memory_space<vmem>>, vector<128x128xf32>
    %c0_7 = arith.constant 0 : index
    %c0_8 = arith.constant 0 : index
    %4 = vector.load %arg4[%c0_7, %c0_8] : memref<32x1xf32, #tpu.memory_space<vmem>>, vector<32x1xf32>
    %c0_9 = arith.constant 0 : index
    %c0_10 = arith.constant 0 : index
    %5 = vector.load %arg5[%c0_9, %c0_10] : memref<32x1xf32, #tpu.memory_space<vmem>>, vector<32x1xf32>
    %c0_11 = arith.constant 0 : index
    %c0_12 = arith.constant 0 : index
    %6 = vector.load %arg7[%c0_11, %c0_12] : memref<1x128xf32, #tpu.memory_space<vmem>>, vector<1x128xf32>
    %c0_13 = arith.constant 0 : index
    %c0_14 = arith.constant 0 : index
    %7 = vector.load %arg8[%c0_13, %c0_14] : memref<16x32xf32, #tpu.memory_space<vmem>>, vector<16x32xf32>
    %cst = arith.constant dense<0.000000e+00> : vector<128xf32>
    %8 = vector.multi_reduction <add>, %0, %cst [0] : vector<32x128xf32> to vector<128xf32>
    %9 = vector.shape_cast %8 : vector<128xf32> to vector<1x128xf32>
    %cst_15 = arith.constant dense<0.000000e+00> : vector<1x128xf32>
    %10 = tpu.matmul %9, %3, %cst_15 {dimension_numbers = #tpu.dot_dimension_numbers<[1], [0], [0], [1], [0, 0, 1, 1], [], []>} : vector<1x128xf32>, vector<128x128xf32>, vector<1x128xf32> -> vector<1x128xf32>
    %cst_16 = arith.constant 0.001953125 : f32
    %11 = vector.broadcast %cst_16 : f32 to vector<1x128xf32>
    %12 = arith.mulf %10, %11 : vector<1x128xf32>
    %13 = vector.broadcast %12 : vector<1x128xf32> to vector<32x128xf32>
    %14 = arith.subf %0, %13 : vector<32x128xf32>
    %15 = arith.mulf %14, %14 : vector<32x128xf32>
    %cst_17 = arith.constant dense<0.000000e+00> : vector<128xf32>
    %16 = vector.multi_reduction <add>, %15, %cst_17 [0] : vector<32x128xf32> to vector<128xf32>
    %17 = vector.shape_cast %16 : vector<128xf32> to vector<1x128xf32>
    %cst_18 = arith.constant dense<0.000000e+00> : vector<1x128xf32>
    %18 = tpu.matmul %17, %3, %cst_18 {dimension_numbers = #tpu.dot_dimension_numbers<[1], [0], [0], [1], [0, 0, 1, 1], [], []>} : vector<1x128xf32>, vector<128x128xf32>, vector<1x128xf32> -> vector<1x128xf32>
    %cst_19 = arith.constant 0.001953125 : f32
    %19 = vector.broadcast %cst_19 : f32 to vector<1x128xf32>
    %20 = arith.mulf %18, %19 : vector<1x128xf32>
    %cst_20 = arith.constant 9.99999974E-6 : f32
    %21 = vector.broadcast %cst_20 : f32 to vector<1x128xf32>
    %22 = arith.addf %20, %21 : vector<1x128xf32>
    %23 = math.rsqrt %22 : vector<1x128xf32>
    %24 = arith.mulf %1, %23 : vector<1x128xf32>
    %25 = vector.broadcast %24 : vector<1x128xf32> to vector<32x128xf32>
    %26 = arith.mulf %14, %25 : vector<32x128xf32>
    %27 = vector.broadcast %2 : vector<1x128xf32> to vector<32x128xf32>
    %28 = arith.addf %26, %27 : vector<32x128xf32>
    %cst_21 = arith.constant 0.000000e+00 : f32
    %29 = vector.broadcast %cst_21 : f32 to vector<1x128xf32>
    %30 = vector.extract_strided_slice %28 {offsets = [0, 0], sizes = [31, 128], strides = [1, 1]} : vector<32x128xf32> to vector<31x128xf32>
    %31 = tpu.concatenate %29, %30 in 0 : vector<1x128xf32>, vector<31x128xf32> -> vector<32x128xf32>
    %32 = vector.broadcast %4 : vector<32x1xf32> to vector<32x128xf32>
    %33 = arith.mulf %31, %32 : vector<32x128xf32>
    %34 = arith.truncf %33 : vector<32x128xf32> to vector<32x128xbf16>
    %35 = arith.truncf %28 : vector<32x128xf32> to vector<32x128xbf16>
    %36 = vector.extract_strided_slice %28 {offsets = [1, 0], sizes = [31, 128], strides = [1, 1]} : vector<32x128xf32> to vector<31x128xf32>
    %37 = tpu.concatenate %36, %29 in 0 : vector<31x128xf32>, vector<1x128xf32> -> vector<32x128xf32>
    %38 = vector.broadcast %5 : vector<32x1xf32> to vector<32x128xf32>
    %39 = arith.mulf %37, %38 : vector<32x128xf32>
    %40 = arith.truncf %39 : vector<32x128xf32> to vector<32x128xbf16>
    %c0_22 = arith.constant 0 : index
    %c0_23 = arith.constant 0 : index
    %c0_24 = arith.constant 0 : index
    %41 = vector.load %arg6[%c0_22, %c0_23, %c0_24] : memref<6x128x128xbf16, #tpu.memory_space<vmem>>, vector<1x128x128xbf16>
    %42 = vector.shape_cast %41 : vector<1x128x128xbf16> to vector<128x128xbf16>
    %cst_25 = arith.constant dense<0.000000e+00> : vector<32x128xf32>
    %43 = tpu.matmul %34, %42, %cst_25 {dimension_numbers = #tpu.dot_dimension_numbers<[1], [0], [0], [1], [0, 0, 1, 1], [], []>} : vector<32x128xbf16>, vector<128x128xbf16>, vector<32x128xf32> -> vector<32x128xf32>
    %c2 = arith.constant 2 : index
    %c0_26 = arith.constant 0 : index
    %c0_27 = arith.constant 0 : index
    %44 = vector.load %arg6[%c2, %c0_26, %c0_27] : memref<6x128x128xbf16, #tpu.memory_space<vmem>>, vector<1x128x128xbf16>
    %45 = vector.shape_cast %44 : vector<1x128x128xbf16> to vector<128x128xbf16>
    %cst_28 = arith.constant dense<0.000000e+00> : vector<32x128xf32>
    %46 = tpu.matmul %35, %45, %cst_28 {dimension_numbers = #tpu.dot_dimension_numbers<[1], [0], [0], [1], [0, 0, 1, 1], [], []>} : vector<32x128xbf16>, vector<128x128xbf16>, vector<32x128xf32> -> vector<32x128xf32>
    %47 = arith.addf %43, %46 : vector<32x128xf32>
    %c4 = arith.constant 4 : index
    %c0_29 = arith.constant 0 : index
    %c0_30 = arith.constant 0 : index
    %48 = vector.load %arg6[%c4, %c0_29, %c0_30] : memref<6x128x128xbf16, #tpu.memory_space<vmem>>, vector<1x128x128xbf16>
    %49 = vector.shape_cast %48 : vector<1x128x128xbf16> to vector<128x128xbf16>
    %cst_31 = arith.constant dense<0.000000e+00> : vector<32x128xf32>
    %50 = tpu.matmul %40, %49, %cst_31 {dimension_numbers = #tpu.dot_dimension_numbers<[1], [0], [0], [1], [0, 0, 1, 1], [], []>} : vector<32x128xbf16>, vector<128x128xbf16>, vector<32x128xf32> -> vector<32x128xf32>
    %51 = arith.addf %47, %50 : vector<32x128xf32>
    %c1 = arith.constant 1 : index
    %c0_32 = arith.constant 0 : index
    %c0_33 = arith.constant 0 : index
    %52 = vector.load %arg6[%c1, %c0_32, %c0_33] : memref<6x128x128xbf16, #tpu.memory_space<vmem>>, vector<1x128x128xbf16>
    %53 = vector.shape_cast %52 : vector<1x128x128xbf16> to vector<128x128xbf16>
    %cst_34 = arith.constant dense<0.000000e+00> : vector<32x128xf32>
    %54 = tpu.matmul %34, %53, %cst_34 {dimension_numbers = #tpu.dot_dimension_numbers<[1], [0], [0], [1], [0, 0, 1, 1], [], []>} : vector<32x128xbf16>, vector<128x128xbf16>, vector<32x128xf32> -> vector<32x128xf32>
    %c3 = arith.constant 3 : index
    %c0_35 = arith.constant 0 : index
    %c0_36 = arith.constant 0 : index
    %55 = vector.load %arg6[%c3, %c0_35, %c0_36] : memref<6x128x128xbf16, #tpu.memory_space<vmem>>, vector<1x128x128xbf16>
    %56 = vector.shape_cast %55 : vector<1x128x128xbf16> to vector<128x128xbf16>
    %cst_37 = arith.constant dense<0.000000e+00> : vector<32x128xf32>
    %57 = tpu.matmul %35, %56, %cst_37 {dimension_numbers = #tpu.dot_dimension_numbers<[1], [0], [0], [1], [0, 0, 1, 1], [], []>} : vector<32x128xbf16>, vector<128x128xbf16>, vector<32x128xf32> -> vector<32x128xf32>
    %58 = arith.addf %54, %57 : vector<32x128xf32>
    %c5 = arith.constant 5 : index
    %c0_38 = arith.constant 0 : index
    %c0_39 = arith.constant 0 : index
    %59 = vector.load %arg6[%c5, %c0_38, %c0_39] : memref<6x128x128xbf16, #tpu.memory_space<vmem>>, vector<1x128x128xbf16>
    %60 = vector.shape_cast %59 : vector<1x128x128xbf16> to vector<128x128xbf16>
    %cst_40 = arith.constant dense<0.000000e+00> : vector<32x128xf32>
    %61 = tpu.matmul %40, %60, %cst_40 {dimension_numbers = #tpu.dot_dimension_numbers<[1], [0], [0], [1], [0, 0, 1, 1], [], []>} : vector<32x128xbf16>, vector<128x128xbf16>, vector<32x128xf32> -> vector<32x128xf32>
    %62 = arith.addf %58, %61 : vector<32x128xf32>
    %63 = arith.maximumf %51, %62 : vector<32x128xf32>
    %64 = vector.extract_strided_slice %63 {offsets = [1, 0], sizes = [31, 128], strides = [1, 1]} : vector<32x128xf32> to vector<31x128xf32>
    %65 = vector.extract_strided_slice %63 {offsets = [31, 0], sizes = [1, 128], strides = [1, 1]} : vector<32x128xf32> to vector<1x128xf32>
    %66 = tpu.concatenate %64, %65 in 0 : vector<31x128xf32>, vector<1x128xf32> -> vector<32x128xf32>
    %67 = arith.maximumf %63, %66 : vector<32x128xf32>
    %cst_41 = arith.constant dense<0.000000e+00> : vector<16x128xf32>
    %68 = tpu.matmul %7, %67, %cst_41 {dimension_numbers = #tpu.dot_dimension_numbers<[1], [0], [0], [1], [0, 0, 1, 1], [], []>} : vector<16x32xf32>, vector<32x128xf32>, vector<16x128xf32> -> vector<16x128xf32>
    %69 = vector.broadcast %6 : vector<1x128xf32> to vector<16x128xf32>
    %70 = arith.addf %68, %69 : vector<16x128xf32>
    %cst_42 = arith.constant 0.000000e+00 : f32
    %71 = vector.broadcast %cst_42 : f32 to vector<16x128xf32>
    %72 = arith.cmpf ogt, %70, %71 : vector<16x128xf32>
    %cst_43 = arith.constant 0.000000e+00 : f32
    %73 = vector.broadcast %cst_43 : f32 to vector<16x128xf32>
    %74 = arith.minimumf %70, %73 : vector<16x128xf32>
    %75 = math.exp %74 : vector<16x128xf32>
    %cst_44 = arith.constant 1.000000e+00 : f32
    %76 = vector.broadcast %cst_44 : f32 to vector<16x128xf32>
    %77 = arith.subf %75, %76 : vector<16x128xf32>
    %78 = arith.select %72, %70, %77 : vector<16x128xi1>, vector<16x128xf32>
    %c0_45 = arith.constant 0 : index
    %c0_46 = arith.constant 0 : index
    %79 = vector.load %arg28[%c0_45, %c0_46] : memref<16x128xf32, #tpu.memory_space<vmem>>, vector<16x128xf32>
    tpu.vector_store %arg28[%c0_45, %c0_46], %78 {strides = array<i32>} : memref<16x128xf32, #tpu.memory_space<vmem>>, vector<16x128xf32>,
    %c0_47 = arith.constant 0 : index
    %c0_48 = arith.constant 0 : index
    %80 = vector.load %arg9[%c0_47, %c0_48] : memref<1x128xf32, #tpu.memory_space<vmem>>, vector<1x128xf32>
    %c0_49 = arith.constant 0 : index
    %c0_50 = arith.constant 0 : index
    %81 = vector.load %arg10[%c0_49, %c0_50] : memref<1x128xf32, #tpu.memory_space<vmem>>, vector<1x128xf32>
    %c0_51 = arith.constant 0 : index
    %c0_52 = arith.constant 0 : index
    %82 = vector.load %arg11[%c0_51, %c0_52] : memref<128x128xf32, #tpu.memory_space<vmem>>, vector<128x128xf32>
    %c0_53 = arith.constant 0 : index
    %c0_54 = arith.constant 0 : index
    %83 = vector.load %arg12[%c0_53, %c0_54] : memref<16x1xf32, #tpu.memory_space<vmem>>, vector<16x1xf32>
    %c0_55 = arith.constant 0 : index
    %c0_56 = arith.constant 0 : index
    %84 = vector.load %arg13[%c0_55, %c0_56] : memref<16x1xf32, #tpu.memory_space<vmem>>, vector<16x1xf32>
    %c0_57 = arith.constant 0 : index
    %c0_58 = arith.constant 0 : index
    %85 = vector.load %arg15[%c0_57, %c0_58] : memref<1x128xf32, #tpu.memory_space<vmem>>, vector<1x128xf32>
    %c0_59 = arith.constant 0 : index
    %c0_60 = arith.constant 0 : index
    %86 = vector.load %arg16[%c0_59, %c0_60] : memref<8x16xf32, #tpu.memory_space<vmem>>, vector<8x16xf32>
    %cst_61 = arith.constant dense<0.000000e+00> : vector<128xf32>
    %87 = vector.multi_reduction <add>, %78, %cst_61 [0] : vector<16x128xf32> to vector<128xf32>
    %88 = vector.shape_cast %87 : vector<128xf32> to vector<1x128xf32>
    %cst_62 = arith.constant dense<0.000000e+00> : vector<1x128xf32>
    %89 = tpu.matmul %88, %82, %cst_62 {dimension_numbers = #tpu.dot_dimension_numbers<[1], [0], [0], [1], [0, 0, 1, 1], [], []>} : vector<1x128xf32>, vector<128x128xf32>, vector<1x128xf32> -> vector<1x128xf32>
    %cst_63 = arith.constant 7.812500e-03 : f32
    %90 = vector.broadcast %cst_63 : f32 to vector<1x128xf32>
    %91 = arith.mulf %89, %90 : vector<1x128xf32>
    %92 = vector.broadcast %91 : vector<1x128xf32> to vector<16x128xf32>
    %93 = arith.subf %78, %92 : vector<16x128xf32>
    %94 = arith.mulf %93, %93 : vector<16x128xf32>
    %cst_64 = arith.constant dense<0.000000e+00> : vector<128xf32>
    %95 = vector.multi_reduction <add>, %94, %cst_64 [0] : vector<16x128xf32> to vector<128xf32>
    %96 = vector.shape_cast %95 : vector<128xf32> to vector<1x128xf32>
    %cst_65 = arith.constant dense<0.000000e+00> : vector<1x128xf32>
    %97 = tpu.matmul %96, %82, %cst_65 {dimension_numbers = #tpu.dot_dimension_numbers<[1], [0], [0], [1], [0, 0, 1, 1], [], []>} : vector<1x128xf32>, vector<128x128xf32>, vector<1x128xf32> -> vector<1x128xf32>
    %cst_66 = arith.constant 7.812500e-03 : f32
    %98 = vector.broadcast %cst_66 : f32 to vector<1x128xf32>
    %99 = arith.mulf %97, %98 : vector<1x128xf32>
    %cst_67 = arith.constant 9.99999974E-6 : f32
    %100 = vector.broadcast %cst_67 : f32 to vector<1x128xf32>
    %101 = arith.addf %99, %100 : vector<1x128xf32>
    %102 = math.rsqrt %101 : vector<1x128xf32>
    %103 = arith.mulf %80, %102 : vector<1x128xf32>
    %104 = vector.broadcast %103 : vector<1x128xf32> to vector<16x128xf32>
    %105 = arith.mulf %93, %104 : vector<16x128xf32>
    %106 = vector.broadcast %81 : vector<1x128xf32> to vector<16x128xf32>
    %107 = arith.addf %105, %106 : vector<16x128xf32>
    %cst_68 = arith.constant 0.000000e+00 : f32
    %108 = vector.broadcast %cst_68 : f32 to vector<1x128xf32>
    %109 = vector.extract_strided_slice %107 {offsets = [0, 0], sizes = [15, 128], strides = [1, 1]} : vector<16x128xf32> to vector<15x128xf32>
    %110 = tpu.concatenate %108, %109 in 0 : vector<1x128xf32>, vector<15x128xf32> -> vector<16x128xf32>
    %111 = vector.broadcast %83 : vector<16x1xf32> to vector<16x128xf32>
    %112 = arith.mulf %110, %111 : vector<16x128xf32>
    %113 = arith.truncf %112 : vector<16x128xf32> to vector<16x128xbf16>
    %114 = arith.truncf %107 : vector<16x128xf32> to vector<16x128xbf16>
    %115 = vector.extract_strided_slice %107 {offsets = [1, 0], sizes = [15, 128], strides = [1, 1]} : vector<16x128xf32> to vector<15x128xf32>
    %116 = tpu.concatenate %115, %108 in 0 : vector<15x128xf32>, vector<1x128xf32> -> vector<16x128xf32>
    %117 = vector.broadcast %84 : vector<16x1xf32> to vector<16x128xf32>
    %118 = arith.mulf %116, %117 : vector<16x128xf32>
    %119 = arith.truncf %118 : vector<16x128xf32> to vector<16x128xbf16>
    %c0_69 = arith.constant 0 : index
    %c0_70 = arith.constant 0 : index
    %c0_71 = arith.constant 0 : index
    %120 = vector.load %arg14[%c0_69, %c0_70, %c0_71] : memref<6x128x128xbf16, #tpu.memory_space<vmem>>, vector<1x128x128xbf16>
    %121 = vector.shape_cast %120 : vector<1x128x128xbf16> to vector<128x128xbf16>
    %cst_72 = arith.constant dense<0.000000e+00> : vector<16x128xf32>
    %122 = tpu.matmul %113, %121, %cst_72 {dimension_numbers = #tpu.dot_dimension_numbers<[1], [0], [0], [1], [0, 0, 1, 1], [], []>} : vector<16x128xbf16>, vector<128x128xbf16>, vector<16x128xf32> -> vector<16x128xf32>
    %c2_73 = arith.constant 2 : index
    %c0_74 = arith.constant 0 : index
    %c0_75 = arith.constant 0 : index
    %123 = vector.load %arg14[%c2_73, %c0_74, %c0_75] : memref<6x128x128xbf16, #tpu.memory_space<vmem>>, vector<1x128x128xbf16>
    %124 = vector.shape_cast %123 : vector<1x128x128xbf16> to vector<128x128xbf16>
    %cst_76 = arith.constant dense<0.000000e+00> : vector<16x128xf32>
    %125 = tpu.matmul %114, %124, %cst_76 {dimension_numbers = #tpu.dot_dimension_numbers<[1], [0], [0], [1], [0, 0, 1, 1], [], []>} : vector<16x128xbf16>, vector<128x128xbf16>, vector<16x128xf32> -> vector<16x128xf32>
    %126 = arith.addf %122, %125 : vector<16x128xf32>
    %c4_77 = arith.constant 4 : index
    %c0_78 = arith.constant 0 : index
    %c0_79 = arith.constant 0 : index
    %127 = vector.load %arg14[%c4_77, %c0_78, %c0_79] : memref<6x128x128xbf16, #tpu.memory_space<vmem>>, vector<1x128x128xbf16>
    %128 = vector.shape_cast %127 : vector<1x128x128xbf16> to vector<128x128xbf16>
    %cst_80 = arith.constant dense<0.000000e+00> : vector<16x128xf32>
    %129 = tpu.matmul %119, %128, %cst_80 {dimension_numbers = #tpu.dot_dimension_numbers<[1], [0], [0], [1], [0, 0, 1, 1], [], []>} : vector<16x128xbf16>, vector<128x128xbf16>, vector<16x128xf32> -> vector<16x128xf32>
    %130 = arith.addf %126, %129 : vector<16x128xf32>
    %c1_81 = arith.constant 1 : index
    %c0_82 = arith.constant 0 : index
    %c0_83 = arith.constant 0 : index
    %131 = vector.load %arg14[%c1_81, %c0_82, %c0_83] : memref<6x128x128xbf16, #tpu.memory_space<vmem>>, vector<1x128x128xbf16>
    %132 = vector.shape_cast %131 : vector<1x128x128xbf16> to vector<128x128xbf16>
    %cst_84 = arith.constant dense<0.000000e+00> : vector<16x128xf32>
    %133 = tpu.matmul %113, %132, %cst_84 {dimension_numbers = #tpu.dot_dimension_numbers<[1], [0], [0], [1], [0, 0, 1, 1], [], []>} : vector<16x128xbf16>, vector<128x128xbf16>, vector<16x128xf32> -> vector<16x128xf32>
    %c3_85 = arith.constant 3 : index
    %c0_86 = arith.constant 0 : index
    %c0_87 = arith.constant 0 : index
    %134 = vector.load %arg14[%c3_85, %c0_86, %c0_87] : memref<6x128x128xbf16, #tpu.memory_space<vmem>>, vector<1x128x128xbf16>
    %135 = vector.shape_cast %134 : vector<1x128x128xbf16> to vector<128x128xbf16>
    %cst_88 = arith.constant dense<0.000000e+00> : vector<16x128xf32>
    %136 = tpu.matmul %114, %135, %cst_88 {dimension_numbers = #tpu.dot_dimension_numbers<[1], [0], [0], [1], [0, 0, 1, 1], [], []>} : vector<16x128xbf16>, vector<128x128xbf16>, vector<16x128xf32> -> vector<16x128xf32>
    %137 = arith.addf %133, %136 : vector<16x128xf32>
    %c5_89 = arith.constant 5 : index
    %c0_90 = arith.constant 0 : index
    %c0_91 = arith.constant 0 : index
    %138 = vector.load %arg14[%c5_89, %c0_90, %c0_91] : memref<6x128x128xbf16, #tpu.memory_space<vmem>>, vector<1x128x128xbf16>
    %139 = vector.shape_cast %138 : vector<1x128x128xbf16> to vector<128x128xbf16>
    %cst_92 = arith.constant dense<0.000000e+00> : vector<16x128xf32>
    %140 = tpu.matmul %119, %139, %cst_92 {dimension_numbers = #tpu.dot_dimension_numbers<[1], [0], [0], [1], [0, 0, 1, 1], [], []>} : vector<16x128xbf16>, vector<128x128xbf16>, vector<16x128xf32> -> vector<16x128xf32>
    %141 = arith.addf %137, %140 : vector<16x128xf32>
    %142 = arith.maximumf %130, %141 : vector<16x128xf32>
    %143 = vector.extract_strided_slice %142 {offsets = [1, 0], sizes = [15, 128], strides = [1, 1]} : vector<16x128xf32> to vector<15x128xf32>
    %144 = vector.extract_strided_slice %142 {offsets = [15, 0], sizes = [1, 128], strides = [1, 1]} : vector<16x128xf32> to vector<1x128xf32>
    %145 = tpu.concatenate %143, %144 in 0 : vector<15x128xf32>, vector<1x128xf32> -> vector<16x128xf32>
    %146 = arith.maximumf %142, %145 : vector<16x128xf32>
    %cst_93 = arith.constant dense<0.000000e+00> : vector<8x128xf32>
    %147 = tpu.matmul %86, %146, %cst_93 {dimension_numbers = #tpu.dot_dimension_numbers<[1], [0], [0], [1], [0, 0, 1, 1], [], []>} : vector<8x16xf32>, vector<16x128xf32>, vector<8x128xf32> -> vector<8x128xf32>
    %148 = vector.broadcast %85 : vector<1x128xf32> to vector<8x128xf32>
    %149 = arith.addf %147, %148 : vector<8x128xf32>
    %cst_94 = arith.constant 0.000000e+00 : f32
    %150 = vector.broadcast %cst_94 : f32 to vector<8x128xf32>
    %151 = arith.cmpf ogt, %149, %150 : vector<8x128xf32>
    %cst_95 = arith.constant 0.000000e+00 : f32
    %152 = vector.broadcast %cst_95 : f32 to vector<8x128xf32>
    %153 = arith.minimumf %149, %152 : vector<8x128xf32>
    %154 = math.exp %153 : vector<8x128xf32>
    %cst_96 = arith.constant 1.000000e+00 : f32
    %155 = vector.broadcast %cst_96 : f32 to vector<8x128xf32>
    %156 = arith.subf %154, %155 : vector<8x128xf32>
    %157 = arith.select %151, %149, %156 : vector<8x128xi1>, vector<8x128xf32>
    %c0_97 = arith.constant 0 : index
    %c0_98 = arith.constant 0 : index
    %158 = vector.load %arg29[%c0_97, %c0_98] : memref<8x128xf32, #tpu.memory_space<vmem>>, vector<8x128xf32>
    tpu.vector_store %arg29[%c0_97, %c0_98], %157 {strides = array<i32>} : memref<8x128xf32, #tpu.memory_space<vmem>>, vector<8x128xf32>,
    %c0_99 = arith.constant 0 : index
    %c0_100 = arith.constant 0 : index
    %159 = vector.load %arg17[%c0_99, %c0_100] : memref<1x128xf32, #tpu.memory_space<vmem>>, vector<1x128xf32>
    %c0_101 = arith.constant 0 : index
    %c0_102 = arith.constant 0 : index
    %160 = vector.load %arg18[%c0_101, %c0_102] : memref<1x128xf32, #tpu.memory_space<vmem>>, vector<1x128xf32>
    %c0_103 = arith.constant 0 : index
    %c0_104 = arith.constant 0 : index
    %161 = vector.load %arg19[%c0_103, %c0_104] : memref<128x128xf32, #tpu.memory_space<vmem>>, vector<128x128xf32>
    %c0_105 = arith.constant 0 : index
    %c0_106 = arith.constant 0 : index
    %162 = vector.load %arg20[%c0_105, %c0_106] : memref<8x1xf32, #tpu.memory_space<vmem>>, vector<8x1xf32>
    %c0_107 = arith.constant 0 : index
    %c0_108 = arith.constant 0 : index
    %163 = vector.load %arg21[%c0_107, %c0_108] : memref<8x1xf32, #tpu.memory_space<vmem>>, vector<8x1xf32>
    %c0_109 = arith.constant 0 : index
    %c0_110 = arith.constant 0 : index
    %164 = vector.load %arg23[%c0_109, %c0_110] : memref<1x128xf32, #tpu.memory_space<vmem>>, vector<1x128xf32>
    %c0_111 = arith.constant 0 : index
    %c0_112 = arith.constant 0 : index
    %165 = vector.load %arg24[%c0_111, %c0_112] : memref<4x8xf32, #tpu.memory_space<vmem>>, vector<4x8xf32>
    %cst_113 = arith.constant dense<0.000000e+00> : vector<128xf32>
    %166 = vector.multi_reduction <add>, %157, %cst_113 [0] : vector<8x128xf32> to vector<128xf32>
    %167 = vector.shape_cast %166 : vector<128xf32> to vector<1x128xf32>
    %cst_114 = arith.constant dense<0.000000e+00> : vector<1x128xf32>
    %168 = tpu.matmul %167, %161, %cst_114 {dimension_numbers = #tpu.dot_dimension_numbers<[1], [0], [0], [1], [0, 0, 1, 1], [], []>} : vector<1x128xf32>, vector<128x128xf32>, vector<1x128xf32> -> vector<1x128xf32>
    %cst_115 = arith.constant 3.125000e-02 : f32
    %169 = vector.broadcast %cst_115 : f32 to vector<1x128xf32>
    %170 = arith.mulf %168, %169 : vector<1x128xf32>
    %171 = vector.broadcast %170 : vector<1x128xf32> to vector<8x128xf32>
    %172 = arith.subf %157, %171 : vector<8x128xf32>
    %173 = arith.mulf %172, %172 : vector<8x128xf32>
    %cst_116 = arith.constant dense<0.000000e+00> : vector<128xf32>
    %174 = vector.multi_reduction <add>, %173, %cst_116 [0] : vector<8x128xf32> to vector<128xf32>
    %175 = vector.shape_cast %174 : vector<128xf32> to vector<1x128xf32>
    %cst_117 = arith.constant dense<0.000000e+00> : vector<1x128xf32>
    %176 = tpu.matmul %175, %161, %cst_117 {dimension_numbers = #tpu.dot_dimension_numbers<[1], [0], [0], [1], [0, 0, 1, 1], [], []>} : vector<1x128xf32>, vector<128x128xf32>, vector<1x128xf32> -> vector<1x128xf32>
    %cst_118 = arith.constant 3.125000e-02 : f32
    %177 = vector.broadcast %cst_118 : f32 to vector<1x128xf32>
    %178 = arith.mulf %176, %177 : vector<1x128xf32>
    %cst_119 = arith.constant 9.99999974E-6 : f32
    %179 = vector.broadcast %cst_119 : f32 to vector<1x128xf32>
    %180 = arith.addf %178, %179 : vector<1x128xf32>
    %181 = math.rsqrt %180 : vector<1x128xf32>
    %182 = arith.mulf %159, %181 : vector<1x128xf32>
    %183 = vector.broadcast %182 : vector<1x128xf32> to vector<8x128xf32>
    %184 = arith.mulf %172, %183 : vector<8x128xf32>
    %185 = vector.broadcast %160 : vector<1x128xf32> to vector<8x128xf32>
    %186 = arith.addf %184, %185 : vector<8x128xf32>
    %cst_120 = arith.constant 0.000000e+00 : f32
    %187 = vector.broadcast %cst_120 : f32 to vector<1x128xf32>
    %188 = vector.extract_strided_slice %186 {offsets = [0, 0], sizes = [7, 128], strides = [1, 1]} : vector<8x128xf32> to vector<7x128xf32>
    %189 = tpu.concatenate %187, %188 in 0 : vector<1x128xf32>, vector<7x128xf32> -> vector<8x128xf32>
    %190 = vector.broadcast %162 : vector<8x1xf32> to vector<8x128xf32>
    %191 = arith.mulf %189, %190 : vector<8x128xf32>
    %192 = arith.truncf %191 : vector<8x128xf32> to vector<8x128xbf16>
    %193 = arith.truncf %186 : vector<8x128xf32> to vector<8x128xbf16>
    %194 = vector.extract_strided_slice %186 {offsets = [1, 0], sizes = [7, 128], strides = [1, 1]} : vector<8x128xf32> to vector<7x128xf32>
    %195 = tpu.concatenate %194, %187 in 0 : vector<7x128xf32>, vector<1x128xf32> -> vector<8x128xf32>
    %196 = vector.broadcast %163 : vector<8x1xf32> to vector<8x128xf32>
    %197 = arith.mulf %195, %196 : vector<8x128xf32>
    %198 = arith.truncf %197 : vector<8x128xf32> to vector<8x128xbf16>
    %c0_121 = arith.constant 0 : index
    %c0_122 = arith.constant 0 : index
    %c0_123 = arith.constant 0 : index
    %199 = vector.load %arg22[%c0_121, %c0_122, %c0_123] : memref<6x128x128xbf16, #tpu.memory_space<vmem>>, vector<1x128x128xbf16>
    %200 = vector.shape_cast %199 : vector<1x128x128xbf16> to vector<128x128xbf16>
    %cst_124 = arith.constant dense<0.000000e+00> : vector<8x128xf32>
    %201 = tpu.matmul %192, %200, %cst_124 {dimension_numbers = #tpu.dot_dimension_numbers<[1], [0], [0], [1], [0, 0, 1, 1], [], []>} : vector<8x128xbf16>, vector<128x128xbf16>, vector<8x128xf32> -> vector<8x128xf32>
    %c2_125 = arith.constant 2 : index
    %c0_126 = arith.constant 0 : index
    %c0_127 = arith.constant 0 : index
    %202 = vector.load %arg22[%c2_125, %c0_126, %c0_127] : memref<6x128x128xbf16, #tpu.memory_space<vmem>>, vector<1x128x128xbf16>
    %203 = vector.shape_cast %202 : vector<1x128x128xbf16> to vector<128x128xbf16>
    %cst_128 = arith.constant dense<0.000000e+00> : vector<8x128xf32>
    %204 = tpu.matmul %193, %203, %cst_128 {dimension_numbers = #tpu.dot_dimension_numbers<[1], [0], [0], [1], [0, 0, 1, 1], [], []>} : vector<8x128xbf16>, vector<128x128xbf16>, vector<8x128xf32> -> vector<8x128xf32>
    %205 = arith.addf %201, %204 : vector<8x128xf32>
    %c4_129 = arith.constant 4 : index
    %c0_130 = arith.constant 0 : index
    %c0_131 = arith.constant 0 : index
    %206 = vector.load %arg22[%c4_129, %c0_130, %c0_131] : memref<6x128x128xbf16, #tpu.memory_space<vmem>>, vector<1x128x128xbf16>
    %207 = vector.shape_cast %206 : vector<1x128x128xbf16> to vector<128x128xbf16>
    %cst_132 = arith.constant dense<0.000000e+00> : vector<8x128xf32>
    %208 = tpu.matmul %198, %207, %cst_132 {dimension_numbers = #tpu.dot_dimension_numbers<[1], [0], [0], [1], [0, 0, 1, 1], [], []>} : vector<8x128xbf16>, vector<128x128xbf16>, vector<8x128xf32> -> vector<8x128xf32>
    %209 = arith.addf %205, %208 : vector<8x128xf32>
    %c1_133 = arith.constant 1 : index
    %c0_134 = arith.constant 0 : index
    %c0_135 = arith.constant 0 : index
    %210 = vector.load %arg22[%c1_133, %c0_134, %c0_135] : memref<6x128x128xbf16, #tpu.memory_space<vmem>>, vector<1x128x128xbf16>
    %211 = vector.shape_cast %210 : vector<1x128x128xbf16> to vector<128x128xbf16>
    %cst_136 = arith.constant dense<0.000000e+00> : vector<8x128xf32>
    %212 = tpu.matmul %192, %211, %cst_136 {dimension_numbers = #tpu.dot_dimension_numbers<[1], [0], [0], [1], [0, 0, 1, 1], [], []>} : vector<8x128xbf16>, vector<128x128xbf16>, vector<8x128xf32> -> vector<8x128xf32>
    %c3_137 = arith.constant 3 : index
    %c0_138 = arith.constant 0 : index
    %c0_139 = arith.constant 0 : index
    %213 = vector.load %arg22[%c3_137, %c0_138, %c0_139] : memref<6x128x128xbf16, #tpu.memory_space<vmem>>, vector<1x128x128xbf16>
    %214 = vector.shape_cast %213 : vector<1x128x128xbf16> to vector<128x128xbf16>
    %cst_140 = arith.constant dense<0.000000e+00> : vector<8x128xf32>
    %215 = tpu.matmul %193, %214, %cst_140 {dimension_numbers = #tpu.dot_dimension_numbers<[1], [0], [0], [1], [0, 0, 1, 1], [], []>} : vector<8x128xbf16>, vector<128x128xbf16>, vector<8x128xf32> -> vector<8x128xf32>
    %216 = arith.addf %212, %215 : vector<8x128xf32>
    %c5_141 = arith.constant 5 : index
    %c0_142 = arith.constant 0 : index
    %c0_143 = arith.constant 0 : index
    %217 = vector.load %arg22[%c5_141, %c0_142, %c0_143] : memref<6x128x128xbf16, #tpu.memory_space<vmem>>, vector<1x128x128xbf16>
    %218 = vector.shape_cast %217 : vector<1x128x128xbf16> to vector<128x128xbf16>
    %cst_144 = arith.constant dense<0.000000e+00> : vector<8x128xf32>
    %219 = tpu.matmul %198, %218, %cst_144 {dimension_numbers = #tpu.dot_dimension_numbers<[1], [0], [0], [1], [0, 0, 1, 1], [], []>} : vector<8x128xbf16>, vector<128x128xbf16>, vector<8x128xf32> -> vector<8x128xf32>
    %220 = arith.addf %216, %219 : vector<8x128xf32>
    %221 = arith.maximumf %209, %220 : vector<8x128xf32>
    %222 = vector.extract_strided_slice %221 {offsets = [1, 0], sizes = [7, 128], strides = [1, 1]} : vector<8x128xf32> to vector<7x128xf32>
    %223 = vector.extract_strided_slice %221 {offsets = [7, 0], sizes = [1, 128], strides = [1, 1]} : vector<8x128xf32> to vector<1x128xf32>
    %224 = tpu.concatenate %222, %223 in 0 : vector<7x128xf32>, vector<1x128xf32> -> vector<8x128xf32>
    %225 = arith.maximumf %221, %224 : vector<8x128xf32>
    %cst_145 = arith.constant dense<0.000000e+00> : vector<4x128xf32>
    %226 = tpu.matmul %165, %225, %cst_145 {dimension_numbers = #tpu.dot_dimension_numbers<[1], [0], [0], [1], [0, 0, 1, 1], [], []>} : vector<4x8xf32>, vector<8x128xf32>, vector<4x128xf32> -> vector<4x128xf32>
    %227 = vector.broadcast %164 : vector<1x128xf32> to vector<4x128xf32>
    %228 = arith.addf %226, %227 : vector<4x128xf32>
    %cst_146 = arith.constant 0.000000e+00 : f32
    %229 = vector.broadcast %cst_146 : f32 to vector<4x128xf32>
    %230 = arith.cmpf ogt, %228, %229 : vector<4x128xf32>
    %cst_147 = arith.constant 0.000000e+00 : f32
    %231 = vector.broadcast %cst_147 : f32 to vector<4x128xf32>
    %232 = arith.minimumf %228, %231 : vector<4x128xf32>
    %233 = math.exp %232 : vector<4x128xf32>
    %cst_148 = arith.constant 1.000000e+00 : f32
    %234 = vector.broadcast %cst_148 : f32 to vector<4x128xf32>
    %235 = arith.subf %233, %234 : vector<4x128xf32>
    %236 = arith.select %230, %228, %235 : vector<4x128xi1>, vector<4x128xf32>
    %c0_149 = arith.constant 0 : index
    %c0_150 = arith.constant 0 : index
    %237 = vector.load %arg30[%c0_149, %c0_150] : memref<4x128xf32, #tpu.memory_space<vmem>>, vector<4x128xf32>
    tpu.vector_store %arg30[%c0_149, %c0_150], %236 {strides = array<i32>} : memref<4x128xf32, #tpu.memory_space<vmem>>, vector<4x128xf32>,
    %c0_151 = arith.constant 0 : index
    %c0_152 = arith.constant 0 : index
    %238 = vector.load %arg25[%c0_151, %c0_152] : memref<4x4xf32, #tpu.memory_space<vmem>>, vector<4x4xf32>
    %cst_153 = arith.constant dense<0.000000e+00> : vector<4x128xf32>
    %239 = tpu.matmul %238, %236, %cst_153 {dimension_numbers = #tpu.dot_dimension_numbers<[1], [0], [0], [1], [0, 0, 1, 1], [], []>} : vector<4x4xf32>, vector<4x128xf32>, vector<4x128xf32> -> vector<4x128xf32>
    %240 = vector.extract_strided_slice %239 {offsets = [0, 0], sizes = [2, 128], strides = [1, 1]} : vector<4x128xf32> to vector<2x128xf32>
    %241 = vector.extract_strided_slice %239 {offsets = [2, 0], sizes = [2, 128], strides = [1, 1]} : vector<4x128xf32> to vector<2x128xf32>
    %242 = tpu.concatenate %240, %241 in 1 : vector<2x128xf32>, vector<2x128xf32> -> vector<2x256xf32>
    %243 = arith.truncf %242 : vector<2x256xf32> to vector<2x256xbf16>
    %c0_154 = arith.constant 0 : index
    %c0_155 = arith.constant 0 : index
    %244 = vector.load %arg26[%c0_154, %c0_155] : memref<256x128xbf16, #tpu.memory_space<vmem>>, vector<256x128xbf16>
    %cst_156 = arith.constant dense<0.000000e+00> : vector<2x128xf32>
    %245 = tpu.matmul %243, %244, %cst_156 {dimension_numbers = #tpu.dot_dimension_numbers<[1], [0], [0], [1], [0, 0, 1, 1], [], []>} : vector<2x256xbf16>, vector<256x128xbf16>, vector<2x128xf32> -> vector<2x128xf32>
    %c0_157 = arith.constant 0 : index
    %c0_158 = arith.constant 0 : index
    %246 = vector.load %arg27[%c0_157, %c0_158] : memref<1x128xf32, #tpu.memory_space<vmem>>, vector<1x128xf32>
    %247 = vector.broadcast %246 : vector<1x128xf32> to vector<2x128xf32>
    %248 = arith.addf %245, %247 : vector<2x128xf32>
    %c0_159 = arith.constant 0 : index
    %c0_160 = arith.constant 0 : index
    %249 = vector.load %arg31[%c0_159, %c0_160] : memref<2x128xf32, #tpu.memory_space<vmem>>, vector<2x128xf32>
    tpu.vector_store %arg31[%c0_159, %c0_160], %248 {strides = array<i32>} : memref<2x128xf32, #tpu.memory_space<vmem>>, vector<2x128xf32>,
    return
  }
}

</mosaic_0001>

<llo_original>
// kernel: tile.58
$region0: #{tile.58}
  #allocation0 [shape = 's32[1]{0}', space=sflag, size = 0x4, scoped, tag = 'scoped memory for tile.58']
  %s0 = inlined_call_operand.vmem [shape: f32[8], index: 0, kind: input, shape index: {}]
  %s1 = inlined_call_operand.vmem [shape: f32[8,8], index: 1, kind: output, shape index: {}]
  // Predicated region
  $region2: #{tile.58} parent=0 // pred_check
    _
  $region3: #{tile.58} parent=0 // pred_check_branch
    %3 = sbr.rel (0) target = $region5
  $region4: #{tile.58} parent=0 // pred_region
    _
  $region5: #{tile.58} parent=0 // pred_fallthru
    _
  %v4 = vld [vmem:[%s0] ss:$0 sm:$0xff]
  %5 = vst [vmem:[%s1] sm:$0xff] %v4

// kernel: tile.48
$region0: #{tile.48}
  #allocation0 [shape = 's32[1]{0}', space=sflag, size = 0x4, scoped, tag = 'scoped memory for tile.48']
  %s0 = inlined_call_operand.vmem [shape: f32[4], index: 0, kind: input, shape index: {}]
  %s1 = inlined_call_operand.vmem [shape: f32[16,4], index: 1, kind: output, shape index: {}]
  // Predicated region
  $region2: #{tile.48} parent=0 // pred_check
    _
  $region3: #{tile.48} parent=0 // pred_check_branch
    %3 = sbr.rel (0) target = $region5
  $region4: #{tile.48} parent=0 // pred_region
    _
  $region5: #{tile.48} parent=0 // pred_fallthru
    _
  %v4 = vld [vmem:[%s0] ss:$0 sm:$0xff]
  %5 = vst [vmem:[%s1] sm:$0xff] %v4
  %s6 = scalar_lea.vmem %s1, 8
  %7 = vst [vmem:[%s6] sm:$0xff] %v4

// kernel: tile.49
$region0: #{tile.49}
  %s0 = inlined_call_operand.vmem [shape: f32[16,4], index: 0, kind: input, shape index: {}]
  %s1 = inlined_call_operand.vmem [shape: f32[64], index: 1, kind: output, shape index: {}]
  $region1: #{tile.49} parent=0
    #allocation0 [shape = 'u8[4096]{0}', space=vmem, size = 0x1000, scoped, tag = 'scoped mem for output reshape']
    %v2 = vld [vmem:[%s0] sm:$0x1]
    %vm3 = vcmask 31744
    %4 = vst.msk [vmem:[#allocation0] sm:$0x1] %vm3, %v2
    %s5 = scalar_lea.vmem %s0, 15
    %v6 = vld [vmem:[%s5] sm:$0x1]
    %7 = vrot.lane.b32.xlu0 %v6, 60
    %v8 = vpop.permute.xlu0 %7
    %vm9 = vcmask 523744
    %10 = vst.msk [vmem:[#allocation0] sm:$0x1] %vm9, %v8
    %s11 = scalar_lea.vmem %s0, 14
    %v12 = vld [vmem:[%s11] sm:$0x1]
    %13 = vrot.lane.b32.xlu0 %v12, 56
    %v14 = vpop.permute.xlu0 %13
    %vm15 = vcmask 490944
    %16 = vst.msk [vmem:[#allocation0] sm:$0x1] %vm15, %v14
    %s17 = scalar_lea.vmem %s0, 13
    %v18 = vld [vmem:[%s17] sm:$0x1]
    %19 = vrot.lane.b32.xlu0 %v18, 52
    %v20 = vpop.permute.xlu0 %19
    %vm21 = vcmask 458144
    %22 = vst.msk [vmem:[#allocation0] sm:$0x1] %vm21, %v20
    %s23 = scalar_lea.vmem %s0, 12
    %v24 = vld [vmem:[%s23] sm:$0x1]
    %25 = vrot.lane.b32.xlu0 %v24, 48
    %v26 = vpop.permute.xlu0 %25
    %vm27 = vcmask 425344
    %28 = vst.msk [vmem:[#allocation0] sm:$0x1] %vm27, %v26
    %s29 = scalar_lea.vmem %s0, 11
    %v30 = vld [vmem:[%s29] sm:$0x1]
    %31 = vrot.lane.b32.xlu0 %v30, 44
    %v32 = vpop.permute.xlu0 %31
    %vm33 = vcmask 392544
    %34 = vst.msk [vmem:[#allocation0] sm:$0x1] %vm33, %v32
    %s35 = scalar_lea.vmem %s0, 10
    %v36 = vld [vmem:[%s35] sm:$0x1]
    %37 = vrot.lane.b32.xlu0 %v36, 40
    %v38 = vpop.permute.xlu0 %37
    %vm39 = vcmask 359744
    %40 = vst.msk [vmem:[#allocation0] sm:$0x1] %vm39, %v38
    %s41 = scalar_lea.vmem %s0, 9
    %v42 = vld [vmem:[%s41] sm:$0x1]
    %43 = vrot.lane.b32.xlu0 %v42, 36
    %v44 = vpop.permute.xlu0 %43
    %vm45 = vcmask 326944
    %46 = vst.msk [vmem:[#allocation0] sm:$0x1] %vm45, %v44
    %s47 = scalar_lea.vmem %s0, 8
    %v48 = vld [vmem:[%s47] sm:$0x1]
    %49 = vrot.lane.b32.xlu0 %v48, 32
    %v50 = vpop.permute.xlu0 %49
    %vm51 = vcmask 294144
    %52 = vst.msk [vmem:[#allocation0] sm:$0x1] %vm51, %v50
    %s53 = scalar_lea.vmem %s0, 7
    %v54 = vld [vmem:[%s53] sm:$0x1]
    %55 = vrot.lane.b32.xlu0 %v54, 28
    %v56 = vpop.permute.xlu0 %55
    %vm57 = vcmask 261344
    %58 = vst.msk [vmem:[#allocation0] sm:$0x1] %vm57, %v56
    %s59 = scalar_lea.vmem %s0, 6
    %v60 = vld [vmem:[%s59] sm:$0x1]
    %61 = vrot.lane.b32.xlu0 %v60, 24
    %v62 = vpop.permute.xlu0 %61
    %vm63 = vcmask 228544
    %64 = vst.msk [vmem:[#allocation0] sm:$0x1] %vm63, %v62
    %s65 = scalar_lea.vmem %s0, 5
    %v66 = vld [vmem:[%s65] sm:$0x1]
    %67 = vrot.lane.b32.xlu0 %v66, 20
    %v68 = vpop.permute.xlu0 %67
    %vm69 = vcmask 195744
    %70 = vst.msk [vmem:[#allocation0] sm:$0x1] %vm69, %v68
    %s71 = scalar_lea.vmem %s0, 4
    %v72 = vld [vmem:[%s71] sm:$0x1]
    %73 = vrot.lane.b32.xlu0 %v72, 16
    %v74 = vpop.permute.xlu0 %73
    %vm75 = vcmask 162944
    %76 = vst.msk [vmem:[#allocation0] sm:$0x1] %vm75, %v74
    %s77 = scalar_lea.vmem %s0, 3
    %v78 = vld [vmem:[%s77] sm:$0x1]
    %79 = vrot.lane.b32.xlu0 %v78, 12
    %v80 = vpop.permute.xlu0 %79
    %vm81 = vcmask 130144
    %82 = vst.msk [vmem:[#allocation0] sm:$0x1] %vm81, %v80
    %s83 = scalar_lea.vmem %s0, 2
    %v84 = vld [vmem:[%s83] sm:$0x1]
    %85 = vrot.lane.b32.xlu0 %v84, 8
    %v86 = vpop.permute.xlu0 %85
    %vm87 = vcmask 97344
    %88 = vst.msk [vmem:[#allocation0] sm:$0x1] %vm87, %v86
    %s89 = scalar_lea.vmem %s0, 1
    %v90 = vld [vmem:[%s89] sm:$0x1]
    %91 = vrot.lane.b32.xlu0 %v90, 4
    %v92 = vpop.permute.xlu0 %91
    %vm93 = vcmask 64544
    %94 = vst.msk [vmem:[#allocation0] sm:$0x1] %vm93, %v92
    %s96 = sshllo.u32 0, 1
    %v98 = vld [vmem:[#allocation0] sm:%s96]
    %s99 = sshllo.u32 0, 1
    %100 = vst [vmem:[%s1] sm:%s99] %v98

// kernel: tile.59
$region0: #{tile.59}
  %s0 = inlined_call_operand.vmem [shape: f32[8,8], index: 0, kind: input, shape index: {}]
  %s1 = inlined_call_operand.vmem [shape: f32[64], index: 1, kind: output, shape index: {}]
  $region1: #{tile.59} parent=0
    #allocation0 [shape = 'u8[4096]{0}', space=vmem, size = 0x1000, scoped, tag = 'scoped mem for output reshape']
    %v2 = vld [vmem:[%s0] sm:$0x1]
    %vm3 = vcmask 64512
    %4 = vst.msk [vmem:[#allocation0] sm:$0x1] %vm3, %v2
    %s5 = scalar_lea.vmem %s0, 7
    %v6 = vld [vmem:[%s5] sm:$0x1]
    %7 = vrot.lane.b32.xlu0 %v6, 56
    %v8 = vpop.permute.xlu0 %7
    %vm9 = vcmask 523712
    %10 = vst.msk [vmem:[#allocation0] sm:$0x1] %vm9, %v8
    %s11 = scalar_lea.vmem %s0, 6
    %v12 = vld [vmem:[%s11] sm:$0x1]
    %13 = vrot.lane.b32.xlu0 %v12, 48
    %v14 = vpop.permute.xlu0 %13
    %vm15 = vcmask 458112
    %16 = vst.msk [vmem:[#allocation0] sm:$0x1] %vm15, %v14
    %s17 = scalar_lea.vmem %s0, 5
    %v18 = vld [vmem:[%s17] sm:$0x1]
    %19 = vrot.lane.b32.xlu0 %v18, 40
    %v20 = vpop.permute.xlu0 %19
    %vm21 = vcmask 392512
    %22 = vst.msk [vmem:[#allocation0] sm:$0x1] %vm21, %v20
    %s23 = scalar_lea.vmem %s0, 4
    %v24 = vld [vmem:[%s23] sm:$0x1]
    %25 = vrot.lane.b32.xlu0 %v24, 32
    %v26 = vpop.permute.xlu0 %25
    %vm27 = vcmask 326912
    %28 = vst.msk [vmem:[#allocation0] sm:$0x1] %vm27, %v26
    %s29 = scalar_lea.vmem %s0, 3
    %v30 = vld [vmem:[%s29] sm:$0x1]
    %31 = vrot.lane.b32.xlu0 %v30, 24
    %v32 = vpop.permute.xlu0 %31
    %vm33 = vcmask 261312
    %34 = vst.msk [vmem:[#allocation0] sm:$0x1] %vm33, %v32
    %s35 = scalar_lea.vmem %s0, 2
    %v36 = vld [vmem:[%s35] sm:$0x1]
    %37 = vrot.lane.b32.xlu0 %v36, 16
    %v38 = vpop.permute.xlu0 %37
    %vm39 = vcmask 195712
    %40 = vst.msk [vmem:[#allocation0] sm:$0x1] %vm39, %v38
    %s41 = scalar_lea.vmem %s0, 1
    %v42 = vld [vmem:[%s41] sm:$0x1]
    %43 = vrot.lane.b32.xlu0 %v42, 8
    %v44 = vpop.permute.xlu0 %43
    %vm45 = vcmask 130112
    %46 = vst.msk [vmem:[#allocation0] sm:$0x1] %vm45, %v44
    %s48 = sshllo.u32 0, 1
    %v50 = vld [vmem:[#allocation0] sm:%s48]
    %s51 = sshllo.u32 0, 1
    %52 = vst [vmem:[%s1] sm:%s51] %v50

// kernel: tile.74
$region0: #{tile.74}
  %s0 = inlined_call_operand.vmem [shape: f32[4,16], index: 0, kind: input, shape index: {}]
  %s1 = inlined_call_operand.vmem [shape: f32[64], index: 1, kind: output, shape index: {}]
  $region1: #{tile.74} parent=0
    #allocation0 [shape = 'u8[4096]{0}', space=vmem, size = 0x1000, scoped, tag = 'scoped mem for output reshape']
    #allocation1 [shape = 'u8[4096]{0}', space=vmem, size = 0x1000, scoped, tag = 'scoped mem for input reshape']
    %s3 = sshllo.u32 0, 4
    %v4 = vld [vmem:[%s0] sm:%s3]
    %5 = vst [vmem:[#allocation1] sm:%s3] %v4
    %v6 = vld [vmem:[#allocation1] sm:$0x1]
    %vm7 = vcmask 130048
    %8 = vst.msk [vmem:[#allocation0] sm:$0x1] %vm7, %v6
    %s9 = scalar_lea.vmem [#allocation1], 3
    %v10 = vld [vmem:[%s9] sm:$0x1]
    %11 = vrot.lane.b32.xlu0 %v10, 48
    %v12 = vpop.permute.xlu0 %11
    %vm13 = vcmask 523648
    %14 = vst.msk [vmem:[#allocation0] sm:$0x1] %vm13, %v12
    %s15 = scalar_lea.vmem [#allocation1], 2
    %v16 = vld [vmem:[%s15] sm:$0x1]
    %17 = vrot.lane.b32.xlu0 %v16, 32
    %v18 = vpop.permute.xlu0 %17
    %vm19 = vcmask 392448
    %20 = vst.msk [vmem:[#allocation0] sm:$0x1] %vm19, %v18
    %s21 = scalar_lea.vmem [#allocation1], 1
    %v22 = vld [vmem:[%s21] sm:$0x1]
    %23 = vrot.lane.b32.xlu0 %v22, 16
    %v24 = vpop.permute.xlu0 %23
    %vm25 = vcmask 261248
    %26 = vst.msk [vmem:[#allocation0] sm:$0x1] %vm25, %v24
    %s28 = sshllo.u32 0, 1
    %v30 = vld [vmem:[#allocation0] sm:%s28]
    %s31 = sshllo.u32 0, 1
    %32 = vst [vmem:[%s1] sm:%s31] %v30

// kernel: tile.73
$region0: #{tile.73}
  #allocation0 [shape = 's32[1]{0}', space=sflag, size = 0x4, scoped, tag = 'scoped memory for tile.73']
  %s0 = inlined_call_operand.vmem [shape: f32[16], index: 0, kind: input, shape index: {}]
  %s1 = inlined_call_operand.vmem [shape: f32[4,16], index: 1, kind: output, shape index: {}]
  // Predicated region
  $region2: #{tile.73} parent=0 // pred_check
    _
  $region3: #{tile.73} parent=0 // pred_check_branch
    %3 = sbr.rel (0) target = $region5
  $region4: #{tile.73} parent=0 // pred_region
    _
  $region5: #{tile.73} parent=0 // pred_fallthru
    _
  %v4 = vld [vmem:[%s0] ss:$0 sm:$0xff]
  %5 = vst [vmem:[%s1] sm:$0xf] %v4

// kernel: tile.88
$region0: #{tile.88}
  #allocation0 [shape = 's32[1]{0}', space=sflag, size = 0x4, scoped, tag = 'scoped memory for tile.88']
  %s0 = inlined_call_operand.vmem [shape: f32[32], index: 0, kind: input, shape index: {}]
  %s1 = inlined_call_operand.vmem [shape: f32[2,32], index: 1, kind: output, shape index: {}]
  // Predicated region
  $region2: #{tile.88} parent=0 // pred_check
    _
  $region3: #{tile.88} parent=0 // pred_check_branch
    %3 = sbr.rel (0) target = $region5
  $region4: #{tile.88} parent=0 // pred_region
    _
  $region5: #{tile.88} parent=0 // pred_fallthru
    _
  %v4 = vld [vmem:[%s0] ss:$0 sm:$0xff]
  %5 = vst [vmem:[%s1] sm:$0x3] %v4

// kernel: tile.89
$region0: #{tile.89}
  %s0 = inlined_call_operand.vmem [shape: f32[2,32], index: 0, kind: input, shape index: {}]
  %s1 = inlined_call_operand.vmem [shape: f32[64], index: 1, kind: output, shape index: {}]
  $region1: #{tile.89} parent=0
    #allocation0 [shape = 'u8[4096]{0}', space=vmem, size = 0x1000, scoped, tag = 'scoped mem for output reshape']
    #allocation1 [shape = 'u8[4096]{0}', space=vmem, size = 0x1000, scoped, tag = 'scoped mem for input reshape']
    %s3 = sshllo.u32 0, 2
    %v4 = vld [vmem:[%s0] sm:%s3]
    %5 = vst [vmem:[#allocation1] sm:%s3] %v4
    %v6 = vld [vmem:[#allocation1] sm:$0x1]
    %vm7 = vcmask 261120
    %8 = vst.msk [vmem:[#allocation0] sm:$0x1] %vm7, %v6
    %s9 = scalar_lea.vmem [#allocation1], 1
    %v10 = vld [vmem:[%s9] sm:$0x1]
    %11 = vrot.lane.b32.xlu0 %v10, 32
    %v12 = vpop.permute.xlu0 %11
    %vm13 = vcmask 523520
    %14 = vst.msk [vmem:[#allocation0] sm:$0x1] %vm13, %v12
    %s16 = sshllo.u32 0, 1
    %v18 = vld [vmem:[#allocation0] sm:%s16]
    %s19 = sshllo.u32 0, 1
    %20 = vst [vmem:[%s1] sm:%s19] %v18

// kernel: unit_cnn_encoder.1
$region0: #{unit_cnn_encoder.1}
  #allocation0 [shape = 'u32[]', space=smem, size = 0x4, offset = 0x4, fixed_abs, tag = 'smem constant byte address 0x4 - core index']
  #allocation1 [shape = 'u32[144,128]{1,0:T(1,128)}', space=vmem, size = 0x12000, scoped, tag = 'internal scratch']
  %s0 = inlined_call_operand.smem [shape: u32[32], index: -1, kind: input, shape index: {}]
  %s1 = sld [smem:[%s0]]
  %s2 = scalar_lea.smem %s0, 1
  %s3 = sld [smem:[%s2]]
  %s4 = scalar_lea.smem %s0, 2
  %s5 = sld [smem:[%s4]]
  %s6 = scalar_lea.smem %s0, 3
  %s7 = sld [smem:[%s6]]
  %s8 = scalar_lea.smem %s0, 4
  %s9 = sld [smem:[%s8]]
  %s10 = scalar_lea.smem %s0, 5
  %s11 = sld [smem:[%s10]]
  %s12 = scalar_lea.smem %s0, 6
  %s13 = sld [smem:[%s12]]
  %s14 = scalar_lea.smem %s0, 7
  %s15 = sld [smem:[%s14]]
  %s16 = scalar_lea.smem %s0, 8
  %s17 = sld [smem:[%s16]]
  %s18 = scalar_lea.smem %s0, 9
  %s19 = sld [smem:[%s18]]
  %s20 = scalar_lea.smem %s0, 10
  %s21 = sld [smem:[%s20]]
  %s22 = scalar_lea.smem %s0, 11
  %s23 = sld [smem:[%s22]]
  %s24 = scalar_lea.smem %s0, 12
  %s25 = sld [smem:[%s24]]
  %s26 = scalar_lea.smem %s0, 13
  %s27 = sld [smem:[%s26]]
  %s28 = scalar_lea.smem %s0, 14
  %s29 = sld [smem:[%s28]]
  %s30 = scalar_lea.smem %s0, 15
  %s31 = sld [smem:[%s30]]
  %s32 = scalar_lea.smem %s0, 16
  %s33 = sld [smem:[%s32]]
  %s34 = scalar_lea.smem %s0, 17
  %s35 = sld [smem:[%s34]]
  %s36 = scalar_lea.smem %s0, 18
  %s37 = sld [smem:[%s36]]
  %s38 = scalar_lea.smem %s0, 19
  %s39 = sld [smem:[%s38]]
  %s40 = scalar_lea.smem %s0, 20
  %s41 = sld [smem:[%s40]]
  %s42 = scalar_lea.smem %s0, 21
  %s43 = sld [smem:[%s42]]
  %s44 = scalar_lea.smem %s0, 22
  %s45 = sld [smem:[%s44]]
  %s46 = scalar_lea.smem %s0, 23
  %s47 = sld [smem:[%s46]]
  %s48 = scalar_lea.smem %s0, 24
  %s49 = sld [smem:[%s48]]
  %s50 = scalar_lea.smem %s0, 25
  %s51 = sld [smem:[%s50]]
  %s52 = scalar_lea.smem %s0, 26
  %s53 = sld [smem:[%s52]]
  %s54 = scalar_lea.smem %s0, 27
  %s55 = sld [smem:[%s54]]
  %s56 = scalar_lea.smem %s0, 28
  %s57 = sld [smem:[%s56]]
  %s58 = scalar_lea.smem %s0, 29
  %s59 = sld [smem:[%s58]]
  %s60 = scalar_lea.smem %s0, 30
  %s61 = sld [smem:[%s60]]
  %s62 = scalar_lea.smem %s0, 31
  %s63 = sld [smem:[%s62]]
  %64 = xla_tuple %s57, %s59, %s61, %s63
  %s65 = sld [smem:[#allocation0]]
  $region146: #{unit_cnn_encoder.1} parent=0
    _
  %s67 = ssub.s32 1, %s65
  %s68 = scalar_select 0, %s67, %s65
  $region1: #{unit_cnn_encoder.1} parent=0
    #allocation2 [shape = 'u8[1024]{0}', space=vmem, size = 0x400, scoped, tag = 'output window, operand 3, single buffered']
    #allocation3 [shape = 's32[1]{0}', space=sflag, size = 0x4, scoped, tag = 'scoped memory for unit_cnn_encoder.1']
    %69 = vsyncpa [#allocation3], 0
    // Predicated region
    $region2: #{unit_cnn_encoder.1} parent=1 // pred_check
      _
    $region3: #{unit_cnn_encoder.1} parent=1 // pred_check_branch
      %71 = sbr.rel (0) target = $region5
    $region4: #{unit_cnn_encoder.1} parent=1 // pred_region
      _
    $region5: #{unit_cnn_encoder.1} parent=1 // pred_fallthru
      _
    // Predicated region
    $region6: #{unit_cnn_encoder.1} parent=1 // pred_check
      _
    $region7: #{unit_cnn_encoder.1} parent=1 // pred_check_branch
      %73 = sbr.rel (0) target = $region9
    $region8: #{unit_cnn_encoder.1} parent=1 // pred_region
      _
    $region9: #{unit_cnn_encoder.1} parent=1 // pred_fallthru
      _
    // Predicated region
    $region10: #{unit_cnn_encoder.1} parent=1 // pred_check
      _
    $region11: #{unit_cnn_encoder.1} parent=1 // pred_check_branch
      %75 = sbr.rel (0) target = $region13
    $region12: #{unit_cnn_encoder.1} parent=1 // pred_region
      _
    $region13: #{unit_cnn_encoder.1} parent=1 // pred_fallthru
      _
    // Predicated region
    $region14: #{unit_cnn_encoder.1} parent=1 // pred_check
      _
    $region15: #{unit_cnn_encoder.1} parent=1 // pred_check_branch
      %77 = sbr.rel (0) target = $region17
    $region16: #{unit_cnn_encoder.1} parent=1 // pred_region
      _
    $region17: #{unit_cnn_encoder.1} parent=1 // pred_fallthru
      _
    // Predicated region
    $region18: #{unit_cnn_encoder.1} parent=1 // pred_check
      _
    $region19: #{unit_cnn_encoder.1} parent=1 // pred_check_branch
      %79 = sbr.rel (0) target = $region21
    $region20: #{unit_cnn_encoder.1} parent=1 // pred_region
      _
    $region21: #{unit_cnn_encoder.1} parent=1 // pred_fallthru
      _
    // Predicated region
    $region22: #{unit_cnn_encoder.1} parent=1 // pred_check
      _
    $region23: #{unit_cnn_encoder.1} parent=1 // pred_check_branch
      %81 = sbr.rel (0) target = $region25
    $region24: #{unit_cnn_encoder.1} parent=1 // pred_region
      _
    $region25: #{unit_cnn_encoder.1} parent=1 // pred_fallthru
      _
    // Predicated region
    $region26: #{unit_cnn_encoder.1} parent=1 // pred_check
      _
    $region27: #{unit_cnn_encoder.1} parent=1 // pred_check_branch
      %83 = sbr.rel (0) target = $region29
    $region28: #{unit_cnn_encoder.1} parent=1 // pred_region
      _
    $region29: #{unit_cnn_encoder.1} parent=1 // pred_fallthru
      _
    // Predicated region
    $region30: #{unit_cnn_encoder.1} parent=1 // pred_check
      _
    $region31: #{unit_cnn_encoder.1} parent=1 // pred_check_branch
      %85 = sbr.rel (0) target = $region33
    $region32: #{unit_cnn_encoder.1} parent=1 // pred_region
      _
    $region33: #{unit_cnn_encoder.1} parent=1 // pred_fallthru
      _
    // Predicated region
    $region34: #{unit_cnn_encoder.1} parent=1 // pred_check
      _
    $region35: #{unit_cnn_encoder.1} parent=1 // pred_check_branch
      %87 = sbr.rel (0) target = $region37
    $region36: #{unit_cnn_encoder.1} parent=1 // pred_region
      _
    $region37: #{unit_cnn_encoder.1} parent=1 // pred_fallthru
      _
    // Predicated region
    $region38: #{unit_cnn_encoder.1} parent=1 // pred_check
      _
    $region39: #{unit_cnn_encoder.1} parent=1 // pred_check_branch
      %89 = sbr.rel (0) target = $region41
    $region40: #{unit_cnn_encoder.1} parent=1 // pred_region
      _
    $region41: #{unit_cnn_encoder.1} parent=1 // pred_fallthru
      _
    // Predicated region
    $region42: #{unit_cnn_encoder.1} parent=1 // pred_check
      _
    $region43: #{unit_cnn_encoder.1} parent=1 // pred_check_branch
      %91 = sbr.rel (0) target = $region45
    $region44: #{unit_cnn_encoder.1} parent=1 // pred_region
      _
    $region45: #{unit_cnn_encoder.1} parent=1 // pred_fallthru
      _
    // Predicated region
    $region46: #{unit_cnn_encoder.1} parent=1 // pred_check
      _
    $region47: #{unit_cnn_encoder.1} parent=1 // pred_check_branch
      %93 = sbr.rel (0) target = $region49
    $region48: #{unit_cnn_encoder.1} parent=1 // pred_region
      _
    $region49: #{unit_cnn_encoder.1} parent=1 // pred_fallthru
      _
    // Predicated region
    $region50: #{unit_cnn_encoder.1} parent=1 // pred_check
      _
    $region51: #{unit_cnn_encoder.1} parent=1 // pred_check_branch
      %95 = sbr.rel (0) target = $region53
    $region52: #{unit_cnn_encoder.1} parent=1 // pred_region
      _
    $region53: #{unit_cnn_encoder.1} parent=1 // pred_fallthru
      _
    // Predicated region
    $region54: #{unit_cnn_encoder.1} parent=1 // pred_check
      _
    $region55: #{unit_cnn_encoder.1} parent=1 // pred_check_branch
      %97 = sbr.rel (0) target = $region57
    $region56: #{unit_cnn_encoder.1} parent=1 // pred_region
      _
    $region57: #{unit_cnn_encoder.1} parent=1 // pred_fallthru
      _
    // Predicated region
    $region58: #{unit_cnn_encoder.1} parent=1 // pred_check
      _
    $region59: #{unit_cnn_encoder.1} parent=1 // pred_check_branch
      %99 = sbr.rel (0) target = $region61
    $region60: #{unit_cnn_encoder.1} parent=1 // pred_region
      _
    $region61: #{unit_cnn_encoder.1} parent=1 // pred_fallthru
      _
    // Predicated region
    $region62: #{unit_cnn_encoder.1} parent=1 // pred_check
      _
    $region63: #{unit_cnn_encoder.1} parent=1 // pred_check_branch
      %101 = sbr.rel (0) target = $region65
    $region64: #{unit_cnn_encoder.1} parent=1 // pred_region
      _
    $region65: #{unit_cnn_encoder.1} parent=1 // pred_fallthru
      _
    // Predicated region
    $region66: #{unit_cnn_encoder.1} parent=1 // pred_check
      _
    $region67: #{unit_cnn_encoder.1} parent=1 // pred_check_branch
      %103 = sbr.rel (0) target = $region69
    $region68: #{unit_cnn_encoder.1} parent=1 // pred_region
      _
    $region69: #{unit_cnn_encoder.1} parent=1 // pred_fallthru
      _
    // Predicated region
    $region70: #{unit_cnn_encoder.1} parent=1 // pred_check
      _
    $region71: #{unit_cnn_encoder.1} parent=1 // pred_check_branch
      %105 = sbr.rel (0) target = $region73
    $region72: #{unit_cnn_encoder.1} parent=1 // pred_region
      _
    $region73: #{unit_cnn_encoder.1} parent=1 // pred_fallthru
      _
    // Predicated region
    $region74: #{unit_cnn_encoder.1} parent=1 // pred_check
      _
    $region75: #{unit_cnn_encoder.1} parent=1 // pred_check_branch
      %107 = sbr.rel (0) target = $region77
    $region76: #{unit_cnn_encoder.1} parent=1 // pred_region
      _
    $region77: #{unit_cnn_encoder.1} parent=1 // pred_fallthru
      _
    // Predicated region
    $region78: #{unit_cnn_encoder.1} parent=1 // pred_check
      _
    $region79: #{unit_cnn_encoder.1} parent=1 // pred_check_branch
      %109 = sbr.rel (0) target = $region81
    $region80: #{unit_cnn_encoder.1} parent=1 // pred_region
      _
    $region81: #{unit_cnn_encoder.1} parent=1 // pred_fallthru
      _
    // Predicated region
    $region82: #{unit_cnn_encoder.1} parent=1 // pred_check
      _
    $region83: #{unit_cnn_encoder.1} parent=1 // pred_check_branch
      %111 = sbr.rel (0) target = $region85
    $region84: #{unit_cnn_encoder.1} parent=1 // pred_region
      _
    $region85: #{unit_cnn_encoder.1} parent=1 // pred_fallthru
      _
    // Predicated region
    $region86: #{unit_cnn_encoder.1} parent=1 // pred_check
      _
    $region87: #{unit_cnn_encoder.1} parent=1 // pred_check_branch
      %113 = sbr.rel (0) target = $region89
    $region88: #{unit_cnn_encoder.1} parent=1 // pred_region
      _
    $region89: #{unit_cnn_encoder.1} parent=1 // pred_fallthru
      _
    // Predicated region
    $region90: #{unit_cnn_encoder.1} parent=1 // pred_check
      _
    $region91: #{unit_cnn_encoder.1} parent=1 // pred_check_branch
      %115 = sbr.rel (0) target = $region93
    $region92: #{unit_cnn_encoder.1} parent=1 // pred_region
      _
    $region93: #{unit_cnn_encoder.1} parent=1 // pred_fallthru
      _
    // Predicated region
    $region94: #{unit_cnn_encoder.1} parent=1 // pred_check
      _
    $region95: #{unit_cnn_encoder.1} parent=1 // pred_check_branch
      %117 = sbr.rel (0) target = $region97
    $region96: #{unit_cnn_encoder.1} parent=1 // pred_region
      _
    $region97: #{unit_cnn_encoder.1} parent=1 // pred_fallthru
      _
    // Predicated region
    $region98: #{unit_cnn_encoder.1} parent=1 // pred_check
      _
    $region99: #{unit_cnn_encoder.1} parent=1 // pred_check_branch
      %119 = sbr.rel (0) target = $region101
    $region100: #{unit_cnn_encoder.1} parent=1 // pred_region
      _
    $region101: #{unit_cnn_encoder.1} parent=1 // pred_fallthru
      _
    // Predicated region
    $region102: #{unit_cnn_encoder.1} parent=1 // pred_check
      _
    $region103: #{unit_cnn_encoder.1} parent=1 // pred_check_branch
      %121 = sbr.rel (0) target = $region105
    $region104: #{unit_cnn_encoder.1} parent=1 // pred_region
      _
    $region105: #{unit_cnn_encoder.1} parent=1 // pred_fallthru
      _
    // Predicated region
    $region106: #{unit_cnn_encoder.1} parent=1 // pred_check
      _
    $region107: #{unit_cnn_encoder.1} parent=1 // pred_check_branch
      %123 = sbr.rel (0) target = $region109
    $region108: #{unit_cnn_encoder.1} parent=1 // pred_region
      _
    $region109: #{unit_cnn_encoder.1} parent=1 // pred_fallthru
      _
    // Predicated region
    $region110: #{unit_cnn_encoder.1} parent=1 // pred_check
      _
    $region111: #{unit_cnn_encoder.1} parent=1 // pred_check_branch
      %125 = sbr.rel (0) target = $region113
    $region112: #{unit_cnn_encoder.1} parent=1 // pred_region
      _
    $region113: #{unit_cnn_encoder.1} parent=1 // pred_fallthru
      _
    %v127 = vld [vmem:[%s1] sm:$0xff]
    %v128 = vld [vmem:[%s1 + $0x8] sm:$0xff]
    %v129 = vld [vmem:[%s1 + $0x10] sm:$0xff]
    %v130 = vld [vmem:[%s1 + $0x18] sm:$0xff]
    %v131 = vld [vmem:[%s3] sm:$0x1]
    %v132 = vld [vmem:[%s5] sm:$0x1]
    %v133 = vld [vmem:[%s7] sm:$0xff]
    %v134 = vld [vmem:[%s7 + $0x8] sm:$0xff]
    %v135 = vld [vmem:[%s7 + $0x10] sm:$0xff]
    %v136 = vld [vmem:[%s7 + $0x18] sm:$0xff]
    %v137 = vld [vmem:[%s7 + $0x20] sm:$0xff]
    %v138 = vld [vmem:[%s7 + $0x28] sm:$0xff]
    %v139 = vld [vmem:[%s7 + $0x30] sm:$0xff]
    %v140 = vld [vmem:[%s7 + $0x38] sm:$0xff]
    %v141 = vld [vmem:[%s7 + $0x40] sm:$0xff]
    %v142 = vld [vmem:[%s7 + $0x48] sm:$0xff]
    %v143 = vld [vmem:[%s7 + $0x50] sm:$0xff]
    %v144 = vld [vmem:[%s7 + $0x58] sm:$0xff]
    %v145 = vld [vmem:[%s7 + $0x60] sm:$0xff]
    %v146 = vld [vmem:[%s7 + $0x68] sm:$0xff]
    %v147 = vld [vmem:[%s7 + $0x70] sm:$0xff]
    %v148 = vld [vmem:[%s7 + $0x78] sm:$0xff]
    %v149 = vld [vmem:[%s9] sm:$0xff]
    %v150 = vld [vmem:[%s9 + $0x8] sm:$0xff]
    %v151 = vld [vmem:[%s9 + $0x10] sm:$0xff]
    %v152 = vld [vmem:[%s9 + $0x18] sm:$0xff]
    %v153 = vld [vmem:[%s11] sm:$0xff]
    %v154 = vld [vmem:[%s11 + $0x8] sm:$0xff]
    %v155 = vld [vmem:[%s11 + $0x10] sm:$0xff]
    %v156 = vld [vmem:[%s11 + $0x18] sm:$0xff]
    %v157 = vld [vmem:[%s15] sm:$0x1]
    %v158 = vld [vmem:[%s17] sm:$0xff]
    %v159 = vld [vmem:[%s17 + $0x8] sm:$0xff]
    %v160 = vadd.f32 %v127, %v128
    %v161 = vadd.f32 %v160, %v129
    %v162 = vadd.f32 %v161, %v130
    %v163 = vrot.slane %v162, 4
    %v164 = vadd.f32 %v162, %v163
    %v165 = vrot.slane %v164, 2
    %v166 = vadd.f32 %v164, %v165
    %v167 = vrot.slane %v166, 1
    %v168 = vadd.f32 %v166, %v167
    %169 = vmatprep.subr.mxu0 0.0
    %170 = vmatpush1.msra.mxu0 %v133
    %171 = vmatprep.subr.mxu0 0.0
    %172 = vmatpush1.msra.mxu0 %v134
    %173 = vmatprep.subr.mxu0 0.0
    %174 = vmatpush1.msra.mxu0 %v135
    %175 = vmatprep.subr.mxu0 0.0
    %176 = vmatpush1.msra.mxu0 %v136
    %177 = vmatprep.subr.mxu0 0.0
    %178 = vmatpush1.msra.mxu0 %v137
    %179 = vmatprep.subr.mxu0 0.0
    %180 = vmatpush1.msra.mxu0 %v138
    %181 = vmatprep.subr.mxu0 0.0
    %182 = vmatpush1.msra.mxu0 %v139
    %183 = vmatprep.subr.mxu0 0.0
    %184 = vmatpush1.msra.mxu0 %v140
    %185 = vmatprep.subr.mxu0 0.0
    %186 = vmatpush1.msra.mxu0 %v141
    %187 = vmatprep.subr.mxu0 0.0
    %188 = vmatpush1.msra.mxu0 %v142
    %189 = vmatprep.subr.mxu0 0.0
    %190 = vmatpush1.msra.mxu0 %v143
    %191 = vmatprep.subr.mxu0 0.0
    %192 = vmatpush1.msra.mxu0 %v144
    %193 = vmatprep.subr.mxu0 0.0
    %194 = vmatpush1.msra.mxu0 %v145
    %195 = vmatprep.subr.mxu0 0.0
    %196 = vmatpush1.msra.mxu0 %v146
    %197 = vmatprep.subr.mxu0 0.0
    %198 = vmatpush1.msra.mxu0 %v147
    %199 = vmatprep.subr.mxu0 0.0
    %200 = vmatpush1.msra.mxu0 %v148
    %201 = vmatprep.subr.mxu0 0.0
    %202 = vmatpush1.msra.mxu0 0.0
    %203 = vmatprep.subr.mxu0 0.0
    %204 = vmatpush1.msra.mxu0 0.0
    %205 = vmatprep.subr.mxu0 0.0
    %206 = vmatpush1.msra.mxu0 0.0
    %207 = vmatprep.subr.mxu0 0.0
    %208 = vmatpush1.msra.mxu0 0.0
    %209 = vmatprep.subr.mxu0 0.0
    %210 = vmatpush1.msra.mxu0 0.0
    %211 = vmatprep.subr.mxu0 0.0
    %212 = vmatpush1.msra.mxu0 0.0
    %213 = vmatprep.subr.mxu0 0.0
    %214 = vmatpush1.msra.mxu0 0.0
    %215 = vmatprep.subr.mxu0 0.0
    %216 = vmatpush1.msra.mxu0 0.0
    %217 = vmatprep.subr.mxu0 0.0
    %218 = vmatpush1.msra.mxu0 0.0
    %219 = vmatprep.subr.mxu0 0.0
    %220 = vmatpush1.msra.mxu0 0.0
    %221 = vmatprep.subr.mxu0 0.0
    %222 = vmatpush1.msra.mxu0 0.0
    %223 = vmatprep.subr.mxu0 0.0
    %224 = vmatpush1.msra.mxu0 0.0
    %225 = vmatprep.subr.mxu0 0.0
    %226 = vmatpush1.msra.mxu0 0.0
    %227 = vmatprep.subr.mxu0 0.0
    %228 = vmatpush1.msra.mxu0 0.0
    %229 = vmatprep.subr.mxu0 0.0
    %230 = vmatpush1.msra.mxu0 0.0
    %231 = vmatprep.subr.mxu0 0.0
    %232 = vmatpush1.msra.mxu0 0.0
    %233 = vmatprep.mubr.f32.mxu0 0.0
    %234 = vmatmul.mubr.f32.gmra.mrb[0].mxu0 %v168
    %v235 = vpop.f32.mrb[0].mxu0
    %v236 = vadd.f32 0.0, %v235
    %v237 = vpop.f32.mrb[0].mxu0
    %238 = vdwg.mxu0
    %v239 = vmul.f32 %v236, 0.001953125
    %v240 = vlaneseq
    %v241 = vshrl.u32 %v240, 7
    %v242 = vsub.s32 0, %v241
    %v243 = vrot.slane %v239, %v242
    %v244 = vsub.f32 %v127, %v243
    %v245 = vsub.f32 %v128, %v243
    %v246 = vsub.f32 %v129, %v243
    %v247 = vsub.f32 %v130, %v243
    %v248 = vmul.f32 %v244, %v244
    %v249 = vmul.f32 %v245, %v245
    %v250 = vmul.f32 %v246, %v246
    %v251 = vmul.f32 %v247, %v247
    %v252 = vadd.f32 %v248, %v249
    %v253 = vadd.f32 %v252, %v250
    %v254 = vadd.f32 %v253, %v251
    %v255 = vrot.slane %v254, 4
    %v256 = vadd.f32 %v254, %v255
    %v257 = vrot.slane %v256, 2
    %v258 = vadd.f32 %v256, %v257
    %v259 = vrot.slane %v258, 1
    %v260 = vadd.f32 %v258, %v259
    %261 = vmatprep.subr.mxu0 0.0
    %262 = vmatpush1.msra.mxu0 %v133
    %263 = vmatprep.subr.mxu0 0.0
    %264 = vmatpush1.msra.mxu0 %v134
    %265 = vmatprep.subr.mxu0 0.0
    %266 = vmatpush1.msra.mxu0 %v135
    %267 = vmatprep.subr.mxu0 0.0
    %268 = vmatpush1.msra.mxu0 %v136
    %269 = vmatprep.subr.mxu0 0.0
    %270 = vmatpush1.msra.mxu0 %v137
    %271 = vmatprep.subr.mxu0 0.0
    %272 = vmatpush1.msra.mxu0 %v138
    %273 = vmatprep.subr.mxu0 0.0
    %274 = vmatpush1.msra.mxu0 %v139
    %275 = vmatprep.subr.mxu0 0.0
    %276 = vmatpush1.msra.mxu0 %v140
    %277 = vmatprep.subr.mxu0 0.0
    %278 = vmatpush1.msra.mxu0 %v141
    %279 = vmatprep.subr.mxu0 0.0
    %280 = vmatpush1.msra.mxu0 %v142
    %281 = vmatprep.subr.mxu0 0.0
    %282 = vmatpush1.msra.mxu0 %v143
    %283 = vmatprep.subr.mxu0 0.0
    %284 = vmatpush1.msra.mxu0 %v144
    %285 = vmatprep.subr.mxu0 0.0
    %286 = vmatpush1.msra.mxu0 %v145
    %287 = vmatprep.subr.mxu0 0.0
    %288 = vmatpush1.msra.mxu0 %v146
    %289 = vmatprep.subr.mxu0 0.0
    %290 = vmatpush1.msra.mxu0 %v147
    %291 = vmatprep.subr.mxu0 0.0
    %292 = vmatpush1.msra.mxu0 %v148
    %293 = vmatprep.subr.mxu0 0.0
    %294 = vmatpush1.msra.mxu0 0.0
    %295 = vmatprep.subr.mxu0 0.0
    %296 = vmatpush1.msra.mxu0 0.0
    %297 = vmatprep.subr.mxu0 0.0
    %298 = vmatpush1.msra.mxu0 0.0
    %299 = vmatprep.subr.mxu0 0.0
    %300 = vmatpush1.msra.mxu0 0.0
    %301 = vmatprep.subr.mxu0 0.0
    %302 = vmatpush1.msra.mxu0 0.0
    %303 = vmatprep.subr.mxu0 0.0
    %304 = vmatpush1.msra.mxu0 0.0
    %305 = vmatprep.subr.mxu0 0.0
    %306 = vmatpush1.msra.mxu0 0.0
    %307 = vmatprep.subr.mxu0 0.0
    %308 = vmatpush1.msra.mxu0 0.0
    %309 = vmatprep.subr.mxu0 0.0
    %310 = vmatpush1.msra.mxu0 0.0
    %311 = vmatprep.subr.mxu0 0.0
    %312 = vmatpush1.msra.mxu0 0.0
    %313 = vmatprep.subr.mxu0 0.0
    %314 = vmatpush1.msra.mxu0 0.0
    %315 = vmatprep.subr.mxu0 0.0
    %316 = vmatpush1.msra.mxu0 0.0
    %317 = vmatprep.subr.mxu0 0.0
    %318 = vmatpush1.msra.mxu0 0.0
    %319 = vmatprep.subr.mxu0 0.0
    %320 = vmatpush1.msra.mxu0 0.0
    %321 = vmatprep.subr.mxu0 0.0
    %322 = vmatpush1.msra.mxu0 0.0
    %323 = vmatprep.subr.mxu0 0.0
    %324 = vmatpush1.msra.mxu0 0.0
    %325 = vmatprep.mubr.f32.mxu0 0.0
    %326 = vmatmul.mubr.f32.gmra.mrb[0].mxu0 %v260
    %v327 = vpop.f32.mrb[0].mxu0
    %v328 = vadd.f32 0.0, %v327
    %v329 = vpop.f32.mrb[0].mxu0
    %330 = vdwg.mxu0
    %v331 = vmul.f32 %v328, 0.001953125
    %v332 = vadd.f32 %v331, 1e-05
    %v333 = vrsqrt.pop %v332
    %v334 = vmul.f32 %v131, %v333
    %v336 = vlaneseq
    %v337 = vshrl.u32 %v336, 7
    %v338 = vsub.s32 0, %v337
    %v339 = vrot.slane %v334, %v338
    %v341 = vmul.f32 %v244, %v339
    %v342 = vmul.f32 %v245, %v339
    %v343 = vmul.f32 %v246, %v339
    %v344 = vmul.f32 %v247, %v339
    %v346 = vlaneseq
    %v347 = vshrl.u32 %v346, 7
    %v348 = vsub.s32 0, %v347
    %v349 = vrot.slane %v132, %v348
    %v351 = vadd.f32 %v341, %v349
    %v352 = vadd.f32 %v342, %v349
    %v353 = vadd.f32 %v343, %v349
    %v354 = vadd.f32 %v344, %v349
    %vm359 = vcmask 1040384
    %v360 = vrot.slane %v351, 7
    %v361 = vrot.slane %v352, 7
    %v362 = vsel %vm359, %v360, %v361
    %v363 = vrot.slane %v353, 7
    %v364 = vsel %vm359, %v361, %v363
    %v365 = vrot.slane %v354, 7
    %v366 = vsel %vm359, %v363, %v365
    %v371 = vsel %vm359, 0.0, %v360
    %373 = vset.pattern.permute.xlu0 0
    %374 = vperm.xlu0 %373, %v149
    %v375 = vpop.permute.xlu0 %374
    %378 = vset.pattern.permute.xlu0 0
    %379 = vperm.xlu0 %378, %v150
    %v380 = vpop.permute.xlu0 %379
    %383 = vset.pattern.permute.xlu0 0
    %384 = vperm.xlu0 %383, %v151
    %v385 = vpop.permute.xlu0 %384
    %388 = vset.pattern.permute.xlu0 0
    %389 = vperm.xlu0 %388, %v152
    %v390 = vpop.permute.xlu0 %389
    %v392 = vmul.f32 %v371, %v375
    %v393 = vmul.f32 %v362, %v380
    %v394 = vmul.f32 %v364, %v385
    %v395 = vmul.f32 %v366, %v390
    %v396 = vpack.c.bf16 %v393, %v392
    %v397 = vpack.c.bf16 %v395, %v394
    %v398 = vpack.c.bf16 %v352, %v351
    %v399 = vpack.c.bf16 %v354, %v353
    %vm400 = vcmask 1046528
    %v401 = vrot.slane %v351, 1
    %v402 = vrot.slane %v352, 1
    %v403 = vsel %vm400, %v401, %v402
    %v404 = vrot.slane %v353, 1
    %v405 = vsel %vm400, %v402, %v404
    %v406 = vrot.slane %v354, 1
    %v407 = vsel %vm400, %v404, %v406
    %v412 = vsel %vm400, %v406, 0.0
    %414 = vset.pattern.permute.xlu0 0
    %415 = vperm.xlu0 %414, %v153
    %v416 = vpop.permute.xlu0 %415
    %419 = vset.pattern.permute.xlu0 0
    %420 = vperm.xlu0 %419, %v154
    %v421 = vpop.permute.xlu0 %420
    %424 = vset.pattern.permute.xlu0 0
    %425 = vperm.xlu0 %424, %v155
    %v426 = vpop.permute.xlu0 %425
    %429 = vset.pattern.permute.xlu0 0
    %430 = vperm.xlu0 %429, %v156
    %v431 = vpop.permute.xlu0 %430
    %v433 = vmul.f32 %v403, %v416
    %v434 = vmul.f32 %v405, %v421
    %v435 = vmul.f32 %v407, %v426
    %v436 = vmul.f32 %v412, %v431
    %v437 = vpack.c.bf16 %v434, %v433
    %v438 = vpack.c.bf16 %v436, %v435
    %v439 = vld [vmem:[%s13] sm:$0xf]
    %v440 = vld [vmem:[%s13 + $0x4] sm:$0xf]
    %v441 = vld [vmem:[%s13 + $0x8] sm:$0xf]
    %v442 = vld [vmem:[%s13 + $0xc] sm:$0xf]
    %v443 = vld [vmem:[%s13 + $0x10] sm:$0xf]
    %v444 = vld [vmem:[%s13 + $0x14] sm:$0xf]
    %v445 = vld [vmem:[%s13 + $0x18] sm:$0xf]
    %v446 = vld [vmem:[%s13 + $0x1c] sm:$0xf]
    %v447 = vld [vmem:[%s13 + $0x20] sm:$0xf]
    %v448 = vld [vmem:[%s13 + $0x24] sm:$0xf]
    %v449 = vld [vmem:[%s13 + $0x28] sm:$0xf]
    %v450 = vld [vmem:[%s13 + $0x2c] sm:$0xf]
    %v451 = vld [vmem:[%s13 + $0x30] sm:$0xf]
    %v452 = vld [vmem:[%s13 + $0x34] sm:$0xf]
    %v453 = vld [vmem:[%s13 + $0x38] sm:$0xf]
    %v454 = vld [vmem:[%s13 + $0x3c] sm:$0xf]
    %s455 = scalar_lea.vmem %s13, 128
    %v456 = vld [vmem:[%s455] sm:$0xf]
    %v457 = vld [vmem:[%s455 + $0x4] sm:$0xf]
    %v458 = vld [vmem:[%s455 + $0x8] sm:$0xf]
    %v459 = vld [vmem:[%s455 + $0xc] sm:$0xf]
    %v460 = vld [vmem:[%s455 + $0x10] sm:$0xf]
    %v461 = vld [vmem:[%s455 + $0x14] sm:$0xf]
    %v462 = vld [vmem:[%s455 + $0x18] sm:$0xf]
    %v463 = vld [vmem:[%s455 + $0x1c] sm:$0xf]
    %v464 = vld [vmem:[%s455 + $0x20] sm:$0xf]
    %v465 = vld [vmem:[%s455 + $0x24] sm:$0xf]
    %v466 = vld [vmem:[%s455 + $0x28] sm:$0xf]
    %v467 = vld [vmem:[%s455 + $0x2c] sm:$0xf]
    %v468 = vld [vmem:[%s455 + $0x30] sm:$0xf]
    %v469 = vld [vmem:[%s455 + $0x34] sm:$0xf]
    %v470 = vld [vmem:[%s455 + $0x38] sm:$0xf]
    %v471 = vld [vmem:[%s455 + $0x3c] sm:$0xf]
    %v488 = vunpack.c.l.b16 %v456
    %v489 = vunpack.c.l.b16 %v457
    %v490 = vunpack.c.l.b16 %v458
    %v491 = vunpack.c.l.b16 %v459
    %v492 = vunpack.c.l.b16 %v460
    %v493 = vunpack.c.l.b16 %v461
    %v494 = vunpack.c.l.b16 %v462
    %v495 = vunpack.c.l.b16 %v463
    %v496 = vunpack.c.l.b16 %v464
    %v497 = vunpack.c.l.b16 %v465
    %v498 = vunpack.c.l.b16 %v466
    %v499 = vunpack.c.l.b16 %v467
    %v500 = vunpack.c.l.b16 %v468
    %v501 = vunpack.c.l.b16 %v469
    %v502 = vunpack.c.l.b16 %v470
    %v503 = vunpack.c.l.b16 %v471
    %v504 = vpack.c.b16 %v489, %v488
    %v505 = vpack.c.b16 %v491, %v490
    %v506 = vpack.c.b16 %v493, %v492
    %v507 = vpack.c.b16 %v495, %v494
    %v508 = vpack.c.b16 %v497, %v496
    %v509 = vpack.c.b16 %v499, %v498
    %v510 = vpack.c.b16 %v501, %v500
    %v511 = vpack.c.b16 %v503, %v502
    %520 = vmatprep.subr.bf16.mxu0 0
    %521 = vmatpush1.bf16.msra.mxu0 %v504
    %522 = vmatprep.subr.bf16.mxu0 0
    %523 = vmatpush1.bf16.msra.mxu0 %v505
    %524 = vmatprep.subr.bf16.mxu0 0
    %525 = vmatpush1.bf16.msra.mxu0 %v506
    %526 = vmatprep.subr.bf16.mxu0 0
    %527 = vmatpush1.bf16.msra.mxu0 %v507
    %528 = vmatprep.subr.bf16.mxu0 0
    %529 = vmatpush1.bf16.msra.mxu0 %v508
    %530 = vmatprep.subr.bf16.mxu0 0
    %531 = vmatpush1.bf16.msra.mxu0 %v509
    %532 = vmatprep.subr.bf16.mxu0 0
    %533 = vmatpush1.bf16.msra.mxu0 %v510
    %534 = vmatprep.subr.bf16.mxu0 0
    %535 = vmatpush1.bf16.msra.mxu0 %v511
    %536 = vmatprep.subr.bf16.mxu0 0
    %537 = vmatpush1.bf16.msra.mxu0 0
    %538 = vmatprep.subr.bf16.mxu0 0
    %539 = vmatpush1.bf16.msra.mxu0 0
    %540 = vmatprep.subr.bf16.mxu0 0
    %541 = vmatpush1.bf16.msra.mxu0 0
    %542 = vmatprep.subr.bf16.mxu0 0
    %543 = vmatpush1.bf16.msra.mxu0 0
    %544 = vmatprep.subr.bf16.mxu0 0
    %545 = vmatpush1.bf16.msra.mxu0 0
    %546 = vmatprep.subr.bf16.mxu0 0
    %547 = vmatpush1.bf16.msra.mxu0 0
    %548 = vmatprep.subr.bf16.mxu0 0
    %549 = vmatpush1.bf16.msra.mxu0 0
    %550 = vmatprep.subr.bf16.mxu0 0
    %551 = vmatpush1.bf16.msra.mxu0 0
    %552 = vmatprep.mubr.bf16.mxu0 0
    %553 = vmatmul.mubr.bf16.gmra.mrb[0].mxu0 %v398
    %v554 = vpop.f32.mrb[0].mxu0
    %v555 = vadd.f32 0.0, %v554
    %v556 = vpop.f32.mrb[0].mxu0
    %v557 = vpop.f32.mrb[0].mxu0
    %v558 = vadd.f32 0.0, %v557
    %v559 = vpop.f32.mrb[0].mxu0
    %560 = vmatprep.mubr.bf16.mxu0 0
    %561 = vmatmul.mubr.bf16.gmra.mrb[0].mxu0 %v399
    %v562 = vpop.f32.mrb[0].mxu0
    %v563 = vadd.f32 0.0, %v562
    %v564 = vpop.f32.mrb[0].mxu0
    %v565 = vpop.f32.mrb[0].mxu0
    %v566 = vadd.f32 0.0, %v565
    %v567 = vpop.f32.mrb[0].mxu0
    %568 = vdwg.mxu0
    %v585 = vunpack.c.l.b16 %v439
    %v586 = vunpack.c.l.b16 %v440
    %v587 = vunpack.c.l.b16 %v441
    %v588 = vunpack.c.l.b16 %v442
    %v589 = vunpack.c.l.b16 %v443
    %v590 = vunpack.c.l.b16 %v444
    %v591 = vunpack.c.l.b16 %v445
    %v592 = vunpack.c.l.b16 %v446
    %v593 = vunpack.c.l.b16 %v447
    %v594 = vunpack.c.l.b16 %v448
    %v595 = vunpack.c.l.b16 %v449
    %v596 = vunpack.c.l.b16 %v450
    %v597 = vunpack.c.l.b16 %v451
    %v598 = vunpack.c.l.b16 %v452
    %v599 = vunpack.c.l.b16 %v453
    %v600 = vunpack.c.l.b16 %v454
    %v601 = vpack.c.b16 %v586, %v585
    %v602 = vpack.c.b16 %v588, %v587
    %v603 = vpack.c.b16 %v590, %v589
    %v604 = vpack.c.b16 %v592, %v591
    %v605 = vpack.c.b16 %v594, %v593
    %v606 = vpack.c.b16 %v596, %v595
    %v607 = vpack.c.b16 %v598, %v597
    %v608 = vpack.c.b16 %v600, %v599
    %617 = vmatprep.subr.bf16.mxu0 0
    %618 = vmatpush1.bf16.msra.mxu0 %v601
    %619 = vmatprep.subr.bf16.mxu0 0
    %620 = vmatpush1.bf16.msra.mxu0 %v602
    %621 = vmatprep.subr.bf16.mxu0 0
    %622 = vmatpush1.bf16.msra.mxu0 %v603
    %623 = vmatprep.subr.bf16.mxu0 0
    %624 = vmatpush1.bf16.msra.mxu0 %v604
    %625 = vmatprep.subr.bf16.mxu0 0
    %626 = vmatpush1.bf16.msra.mxu0 %v605
    %627 = vmatprep.subr.bf16.mxu0 0
    %628 = vmatpush1.bf16.msra.mxu0 %v606
    %629 = vmatprep.subr.bf16.mxu0 0
    %630 = vmatpush1.bf16.msra.mxu0 %v607
    %631 = vmatprep.subr.bf16.mxu0 0
    %632 = vmatpush1.bf16.msra.mxu0 %v608
    %633 = vmatprep.subr.bf16.mxu0 0
    %634 = vmatpush1.bf16.msra.mxu0 0
    %635 = vmatprep.subr.bf16.mxu0 0
    %636 = vmatpush1.bf16.msra.mxu0 0
    %637 = vmatprep.subr.bf16.mxu0 0
    %638 = vmatpush1.bf16.msra.mxu0 0
    %639 = vmatprep.subr.bf16.mxu0 0
    %640 = vmatpush1.bf16.msra.mxu0 0
    %641 = vmatprep.subr.bf16.mxu0 0
    %642 = vmatpush1.bf16.msra.mxu0 0
    %643 = vmatprep.subr.bf16.mxu0 0
    %644 = vmatpush1.bf16.msra.mxu0 0
    %645 = vmatprep.subr.bf16.mxu0 0
    %646 = vmatpush1.bf16.msra.mxu0 0
    %647 = vmatprep.subr.bf16.mxu0 0
    %648 = vmatpush1.bf16.msra.mxu0 0
    %649 = vmatprep.mubr.bf16.mxu0 0
    %650 = vmatmul.mubr.bf16.gmra.mrb[0].mxu0 %v396
    %v651 = vpop.f32.mrb[0].mxu0
    %v652 = vadd.f32 %v555, %v651
    %v653 = vpop.f32.mrb[0].mxu0
    %v654 = vpop.f32.mrb[0].mxu0
    %v655 = vadd.f32 %v558, %v654
    %v656 = vpop.f32.mrb[0].mxu0
    %657 = vmatprep.mubr.bf16.mxu0 0
    %658 = vmatmul.mubr.bf16.gmra.mrb[0].mxu0 %v397
    %v659 = vpop.f32.mrb[0].mxu0
    %v660 = vadd.f32 %v563, %v659
    %v661 = vpop.f32.mrb[0].mxu0
    %v662 = vpop.f32.mrb[0].mxu0
    %v663 = vadd.f32 %v566, %v662
    %v664 = vpop.f32.mrb[0].mxu0
    %665 = vdwg.mxu0
    %s666 = scalar_lea.vmem %s13, 256
    %v667 = vld [vmem:[%s666] sm:$0xf]
    %v668 = vld [vmem:[%s666 + $0x4] sm:$0xf]
    %v669 = vld [vmem:[%s666 + $0x8] sm:$0xf]
    %v670 = vld [vmem:[%s666 + $0xc] sm:$0xf]
    %v671 = vld [vmem:[%s666 + $0x10] sm:$0xf]
    %v672 = vld [vmem:[%s666 + $0x14] sm:$0xf]
    %v673 = vld [vmem:[%s666 + $0x18] sm:$0xf]
    %v674 = vld [vmem:[%s666 + $0x1c] sm:$0xf]
    %v675 = vld [vmem:[%s666 + $0x20] sm:$0xf]
    %v676 = vld [vmem:[%s666 + $0x24] sm:$0xf]
    %v677 = vld [vmem:[%s666 + $0x28] sm:$0xf]
    %v678 = vld [vmem:[%s666 + $0x2c] sm:$0xf]
    %v679 = vld [vmem:[%s666 + $0x30] sm:$0xf]
    %v680 = vld [vmem:[%s666 + $0x34] sm:$0xf]
    %v681 = vld [vmem:[%s666 + $0x38] sm:$0xf]
    %v682 = vld [vmem:[%s666 + $0x3c] sm:$0xf]
    %v699 = vunpack.c.l.b16 %v667
    %v700 = vunpack.c.l.b16 %v668
    %v701 = vunpack.c.l.b16 %v669
    %v702 = vunpack.c.l.b16 %v670
    %v703 = vunpack.c.l.b16 %v671
    %v704 = vunpack.c.l.b16 %v672
    %v705 = vunpack.c.l.b16 %v673
    %v706 = vunpack.c.l.b16 %v674
    %v707 = vunpack.c.l.b16 %v675
    %v708 = vunpack.c.l.b16 %v676
    %v709 = vunpack.c.l.b16 %v677
    %v710 = vunpack.c.l.b16 %v678
    %v711 = vunpack.c.l.b16 %v679
    %v712 = vunpack.c.l.b16 %v680
    %v713 = vunpack.c.l.b16 %v681
    %v714 = vunpack.c.l.b16 %v682
    %v715 = vpack.c.b16 %v700, %v699
    %v716 = vpack.c.b16 %v702, %v701
    %v717 = vpack.c.b16 %v704, %v703
    %v718 = vpack.c.b16 %v706, %v705
    %v719 = vpack.c.b16 %v708, %v707
    %v720 = vpack.c.b16 %v710, %v709
    %v721 = vpack.c.b16 %v712, %v711
    %v722 = vpack.c.b16 %v714, %v713
    %731 = vmatprep.subr.bf16.mxu0 0
    %732 = vmatpush1.bf16.msra.mxu0 %v715
    %733 = vmatprep.subr.bf16.mxu0 0
    %734 = vmatpush1.bf16.msra.mxu0 %v716
    %735 = vmatprep.subr.bf16.mxu0 0
    %736 = vmatpush1.bf16.msra.mxu0 %v717
    %737 = vmatprep.subr.bf16.mxu0 0
    %738 = vmatpush1.bf16.msra.mxu0 %v718
    %739 = vmatprep.subr.bf16.mxu0 0
    %740 = vmatpush1.bf16.msra.mxu0 %v719
    %741 = vmatprep.subr.bf16.mxu0 0
    %742 = vmatpush1.bf16.msra.mxu0 %v720
    %743 = vmatprep.subr.bf16.mxu0 0
    %744 = vmatpush1.bf16.msra.mxu0 %v721
    %745 = vmatprep.subr.bf16.mxu0 0
    %746 = vmatpush1.bf16.msra.mxu0 %v722
    %747 = vmatprep.subr.bf16.mxu0 0
    %748 = vmatpush1.bf16.msra.mxu0 0
    %749 = vmatprep.subr.bf16.mxu0 0
    %750 = vmatpush1.bf16.msra.mxu0 0
    %751 = vmatprep.subr.bf16.mxu0 0
    %752 = vmatpush1.bf16.msra.mxu0 0
    %753 = vmatprep.subr.bf16.mxu0 0
    %754 = vmatpush1.bf16.msra.mxu0 0
    %755 = vmatprep.subr.bf16.mxu0 0
    %756 = vmatpush1.bf16.msra.mxu0 0
    %757 = vmatprep.subr.bf16.mxu0 0
    %758 = vmatpush1.bf16.msra.mxu0 0
    %759 = vmatprep.subr.bf16.mxu0 0
    %760 = vmatpush1.bf16.msra.mxu0 0
    %761 = vmatprep.subr.bf16.mxu0 0
    %762 = vmatpush1.bf16.msra.mxu0 0
    %763 = vmatprep.mubr.bf16.mxu0 0
    %764 = vmatmul.mubr.bf16.gmra.mrb[0].mxu0 %v437
    %v765 = vpop.f32.mrb[0].mxu0
    %v766 = vadd.f32 0.0, %v765
    %v767 = vpop.f32.mrb[0].mxu0
    %v768 = vpop.f32.mrb[0].mxu0
    %v769 = vadd.f32 0.0, %v768
    %v770 = vpop.f32.mrb[0].mxu0
    %771 = vmatprep.mubr.bf16.mxu0 0
    %772 = vmatmul.mubr.bf16.gmra.mrb[0].mxu0 %v438
    %v773 = vpop.f32.mrb[0].mxu0
    %v774 = vadd.f32 0.0, %v773
    %v775 = vpop.f32.mrb[0].mxu0
    %v776 = vpop.f32.mrb[0].mxu0
    %v777 = vadd.f32 0.0, %v776
    %v778 = vpop.f32.mrb[0].mxu0
    %779 = vdwg.mxu0
    %v780 = vadd.f32 %v652, %v766
    %v781 = vadd.f32 %v655, %v769
    %v782 = vadd.f32 %v660, %v774
    %v783 = vadd.f32 %v663, %v777
    %s784 = scalar_lea.vmem %s13, 64
    %v785 = vld [vmem:[%s784] sm:$0xf]
    %v786 = vld [vmem:[%s784 + $0x4] sm:$0xf]
    %v787 = vld [vmem:[%s784 + $0x8] sm:$0xf]
    %v788 = vld [vmem:[%s784 + $0xc] sm:$0xf]
    %v789 = vld [vmem:[%s784 + $0x10] sm:$0xf]
    %v790 = vld [vmem:[%s784 + $0x14] sm:$0xf]
    %v791 = vld [vmem:[%s784 + $0x18] sm:$0xf]
    %v792 = vld [vmem:[%s784 + $0x1c] sm:$0xf]
    %v793 = vld [vmem:[%s784 + $0x20] sm:$0xf]
    %v794 = vld [vmem:[%s784 + $0x24] sm:$0xf]
    %v795 = vld [vmem:[%s784 + $0x28] sm:$0xf]
    %v796 = vld [vmem:[%s784 + $0x2c] sm:$0xf]
    %v797 = vld [vmem:[%s784 + $0x30] sm:$0xf]
    %v798 = vld [vmem:[%s784 + $0x34] sm:$0xf]
    %v799 = vld [vmem:[%s784 + $0x38] sm:$0xf]
    %v800 = vld [vmem:[%s784 + $0x3c] sm:$0xf]
    %s801 = scalar_lea.vmem %s13, 192
    %v802 = vld [vmem:[%s801] sm:$0xf]
    %v803 = vld [vmem:[%s801 + $0x4] sm:$0xf]
    %v804 = vld [vmem:[%s801 + $0x8] sm:$0xf]
    %v805 = vld [vmem:[%s801 + $0xc] sm:$0xf]
    %v806 = vld [vmem:[%s801 + $0x10] sm:$0xf]
    %v807 = vld [vmem:[%s801 + $0x14] sm:$0xf]
    %v808 = vld [vmem:[%s801 + $0x18] sm:$0xf]
    %v809 = vld [vmem:[%s801 + $0x1c] sm:$0xf]
    %v810 = vld [vmem:[%s801 + $0x20] sm:$0xf]
    %v811 = vld [vmem:[%s801 + $0x24] sm:$0xf]
    %v812 = vld [vmem:[%s801 + $0x28] sm:$0xf]
    %v813 = vld [vmem:[%s801 + $0x2c] sm:$0xf]
    %v814 = vld [vmem:[%s801 + $0x30] sm:$0xf]
    %v815 = vld [vmem:[%s801 + $0x34] sm:$0xf]
    %v816 = vld [vmem:[%s801 + $0x38] sm:$0xf]
    %v817 = vld [vmem:[%s801 + $0x3c] sm:$0xf]
    %v834 = vunpack.c.l.b16 %v802
    %v835 = vunpack.c.l.b16 %v803
    %v836 = vunpack.c.l.b16 %v804
    %v837 = vunpack.c.l.b16 %v805
    %v838 = vunpack.c.l.b16 %v806
    %v839 = vunpack.c.l.b16 %v807
    %v840 = vunpack.c.l.b16 %v808
    %v841 = vunpack.c.l.b16 %v809
    %v842 = vunpack.c.l.b16 %v810
    %v843 = vunpack.c.l.b16 %v811
    %v844 = vunpack.c.l.b16 %v812
    %v845 = vunpack.c.l.b16 %v813
    %v846 = vunpack.c.l.b16 %v814
    %v847 = vunpack.c.l.b16 %v815
    %v848 = vunpack.c.l.b16 %v816
    %v849 = vunpack.c.l.b16 %v817
    %v850 = vpack.c.b16 %v835, %v834
    %v851 = vpack.c.b16 %v837, %v836
    %v852 = vpack.c.b16 %v839, %v838
    %v853 = vpack.c.b16 %v841, %v840
    %v854 = vpack.c.b16 %v843, %v842
    %v855 = vpack.c.b16 %v845, %v844
    %v856 = vpack.c.b16 %v847, %v846
    %v857 = vpack.c.b16 %v849, %v848
    %866 = vmatprep.subr.bf16.mxu0 0
    %867 = vmatpush1.bf16.msra.mxu0 %v850
    %868 = vmatprep.subr.bf16.mxu0 0
    %869 = vmatpush1.bf16.msra.mxu0 %v851
    %870 = vmatprep.subr.bf16.mxu0 0
    %871 = vmatpush1.bf16.msra.mxu0 %v852
    %872 = vmatprep.subr.bf16.mxu0 0
    %873 = vmatpush1.bf16.msra.mxu0 %v853
    %874 = vmatprep.subr.bf16.mxu0 0
    %875 = vmatpush1.bf16.msra.mxu0 %v854
    %876 = vmatprep.subr.bf16.mxu0 0
    %877 = vmatpush1.bf16.msra.mxu0 %v855
    %878 = vmatprep.subr.bf16.mxu0 0
    %879 = vmatpush1.bf16.msra.mxu0 %v856
    %880 = vmatprep.subr.bf16.mxu0 0
    %881 = vmatpush1.bf16.msra.mxu0 %v857
    %882 = vmatprep.subr.bf16.mxu0 0
    %883 = vmatpush1.bf16.msra.mxu0 0
    %884 = vmatprep.subr.bf16.mxu0 0
    %885 = vmatpush1.bf16.msra.mxu0 0
    %886 = vmatprep.subr.bf16.mxu0 0
    %887 = vmatpush1.bf16.msra.mxu0 0
    %888 = vmatprep.subr.bf16.mxu0 0
    %889 = vmatpush1.bf16.msra.mxu0 0
    %890 = vmatprep.subr.bf16.mxu0 0
    %891 = vmatpush1.bf16.msra.mxu0 0
    %892 = vmatprep.subr.bf16.mxu0 0
    %893 = vmatpush1.bf16.msra.mxu0 0
    %894 = vmatprep.subr.bf16.mxu0 0
    %895 = vmatpush1.bf16.msra.mxu0 0
    %896 = vmatprep.subr.bf16.mxu0 0
    %897 = vmatpush1.bf16.msra.mxu0 0
    %898 = vmatprep.mubr.bf16.mxu0 0
    %899 = vmatmul.mubr.bf16.gmra.mrb[0].mxu0 %v398
    %v900 = vpop.f32.mrb[0].mxu0
    %v901 = vadd.f32 0.0, %v900
    %v902 = vpop.f32.mrb[0].mxu0
    %v903 = vpop.f32.mrb[0].mxu0
    %v904 = vadd.f32 0.0, %v903
    %v905 = vpop.f32.mrb[0].mxu0
    %906 = vmatprep.mubr.bf16.mxu0 0
    %907 = vmatmul.mubr.bf16.gmra.mrb[0].mxu0 %v399
    %v908 = vpop.f32.mrb[0].mxu0
    %v909 = vadd.f32 0.0, %v908
    %v910 = vpop.f32.mrb[0].mxu0
    %v911 = vpop.f32.mrb[0].mxu0
    %v912 = vadd.f32 0.0, %v911
    %v913 = vpop.f32.mrb[0].mxu0
    %914 = vdwg.mxu0
    %v931 = vunpack.c.l.b16 %v785
    %v932 = vunpack.c.l.b16 %v786
    %v933 = vunpack.c.l.b16 %v787
    %v934 = vunpack.c.l.b16 %v788
    %v935 = vunpack.c.l.b16 %v789
    %v936 = vunpack.c.l.b16 %v790
    %v937 = vunpack.c.l.b16 %v791
    %v938 = vunpack.c.l.b16 %v792
    %v939 = vunpack.c.l.b16 %v793
    %v940 = vunpack.c.l.b16 %v794
    %v941 = vunpack.c.l.b16 %v795
    %v942 = vunpack.c.l.b16 %v796
    %v943 = vunpack.c.l.b16 %v797
    %v944 = vunpack.c.l.b16 %v798
    %v945 = vunpack.c.l.b16 %v799
    %v946 = vunpack.c.l.b16 %v800
    %v947 = vpack.c.b16 %v932, %v931
    %v948 = vpack.c.b16 %v934, %v933
    %v949 = vpack.c.b16 %v936, %v935
    %v950 = vpack.c.b16 %v938, %v937
    %v951 = vpack.c.b16 %v940, %v939
    %v952 = vpack.c.b16 %v942, %v941
    %v953 = vpack.c.b16 %v944, %v943
    %v954 = vpack.c.b16 %v946, %v945
    %963 = vmatprep.subr.bf16.mxu0 0
    %964 = vmatpush1.bf16.msra.mxu0 %v947
    %965 = vmatprep.subr.bf16.mxu0 0
    %966 = vmatpush1.bf16.msra.mxu0 %v948
    %967 = vmatprep.subr.bf16.mxu0 0
    %968 = vmatpush1.bf16.msra.mxu0 %v949
    %969 = vmatprep.subr.bf16.mxu0 0
    %970 = vmatpush1.bf16.msra.mxu0 %v950
    %971 = vmatprep.subr.bf16.mxu0 0
    %972 = vmatpush1.bf16.msra.mxu0 %v951
    %973 = vmatprep.subr.bf16.mxu0 0
    %974 = vmatpush1.bf16.msra.mxu0 %v952
    %975 = vmatprep.subr.bf16.mxu0 0
    %976 = vmatpush1.bf16.msra.mxu0 %v953
    %977 = vmatprep.subr.bf16.mxu0 0
    %978 = vmatpush1.bf16.msra.mxu0 %v954
    %979 = vmatprep.subr.bf16.mxu0 0
    %980 = vmatpush1.bf16.msra.mxu0 0
    %981 = vmatprep.subr.bf16.mxu0 0
    %982 = vmatpush1.bf16.msra.mxu0 0
    %983 = vmatprep.subr.bf16.mxu0 0
    %984 = vmatpush1.bf16.msra.mxu0 0
    %985 = vmatprep.subr.bf16.mxu0 0
    %986 = vmatpush1.bf16.msra.mxu0 0
    %987 = vmatprep.subr.bf16.mxu0 0
    %988 = vmatpush1.bf16.msra.mxu0 0
    %989 = vmatprep.subr.bf16.mxu0 0
    %990 = vmatpush1.bf16.msra.mxu0 0
    %991 = vmatprep.subr.bf16.mxu0 0
    %992 = vmatpush1.bf16.msra.mxu0 0
    %993 = vmatprep.subr.bf16.mxu0 0
    %994 = vmatpush1.bf16.msra.mxu0 0
    %995 = vmatprep.mubr.bf16.mxu0 0
    %996 = vmatmul.mubr.bf16.gmra.mrb[0].mxu0 %v396
    %v997 = vpop.f32.mrb[0].mxu0
    %v998 = vadd.f32 %v901, %v997
    %v999 = vpop.f32.mrb[0].mxu0
    %v1000 = vpop.f32.mrb[0].mxu0
    %v1001 = vadd.f32 %v904, %v1000
    %v1002 = vpop.f32.mrb[0].mxu0
    %1003 = vmatprep.mubr.bf16.mxu0 0
    %1004 = vmatmul.mubr.bf16.gmra.mrb[0].mxu0 %v397
    %v1005 = vpop.f32.mrb[0].mxu0
    %v1006 = vadd.f32 %v909, %v1005
    %v1007 = vpop.f32.mrb[0].mxu0
    %v1008 = vpop.f32.mrb[0].mxu0
    %v1009 = vadd.f32 %v912, %v1008
    %v1010 = vpop.f32.mrb[0].mxu0
    %1011 = vdwg.mxu0
    %s1012 = scalar_lea.vmem %s13, 320
    %v1013 = vld [vmem:[%s1012] sm:$0xf]
    %v1014 = vld [vmem:[%s1012 + $0x4] sm:$0xf]
    %v1015 = vld [vmem:[%s1012 + $0x8] sm:$0xf]
    %v1016 = vld [vmem:[%s1012 + $0xc] sm:$0xf]
    %v1017 = vld [vmem:[%s1012 + $0x10] sm:$0xf]
    %v1018 = vld [vmem:[%s1012 + $0x14] sm:$0xf]
    %v1019 = vld [vmem:[%s1012 + $0x18] sm:$0xf]
    %v1020 = vld [vmem:[%s1012 + $0x1c] sm:$0xf]
    %v1021 = vld [vmem:[%s1012 + $0x20] sm:$0xf]
    %v1022 = vld [vmem:[%s1012 + $0x24] sm:$0xf]
    %v1023 = vld [vmem:[%s1012 + $0x28] sm:$0xf]
    %v1024 = vld [vmem:[%s1012 + $0x2c] sm:$0xf]
    %v1025 = vld [vmem:[%s1012 + $0x30] sm:$0xf]
    %v1026 = vld [vmem:[%s1012 + $0x34] sm:$0xf]
    %v1027 = vld [vmem:[%s1012 + $0x38] sm:$0xf]
    %v1028 = vld [vmem:[%s1012 + $0x3c] sm:$0xf]
    %v1045 = vunpack.c.l.b16 %v1013
    %v1046 = vunpack.c.l.b16 %v1014
    %v1047 = vunpack.c.l.b16 %v1015
    %v1048 = vunpack.c.l.b16 %v1016
    %v1049 = vunpack.c.l.b16 %v1017
    %v1050 = vunpack.c.l.b16 %v1018
    %v1051 = vunpack.c.l.b16 %v1019
    %v1052 = vunpack.c.l.b16 %v1020
    %v1053 = vunpack.c.l.b16 %v1021
    %v1054 = vunpack.c.l.b16 %v1022
    %v1055 = vunpack.c.l.b16 %v1023
    %v1056 = vunpack.c.l.b16 %v1024
    %v1057 = vunpack.c.l.b16 %v1025
    %v1058 = vunpack.c.l.b16 %v1026
    %v1059 = vunpack.c.l.b16 %v1027
    %v1060 = vunpack.c.l.b16 %v1028
    %v1061 = vpack.c.b16 %v1046, %v1045
    %v1062 = vpack.c.b16 %v1048, %v1047
    %v1063 = vpack.c.b16 %v1050, %v1049
    %v1064 = vpack.c.b16 %v1052, %v1051
    %v1065 = vpack.c.b16 %v1054, %v1053
    %v1066 = vpack.c.b16 %v1056, %v1055
    %v1067 = vpack.c.b16 %v1058, %v1057
    %v1068 = vpack.c.b16 %v1060, %v1059
    %1077 = vmatprep.subr.bf16.mxu0 0
    %1078 = vmatpush1.bf16.msra.mxu0 %v1061
    %1079 = vmatprep.subr.bf16.mxu0 0
    %1080 = vmatpush1.bf16.msra.mxu0 %v1062
    %1081 = vmatprep.subr.bf16.mxu0 0
    %1082 = vmatpush1.bf16.msra.mxu0 %v1063
    %1083 = vmatprep.subr.bf16.mxu0 0
    %1084 = vmatpush1.bf16.msra.mxu0 %v1064
    %1085 = vmatprep.subr.bf16.mxu0 0
    %1086 = vmatpush1.bf16.msra.mxu0 %v1065
    %1087 = vmatprep.subr.bf16.mxu0 0
    %1088 = vmatpush1.bf16.msra.mxu0 %v1066
    %1089 = vmatprep.subr.bf16.mxu0 0
    %1090 = vmatpush1.bf16.msra.mxu0 %v1067
    %1091 = vmatprep.subr.bf16.mxu0 0
    %1092 = vmatpush1.bf16.msra.mxu0 %v1068
    %1093 = vmatprep.subr.bf16.mxu0 0
    %1094 = vmatpush1.bf16.msra.mxu0 0
    %1095 = vmatprep.subr.bf16.mxu0 0
    %1096 = vmatpush1.bf16.msra.mxu0 0
    %1097 = vmatprep.subr.bf16.mxu0 0
    %1098 = vmatpush1.bf16.msra.mxu0 0
    %1099 = vmatprep.subr.bf16.mxu0 0
    %1100 = vmatpush1.bf16.msra.mxu0 0
    %1101 = vmatprep.subr.bf16.mxu0 0
    %1102 = vmatpush1.bf16.msra.mxu0 0
    %1103 = vmatprep.subr.bf16.mxu0 0
    %1104 = vmatpush1.bf16.msra.mxu0 0
    %1105 = vmatprep.subr.bf16.mxu0 0
    %1106 = vmatpush1.bf16.msra.mxu0 0
    %1107 = vmatprep.subr.bf16.mxu0 0
    %1108 = vmatpush1.bf16.msra.mxu0 0
    %1109 = vmatprep.mubr.bf16.mxu0 0
    %1110 = vmatmul.mubr.bf16.gmra.mrb[0].mxu0 %v437
    %v1111 = vpop.f32.mrb[0].mxu0
    %v1112 = vadd.f32 0.0, %v1111
    %v1113 = vpop.f32.mrb[0].mxu0
    %v1114 = vpop.f32.mrb[0].mxu0
    %v1115 = vadd.f32 0.0, %v1114
    %v1116 = vpop.f32.mrb[0].mxu0
    %1117 = vmatprep.mubr.bf16.mxu0 0
    %1118 = vmatmul.mubr.bf16.gmra.mrb[0].mxu0 %v438
    %v1119 = vpop.f32.mrb[0].mxu0
    %v1120 = vadd.f32 0.0, %v1119
    %v1121 = vpop.f32.mrb[0].mxu0
    %v1122 = vpop.f32.mrb[0].mxu0
    %v1123 = vadd.f32 0.0, %v1122
    %v1124 = vpop.f32.mrb[0].mxu0
    %1125 = vdwg.mxu0
    %v1126 = vadd.f32 %v998, %v1112
    %v1127 = vadd.f32 %v1001, %v1115
    %v1128 = vadd.f32 %v1006, %v1120
    %v1129 = vadd.f32 %v1009, %v1123
    %v1130 = vmax.f32 %v780, %v1126
    %v1131 = vmax.f32 %v781, %v1127
    %v1132 = vmax.f32 %v782, %v1128
    %v1133 = vmax.f32 %v783, %v1129
    %v1138 = vrot.slane %v1130, 1
    %v1139 = vrot.slane %v1131, 1
    %v1140 = vsel %vm400, %v1138, %v1139
    %v1141 = vrot.slane %v1132, 1
    %v1142 = vsel %vm400, %v1139, %v1141
    %v1143 = vrot.slane %v1133, 1
    %v1144 = vsel %vm400, %v1141, %v1143
    %v1149 = vsel %vm400, %v1143, %v1133
    %v1150 = vmax.f32 %v1130, %v1140
    %v1151 = vmax.f32 %v1131, %v1142
    %v1152 = vmax.f32 %v1132, %v1144
    %v1153 = vmax.f32 %v1133, %v1149
    %v1155 = vlaneseq
    %v1156 = vshrl.u32 %v1155, 7
    %v1157 = vsub.s32 0, %v1156
    %v1158 = vrot.slane %v157, %v1157
    %vm1160 = vcmask 261120
    %v1162 = vsel %vm1160, %v158, 0
    %v1165 = vsel %vm1160, %v159, 0
    %1167 = vmatprep.subr.mxu0 0.0
    %1168 = vmatpush1.msra.mxu0 %v1150
    %1169 = vmatprep.subr.mxu0 0.0
    %1170 = vmatpush1.msra.mxu0 %v1151
    %1171 = vmatprep.subr.mxu0 0.0
    %1172 = vmatpush1.msra.mxu0 %v1152
    %1173 = vmatprep.subr.mxu0 0.0
    %1174 = vmatpush1.msra.mxu0 %v1153
    %1175 = vmatprep.subr.mxu0 0.0
    %1176 = vmatpush1.msra.mxu0 0.0
    %1177 = vmatprep.subr.mxu0 0.0
    %1178 = vmatpush1.msra.mxu0 0.0
    %1179 = vmatprep.subr.mxu0 0.0
    %1180 = vmatpush1.msra.mxu0 0.0
    %1181 = vmatprep.subr.mxu0 0.0
    %1182 = vmatpush1.msra.mxu0 0.0
    %1183 = vmatprep.subr.mxu0 0.0
    %1184 = vmatpush1.msra.mxu0 0.0
    %1185 = vmatprep.subr.mxu0 0.0
    %1186 = vmatpush1.msra.mxu0 0.0
    %1187 = vmatprep.subr.mxu0 0.0
    %1188 = vmatpush1.msra.mxu0 0.0
    %1189 = vmatprep.subr.mxu0 0.0
    %1190 = vmatpush1.msra.mxu0 0.0
    %1191 = vmatprep.subr.mxu0 0.0
    %1192 = vmatpush1.msra.mxu0 0.0
    %1193 = vmatprep.subr.mxu0 0.0
    %1194 = vmatpush1.msra.mxu0 0.0
    %1195 = vmatprep.subr.mxu0 0.0
    %1196 = vmatpush1.msra.mxu0 0.0
    %1197 = vmatprep.subr.mxu0 0.0
    %1198 = vmatpush1.msra.mxu0 0.0
    %1199 = vmatprep.subr.mxu0 0.0
    %1200 = vmatpush1.msra.mxu0 0.0
    %1201 = vmatprep.subr.mxu0 0.0
    %1202 = vmatpush1.msra.mxu0 0.0
    %1203 = vmatprep.subr.mxu0 0.0
    %1204 = vmatpush1.msra.mxu0 0.0
    %1205 = vmatprep.subr.mxu0 0.0
    %1206 = vmatpush1.msra.mxu0 0.0
    %1207 = vmatprep.subr.mxu0 0.0
    %1208 = vmatpush1.msra.mxu0 0.0
    %1209 = vmatprep.subr.mxu0 0.0
    %1210 = vmatpush1.msra.mxu0 0.0
    %1211 = vmatprep.subr.mxu0 0.0
    %1212 = vmatpush1.msra.mxu0 0.0
    %1213 = vmatprep.subr.mxu0 0.0
    %1214 = vmatpush1.msra.mxu0 0.0
    %1215 = vmatprep.subr.mxu0 0.0
    %1216 = vmatpush1.msra.mxu0 0.0
    %1217 = vmatprep.subr.mxu0 0.0
    %1218 = vmatpush1.msra.mxu0 0.0
    %1219 = vmatprep.subr.mxu0 0.0
    %1220 = vmatpush1.msra.mxu0 0.0
    %1221 = vmatprep.subr.mxu0 0.0
    %1222 = vmatpush1.msra.mxu0 0.0
    %1223 = vmatprep.subr.mxu0 0.0
    %1224 = vmatpush1.msra.mxu0 0.0
    %1225 = vmatprep.subr.mxu0 0.0
    %1226 = vmatpush1.msra.mxu0 0.0
    %1227 = vmatprep.subr.mxu0 0.0
    %1228 = vmatpush1.msra.mxu0 0.0
    %1229 = vmatprep.subr.mxu0 0.0
    %1230 = vmatpush1.msra.mxu0 0.0
    %1231 = vmatprep.mubr.f32.mxu0 0.0
    %1232 = vmatmul.mubr.f32.gmra.mrb[0].mxu0 %v1162
    %v1233 = vpop.f32.mrb[0].mxu0
    %v1234 = vadd.f32 %v1158, %v1233
    %v1235 = vpop.f32.mrb[0].mxu0
    %1236 = vmatprep.mubr.f32.mxu0 0.0
    %1237 = vmatmul.mubr.f32.gmra.mrb[0].mxu0 %v1165
    %v1238 = vpop.f32.mrb[0].mxu0
    %v1239 = vadd.f32 %v1158, %v1238
    %v1240 = vpop.f32.mrb[0].mxu0
    %1241 = vdwg.mxu0
    %vm1242 = vcmp.gt.f32.partialorder %v1234, 0.0
    %vm1243 = vcmp.gt.f32.partialorder %v1239, 0.0
    %v1244 = vmin.f32 %v1234, 0.0
    %v1245 = vmin.f32 %v1239, 0.0
    %v1246 = vmul.f32 %v1244, 1.442695
    %v1247 = vpow.pop %v1246
    %v1248 = vmul.f32 %v1245, 1.442695
    %v1249 = vpow.pop %v1248
    %v1250 = vsub.f32 %v1247, 1.0
    %v1251 = vsub.f32 %v1249, 1.0
    %v1252 = vsel %vm1242, %v1234, %v1250
    %v1253 = vsel %vm1243, %v1239, %v1251
    %1254 = vst [vmem:[%s57] sm:$0xff] %v1252
    %1255 = vst [vmem:[%s57 + $0x8] sm:$0xff] %v1253
    %v1256 = vld [vmem:[%s19] sm:$0x1]
    %v1257 = vld [vmem:[%s21] sm:$0x1]
    %v1258 = vld [vmem:[%s23] sm:$0xff]
    %v1259 = vld [vmem:[%s23 + $0x8] sm:$0xff]
    %v1260 = vld [vmem:[%s23 + $0x10] sm:$0xff]
    %v1261 = vld [vmem:[%s23 + $0x18] sm:$0xff]
    %v1262 = vld [vmem:[%s23 + $0x20] sm:$0xff]
    %v1263 = vld [vmem:[%s23 + $0x28] sm:$0xff]
    %v1264 = vld [vmem:[%s23 + $0x30] sm:$0xff]
    %v1265 = vld [vmem:[%s23 + $0x38] sm:$0xff]
    %v1266 = vld [vmem:[%s23 + $0x40] sm:$0xff]
    %v1267 = vld [vmem:[%s23 + $0x48] sm:$0xff]
    %v1268 = vld [vmem:[%s23 + $0x50] sm:$0xff]
    %v1269 = vld [vmem:[%s23 + $0x58] sm:$0xff]
    %v1270 = vld [vmem:[%s23 + $0x60] sm:$0xff]
    %v1271 = vld [vmem:[%s23 + $0x68] sm:$0xff]
    %v1272 = vld [vmem:[%s23 + $0x70] sm:$0xff]
    %v1273 = vld [vmem:[%s23 + $0x78] sm:$0xff]
    %v1274 = vld [vmem:[%s25] sm:$0xff]
    %v1275 = vld [vmem:[%s25 + $0x8] sm:$0xff]
    %v1276 = vld [vmem:[%s27] sm:$0xff]
    %v1277 = vld [vmem:[%s27 + $0x8] sm:$0xff]
    %v1278 = vld [vmem:[%s31] sm:$0x1]
    %v1279 = vld [vmem:[%s33] sm:$0xff]
    %v1280 = vadd.f32 %v1252, %v1253
    %v1281 = vrot.slane %v1280, 4
    %v1282 = vadd.f32 %v1280, %v1281
    %v1283 = vrot.slane %v1282, 2
    %v1284 = vadd.f32 %v1282, %v1283
    %v1285 = vrot.slane %v1284, 1
    %v1286 = vadd.f32 %v1284, %v1285
    %1287 = vmatprep.subr.mxu0 0.0
    %1288 = vmatpush1.msra.mxu0 %v1258
    %1289 = vmatprep.subr.mxu0 0.0
    %1290 = vmatpush1.msra.mxu0 %v1259
    %1291 = vmatprep.subr.mxu0 0.0
    %1292 = vmatpush1.msra.mxu0 %v1260
    %1293 = vmatprep.subr.mxu0 0.0
    %1294 = vmatpush1.msra.mxu0 %v1261
    %1295 = vmatprep.subr.mxu0 0.0
    %1296 = vmatpush1.msra.mxu0 %v1262
    %1297 = vmatprep.subr.mxu0 0.0
    %1298 = vmatpush1.msra.mxu0 %v1263
    %1299 = vmatprep.subr.mxu0 0.0
    %1300 = vmatpush1.msra.mxu0 %v1264
    %1301 = vmatprep.subr.mxu0 0.0
    %1302 = vmatpush1.msra.mxu0 %v1265
    %1303 = vmatprep.subr.mxu0 0.0
    %1304 = vmatpush1.msra.mxu0 %v1266
    %1305 = vmatprep.subr.mxu0 0.0
    %1306 = vmatpush1.msra.mxu0 %v1267
    %1307 = vmatprep.subr.mxu0 0.0
    %1308 = vmatpush1.msra.mxu0 %v1268
    %1309 = vmatprep.subr.mxu0 0.0
    %1310 = vmatpush1.msra.mxu0 %v1269
    %1311 = vmatprep.subr.mxu0 0.0
    %1312 = vmatpush1.msra.mxu0 %v1270
    %1313 = vmatprep.subr.mxu0 0.0
    %1314 = vmatpush1.msra.mxu0 %v1271
    %1315 = vmatprep.subr.mxu0 0.0
    %1316 = vmatpush1.msra.mxu0 %v1272
    %1317 = vmatprep.subr.mxu0 0.0
    %1318 = vmatpush1.msra.mxu0 %v1273
    %1319 = vmatprep.subr.mxu0 0.0
    %1320 = vmatpush1.msra.mxu0 0.0
    %1321 = vmatprep.subr.mxu0 0.0
    %1322 = vmatpush1.msra.mxu0 0.0
    %1323 = vmatprep.subr.mxu0 0.0
    %1324 = vmatpush1.msra.mxu0 0.0
    %1325 = vmatprep.subr.mxu0 0.0
    %1326 = vmatpush1.msra.mxu0 0.0
    %1327 = vmatprep.subr.mxu0 0.0
    %1328 = vmatpush1.msra.mxu0 0.0
    %1329 = vmatprep.subr.mxu0 0.0
    %1330 = vmatpush1.msra.mxu0 0.0
    %1331 = vmatprep.subr.mxu0 0.0
    %1332 = vmatpush1.msra.mxu0 0.0
    %1333 = vmatprep.subr.mxu0 0.0
    %1334 = vmatpush1.msra.mxu0 0.0
    %1335 = vmatprep.subr.mxu0 0.0
    %1336 = vmatpush1.msra.mxu0 0.0
    %1337 = vmatprep.subr.mxu0 0.0
    %1338 = vmatpush1.msra.mxu0 0.0
    %1339 = vmatprep.subr.mxu0 0.0
    %1340 = vmatpush1.msra.mxu0 0.0
    %1341 = vmatprep.subr.mxu0 0.0
    %1342 = vmatpush1.msra.mxu0 0.0
    %1343 = vmatprep.subr.mxu0 0.0
    %1344 = vmatpush1.msra.mxu0 0.0
    %1345 = vmatprep.subr.mxu0 0.0
    %1346 = vmatpush1.msra.mxu0 0.0
    %1347 = vmatprep.subr.mxu0 0.0
    %1348 = vmatpush1.msra.mxu0 0.0
    %1349 = vmatprep.subr.mxu0 0.0
    %1350 = vmatpush1.msra.mxu0 0.0
    %1351 = vmatprep.mubr.f32.mxu0 0.0
    %1352 = vmatmul.mubr.f32.gmra.mrb[0].mxu0 %v1286
    %v1353 = vpop.f32.mrb[0].mxu0
    %v1354 = vadd.f32 0.0, %v1353
    %v1355 = vpop.f32.mrb[0].mxu0
    %1356 = vdwg.mxu0
    %v1357 = vmul.f32 %v1354, 0.0078125
    %v1358 = vlaneseq
    %v1359 = vshrl.u32 %v1358, 7
    %v1360 = vsub.s32 0, %v1359
    %v1361 = vrot.slane %v1357, %v1360
    %v1362 = vsub.f32 %v1252, %v1361
    %v1363 = vsub.f32 %v1253, %v1361
    %v1364 = vmul.f32 %v1362, %v1362
    %v1365 = vmul.f32 %v1363, %v1363
    %v1366 = vadd.f32 %v1364, %v1365
    %v1367 = vrot.slane %v1366, 4
    %v1368 = vadd.f32 %v1366, %v1367
    %v1369 = vrot.slane %v1368, 2
    %v1370 = vadd.f32 %v1368, %v1369
    %v1371 = vrot.slane %v1370, 1
    %v1372 = vadd.f32 %v1370, %v1371
    %1373 = vmatprep.subr.mxu0 0.0
    %1374 = vmatpush1.msra.mxu0 %v1258
    %1375 = vmatprep.subr.mxu0 0.0
    %1376 = vmatpush1.msra.mxu0 %v1259
    %1377 = vmatprep.subr.mxu0 0.0
    %1378 = vmatpush1.msra.mxu0 %v1260
    %1379 = vmatprep.subr.mxu0 0.0
    %1380 = vmatpush1.msra.mxu0 %v1261
    %1381 = vmatprep.subr.mxu0 0.0
    %1382 = vmatpush1.msra.mxu0 %v1262
    %1383 = vmatprep.subr.mxu0 0.0
    %1384 = vmatpush1.msra.mxu0 %v1263
    %1385 = vmatprep.subr.mxu0 0.0
    %1386 = vmatpush1.msra.mxu0 %v1264
    %1387 = vmatprep.subr.mxu0 0.0
    %1388 = vmatpush1.msra.mxu0 %v1265
    %1389 = vmatprep.subr.mxu0 0.0
    %1390 = vmatpush1.msra.mxu0 %v1266
    %1391 = vmatprep.subr.mxu0 0.0
    %1392 = vmatpush1.msra.mxu0 %v1267
    %1393 = vmatprep.subr.mxu0 0.0
    %1394 = vmatpush1.msra.mxu0 %v1268
    %1395 = vmatprep.subr.mxu0 0.0
    %1396 = vmatpush1.msra.mxu0 %v1269
    %1397 = vmatprep.subr.mxu0 0.0
    %1398 = vmatpush1.msra.mxu0 %v1270
    %1399 = vmatprep.subr.mxu0 0.0
    %1400 = vmatpush1.msra.mxu0 %v1271
    %1401 = vmatprep.subr.mxu0 0.0
    %1402 = vmatpush1.msra.mxu0 %v1272
    %1403 = vmatprep.subr.mxu0 0.0
    %1404 = vmatpush1.msra.mxu0 %v1273
    %1405 = vmatprep.subr.mxu0 0.0
    %1406 = vmatpush1.msra.mxu0 0.0
    %1407 = vmatprep.subr.mxu0 0.0
    %1408 = vmatpush1.msra.mxu0 0.0
    %1409 = vmatprep.subr.mxu0 0.0
    %1410 = vmatpush1.msra.mxu0 0.0
    %1411 = vmatprep.subr.mxu0 0.0
    %1412 = vmatpush1.msra.mxu0 0.0
    %1413 = vmatprep.subr.mxu0 0.0
    %1414 = vmatpush1.msra.mxu0 0.0
    %1415 = vmatprep.subr.mxu0 0.0
    %1416 = vmatpush1.msra.mxu0 0.0
    %1417 = vmatprep.subr.mxu0 0.0
    %1418 = vmatpush1.msra.mxu0 0.0
    %1419 = vmatprep.subr.mxu0 0.0
    %1420 = vmatpush1.msra.mxu0 0.0
    %1421 = vmatprep.subr.mxu0 0.0
    %1422 = vmatpush1.msra.mxu0 0.0
    %1423 = vmatprep.subr.mxu0 0.0
    %1424 = vmatpush1.msra.mxu0 0.0
    %1425 = vmatprep.subr.mxu0 0.0
    %1426 = vmatpush1.msra.mxu0 0.0
    %1427 = vmatprep.subr.mxu0 0.0
    %1428 = vmatpush1.msra.mxu0 0.0
    %1429 = vmatprep.subr.mxu0 0.0
    %1430 = vmatpush1.msra.mxu0 0.0
    %1431 = vmatprep.subr.mxu0 0.0
    %1432 = vmatpush1.msra.mxu0 0.0
    %1433 = vmatprep.subr.mxu0 0.0
    %1434 = vmatpush1.msra.mxu0 0.0
    %1435 = vmatprep.subr.mxu0 0.0
    %1436 = vmatpush1.msra.mxu0 0.0
    %1437 = vmatprep.mubr.f32.mxu0 0.0
    %1438 = vmatmul.mubr.f32.gmra.mrb[0].mxu0 %v1372
    %v1439 = vpop.f32.mrb[0].mxu0
    %v1440 = vadd.f32 0.0, %v1439
    %v1441 = vpop.f32.mrb[0].mxu0
    %1442 = vdwg.mxu0
    %v1443 = vmul.f32 %v1440, 0.0078125
    %v1444 = vadd.f32 %v1443, 1e-05
    %v1445 = vrsqrt.pop %v1444
    %v1446 = vmul.f32 %v1256, %v1445
    %v1448 = vlaneseq
    %v1449 = vshrl.u32 %v1448, 7
    %v1450 = vsub.s32 0, %v1449
    %v1451 = vrot.slane %v1446, %v1450
    %v1453 = vmul.f32 %v1362, %v1451
    %v1454 = vmul.f32 %v1363, %v1451
    %v1456 = vlaneseq
    %v1457 = vshrl.u32 %v1456, 7
    %v1458 = vsub.s32 0, %v1457
    %v1459 = vrot.slane %v1257, %v1458
    %v1461 = vadd.f32 %v1453, %v1459
    %v1462 = vadd.f32 %v1454, %v1459
    %v1465 = vrot.slane %v1461, 7
    %v1466 = vrot.slane %v1462, 7
    %v1467 = vsel %vm359, %v1465, %v1466
    %v1470 = vsel %vm359, 0.0, %v1465
    %1472 = vset.pattern.permute.xlu0 0
    %1473 = vperm.xlu0 %1472, %v1274
    %v1474 = vpop.permute.xlu0 %1473
    %1477 = vset.pattern.permute.xlu0 0
    %1478 = vperm.xlu0 %1477, %v1275
    %v1479 = vpop.permute.xlu0 %1478
    %v1481 = vmul.f32 %v1470, %v1474
    %v1482 = vmul.f32 %v1467, %v1479
    %v1483 = vpack.c.bf16 %v1482, %v1481
    %v1484 = vpack.c.bf16 %v1462, %v1461
    %v1485 = vrot.slane %v1461, 1
    %v1486 = vrot.slane %v1462, 1
    %v1487 = vsel %vm400, %v1485, %v1486
    %v1490 = vsel %vm400, %v1486, 0.0
    %1492 = vset.pattern.permute.xlu0 0
    %1493 = vperm.xlu0 %1492, %v1276
    %v1494 = vpop.permute.xlu0 %1493
    %1497 = vset.pattern.permute.xlu0 0
    %1498 = vperm.xlu0 %1497, %v1277
    %v1499 = vpop.permute.xlu0 %1498
    %v1501 = vmul.f32 %v1487, %v1494
    %v1502 = vmul.f32 %v1490, %v1499
    %v1503 = vpack.c.bf16 %v1502, %v1501
    %v1504 = vld [vmem:[%s29] sm:$0xf]
    %v1505 = vld [vmem:[%s29 + $0x4] sm:$0xf]
    %v1506 = vld [vmem:[%s29 + $0x8] sm:$0xf]
    %v1507 = vld [vmem:[%s29 + $0xc] sm:$0xf]
    %v1508 = vld [vmem:[%s29 + $0x10] sm:$0xf]
    %v1509 = vld [vmem:[%s29 + $0x14] sm:$0xf]
    %v1510 = vld [vmem:[%s29 + $0x18] sm:$0xf]
    %v1511 = vld [vmem:[%s29 + $0x1c] sm:$0xf]
    %v1512 = vld [vmem:[%s29 + $0x20] sm:$0xf]
    %v1513 = vld [vmem:[%s29 + $0x24] sm:$0xf]
    %v1514 = vld [vmem:[%s29 + $0x28] sm:$0xf]
    %v1515 = vld [vmem:[%s29 + $0x2c] sm:$0xf]
    %v1516 = vld [vmem:[%s29 + $0x30] sm:$0xf]
    %v1517 = vld [vmem:[%s29 + $0x34] sm:$0xf]
    %v1518 = vld [vmem:[%s29 + $0x38] sm:$0xf]
    %v1519 = vld [vmem:[%s29 + $0x3c] sm:$0xf]
    %s1520 = scalar_lea.vmem %s29, 128
    %v1521 = vld [vmem:[%s1520] sm:$0xf]
    %v1522 = vld [vmem:[%s1520 + $0x4] sm:$0xf]
    %v1523 = vld [vmem:[%s1520 + $0x8] sm:$0xf]
    %v1524 = vld [vmem:[%s1520 + $0xc] sm:$0xf]
    %v1525 = vld [vmem:[%s1520 + $0x10] sm:$0xf]
    %v1526 = vld [vmem:[%s1520 + $0x14] sm:$0xf]
    %v1527 = vld [vmem:[%s1520 + $0x18] sm:$0xf]
    %v1528 = vld [vmem:[%s1520 + $0x1c] sm:$0xf]
    %v1529 = vld [vmem:[%s1520 + $0x20] sm:$0xf]
    %v1530 = vld [vmem:[%s1520 + $0x24] sm:$0xf]
    %v1531 = vld [vmem:[%s1520 + $0x28] sm:$0xf]
    %v1532 = vld [vmem:[%s1520 + $0x2c] sm:$0xf]
    %v1533 = vld [vmem:[%s1520 + $0x30] sm:$0xf]
    %v1534 = vld [vmem:[%s1520 + $0x34] sm:$0xf]
    %v1535 = vld [vmem:[%s1520 + $0x38] sm:$0xf]
    %v1536 = vld [vmem:[%s1520 + $0x3c] sm:$0xf]
    %v1553 = vunpack.c.l.b16 %v1521
    %v1554 = vunpack.c.l.b16 %v1522
    %v1555 = vunpack.c.l.b16 %v1523
    %v1556 = vunpack.c.l.b16 %v1524
    %v1557 = vunpack.c.l.b16 %v1525
    %v1558 = vunpack.c.l.b16 %v1526
    %v1559 = vunpack.c.l.b16 %v1527
    %v1560 = vunpack.c.l.b16 %v1528
    %v1561 = vunpack.c.l.b16 %v1529
    %v1562 = vunpack.c.l.b16 %v1530
    %v1563 = vunpack.c.l.b16 %v1531
    %v1564 = vunpack.c.l.b16 %v1532
    %v1565 = vunpack.c.l.b16 %v1533
    %v1566 = vunpack.c.l.b16 %v1534
    %v1567 = vunpack.c.l.b16 %v1535
    %v1568 = vunpack.c.l.b16 %v1536
    %v1569 = vpack.c.b16 %v1554, %v1553
    %v1570 = vpack.c.b16 %v1556, %v1555
    %v1571 = vpack.c.b16 %v1558, %v1557
    %v1572 = vpack.c.b16 %v1560, %v1559
    %v1573 = vpack.c.b16 %v1562, %v1561
    %v1574 = vpack.c.b16 %v1564, %v1563
    %v1575 = vpack.c.b16 %v1566, %v1565
    %v1576 = vpack.c.b16 %v1568, %v1567
    %1585 = vmatprep.subr.bf16.mxu0 0
    %1586 = vmatpush1.bf16.msra.mxu0 %v1569
    %1587 = vmatprep.subr.bf16.mxu0 0
    %1588 = vmatpush1.bf16.msra.mxu0 %v1570
    %1589 = vmatprep.subr.bf16.mxu0 0
    %1590 = vmatpush1.bf16.msra.mxu0 %v1571
    %1591 = vmatprep.subr.bf16.mxu0 0
    %1592 = vmatpush1.bf16.msra.mxu0 %v1572
    %1593 = vmatprep.subr.bf16.mxu0 0
    %1594 = vmatpush1.bf16.msra.mxu0 %v1573
    %1595 = vmatprep.subr.bf16.mxu0 0
    %1596 = vmatpush1.bf16.msra.mxu0 %v1574
    %1597 = vmatprep.subr.bf16.mxu0 0
    %1598 = vmatpush1.bf16.msra.mxu0 %v1575
    %1599 = vmatprep.subr.bf16.mxu0 0
    %1600 = vmatpush1.bf16.msra.mxu0 %v1576
    %1601 = vmatprep.subr.bf16.mxu0 0
    %1602 = vmatpush1.bf16.msra.mxu0 0
    %1603 = vmatprep.subr.bf16.mxu0 0
    %1604 = vmatpush1.bf16.msra.mxu0 0
    %1605 = vmatprep.subr.bf16.mxu0 0
    %1606 = vmatpush1.bf16.msra.mxu0 0
    %1607 = vmatprep.subr.bf16.mxu0 0
    %1608 = vmatpush1.bf16.msra.mxu0 0
    %1609 = vmatprep.subr.bf16.mxu0 0
    %1610 = vmatpush1.bf16.msra.mxu0 0
    %1611 = vmatprep.subr.bf16.mxu0 0
    %1612 = vmatpush1.bf16.msra.mxu0 0
    %1613 = vmatprep.subr.bf16.mxu0 0
    %1614 = vmatpush1.bf16.msra.mxu0 0
    %1615 = vmatprep.subr.bf16.mxu0 0
    %1616 = vmatpush1.bf16.msra.mxu0 0
    %1617 = vmatprep.mubr.bf16.mxu0 0
    %1618 = vmatmul.mubr.bf16.gmra.mrb[0].mxu0 %v1484
    %v1619 = vpop.f32.mrb[0].mxu0
    %v1620 = vadd.f32 0.0, %v1619
    %v1621 = vpop.f32.mrb[0].mxu0
    %v1622 = vpop.f32.mrb[0].mxu0
    %v1623 = vadd.f32 0.0, %v1622
    %v1624 = vpop.f32.mrb[0].mxu0
    %1625 = vdwg.mxu0
    %v1642 = vunpack.c.l.b16 %v1504
    %v1643 = vunpack.c.l.b16 %v1505
    %v1644 = vunpack.c.l.b16 %v1506
    %v1645 = vunpack.c.l.b16 %v1507
    %v1646 = vunpack.c.l.b16 %v1508
    %v1647 = vunpack.c.l.b16 %v1509
    %v1648 = vunpack.c.l.b16 %v1510
    %v1649 = vunpack.c.l.b16 %v1511
    %v1650 = vunpack.c.l.b16 %v1512
    %v1651 = vunpack.c.l.b16 %v1513
    %v1652 = vunpack.c.l.b16 %v1514
    %v1653 = vunpack.c.l.b16 %v1515
    %v1654 = vunpack.c.l.b16 %v1516
    %v1655 = vunpack.c.l.b16 %v1517
    %v1656 = vunpack.c.l.b16 %v1518
    %v1657 = vunpack.c.l.b16 %v1519
    %v1658 = vpack.c.b16 %v1643, %v1642
    %v1659 = vpack.c.b16 %v1645, %v1644
    %v1660 = vpack.c.b16 %v1647, %v1646
    %v1661 = vpack.c.b16 %v1649, %v1648
    %v1662 = vpack.c.b16 %v1651, %v1650
    %v1663 = vpack.c.b16 %v1653, %v1652
    %v1664 = vpack.c.b16 %v1655, %v1654
    %v1665 = vpack.c.b16 %v1657, %v1656
    %1674 = vmatprep.subr.bf16.mxu0 0
    %1675 = vmatpush1.bf16.msra.mxu0 %v1658
    %1676 = vmatprep.subr.bf16.mxu0 0
    %1677 = vmatpush1.bf16.msra.mxu0 %v1659
    %1678 = vmatprep.subr.bf16.mxu0 0
    %1679 = vmatpush1.bf16.msra.mxu0 %v1660
    %1680 = vmatprep.subr.bf16.mxu0 0
    %1681 = vmatpush1.bf16.msra.mxu0 %v1661
    %1682 = vmatprep.subr.bf16.mxu0 0
    %1683 = vmatpush1.bf16.msra.mxu0 %v1662
    %1684 = vmatprep.subr.bf16.mxu0 0
    %1685 = vmatpush1.bf16.msra.mxu0 %v1663
    %1686 = vmatprep.subr.bf16.mxu0 0
    %1687 = vmatpush1.bf16.msra.mxu0 %v1664
    %1688 = vmatprep.subr.bf16.mxu0 0
    %1689 = vmatpush1.bf16.msra.mxu0 %v1665
    %1690 = vmatprep.subr.bf16.mxu0 0
    %1691 = vmatpush1.bf16.msra.mxu0 0
    %1692 = vmatprep.subr.bf16.mxu0 0
    %1693 = vmatpush1.bf16.msra.mxu0 0
    %1694 = vmatprep.subr.bf16.mxu0 0
    %1695 = vmatpush1.bf16.msra.mxu0 0
    %1696 = vmatprep.subr.bf16.mxu0 0
    %1697 = vmatpush1.bf16.msra.mxu0 0
    %1698 = vmatprep.subr.bf16.mxu0 0
    %1699 = vmatpush1.bf16.msra.mxu0 0
    %1700 = vmatprep.subr.bf16.mxu0 0
    %1701 = vmatpush1.bf16.msra.mxu0 0
    %1702 = vmatprep.subr.bf16.mxu0 0
    %1703 = vmatpush1.bf16.msra.mxu0 0
    %1704 = vmatprep.subr.bf16.mxu0 0
    %1705 = vmatpush1.bf16.msra.mxu0 0
    %1706 = vmatprep.mubr.bf16.mxu0 0
    %1707 = vmatmul.mubr.bf16.gmra.mrb[0].mxu0 %v1483
    %v1708 = vpop.f32.mrb[0].mxu0
    %v1709 = vadd.f32 %v1620, %v1708
    %v1710 = vpop.f32.mrb[0].mxu0
    %v1711 = vpop.f32.mrb[0].mxu0
    %v1712 = vadd.f32 %v1623, %v1711
    %v1713 = vpop.f32.mrb[0].mxu0
    %1714 = vdwg.mxu0
    %s1715 = scalar_lea.vmem %s29, 256
    %v1716 = vld [vmem:[%s1715] sm:$0xf]
    %v1717 = vld [vmem:[%s1715 + $0x4] sm:$0xf]
    %v1718 = vld [vmem:[%s1715 + $0x8] sm:$0xf]
    %v1719 = vld [vmem:[%s1715 + $0xc] sm:$0xf]
    %v1720 = vld [vmem:[%s1715 + $0x10] sm:$0xf]
    %v1721 = vld [vmem:[%s1715 + $0x14] sm:$0xf]
    %v1722 = vld [vmem:[%s1715 + $0x18] sm:$0xf]
    %v1723 = vld [vmem:[%s1715 + $0x1c] sm:$0xf]
    %v1724 = vld [vmem:[%s1715 + $0x20] sm:$0xf]
    %v1725 = vld [vmem:[%s1715 + $0x24] sm:$0xf]
    %v1726 = vld [vmem:[%s1715 + $0x28] sm:$0xf]
    %v1727 = vld [vmem:[%s1715 + $0x2c] sm:$0xf]
    %v1728 = vld [vmem:[%s1715 + $0x30] sm:$0xf]
    %v1729 = vld [vmem:[%s1715 + $0x34] sm:$0xf]
    %v1730 = vld [vmem:[%s1715 + $0x38] sm:$0xf]
    %v1731 = vld [vmem:[%s1715 + $0x3c] sm:$0xf]
    %v1748 = vunpack.c.l.b16 %v1716
    %v1749 = vunpack.c.l.b16 %v1717
    %v1750 = vunpack.c.l.b16 %v1718
    %v1751 = vunpack.c.l.b16 %v1719
    %v1752 = vunpack.c.l.b16 %v1720
    %v1753 = vunpack.c.l.b16 %v1721
    %v1754 = vunpack.c.l.b16 %v1722
    %v1755 = vunpack.c.l.b16 %v1723
    %v1756 = vunpack.c.l.b16 %v1724
    %v1757 = vunpack.c.l.b16 %v1725
    %v1758 = vunpack.c.l.b16 %v1726
    %v1759 = vunpack.c.l.b16 %v1727
    %v1760 = vunpack.c.l.b16 %v1728
    %v1761 = vunpack.c.l.b16 %v1729
    %v1762 = vunpack.c.l.b16 %v1730
    %v1763 = vunpack.c.l.b16 %v1731
    %v1764 = vpack.c.b16 %v1749, %v1748
    %v1765 = vpack.c.b16 %v1751, %v1750
    %v1766 = vpack.c.b16 %v1753, %v1752
    %v1767 = vpack.c.b16 %v1755, %v1754
    %v1768 = vpack.c.b16 %v1757, %v1756
    %v1769 = vpack.c.b16 %v1759, %v1758
    %v1770 = vpack.c.b16 %v1761, %v1760
    %v1771 = vpack.c.b16 %v1763, %v1762
    %1780 = vmatprep.subr.bf16.mxu0 0
    %1781 = vmatpush1.bf16.msra.mxu0 %v1764
    %1782 = vmatprep.subr.bf16.mxu0 0
    %1783 = vmatpush1.bf16.msra.mxu0 %v1765
    %1784 = vmatprep.subr.bf16.mxu0 0
    %1785 = vmatpush1.bf16.msra.mxu0 %v1766
    %1786 = vmatprep.subr.bf16.mxu0 0
    %1787 = vmatpush1.bf16.msra.mxu0 %v1767
    %1788 = vmatprep.subr.bf16.mxu0 0
    %1789 = vmatpush1.bf16.msra.mxu0 %v1768
    %1790 = vmatprep.subr.bf16.mxu0 0
    %1791 = vmatpush1.bf16.msra.mxu0 %v1769
    %1792 = vmatprep.subr.bf16.mxu0 0
    %1793 = vmatpush1.bf16.msra.mxu0 %v1770
    %1794 = vmatprep.subr.bf16.mxu0 0
    %1795 = vmatpush1.bf16.msra.mxu0 %v1771
    %1796 = vmatprep.subr.bf16.mxu0 0
    %1797 = vmatpush1.bf16.msra.mxu0 0
    %1798 = vmatprep.subr.bf16.mxu0 0
    %1799 = vmatpush1.bf16.msra.mxu0 0
    %1800 = vmatprep.subr.bf16.mxu0 0
    %1801 = vmatpush1.bf16.msra.mxu0 0
    %1802 = vmatprep.subr.bf16.mxu0 0
    %1803 = vmatpush1.bf16.msra.mxu0 0
    %1804 = vmatprep.subr.bf16.mxu0 0
    %1805 = vmatpush1.bf16.msra.mxu0 0
    %1806 = vmatprep.subr.bf16.mxu0 0
    %1807 = vmatpush1.bf16.msra.mxu0 0
    %1808 = vmatprep.subr.bf16.mxu0 0
    %1809 = vmatpush1.bf16.msra.mxu0 0
    %1810 = vmatprep.subr.bf16.mxu0 0
    %1811 = vmatpush1.bf16.msra.mxu0 0
    %1812 = vmatprep.mubr.bf16.mxu0 0
    %1813 = vmatmul.mubr.bf16.gmra.mrb[0].mxu0 %v1503
    %v1814 = vpop.f32.mrb[0].mxu0
    %v1815 = vadd.f32 0.0, %v1814
    %v1816 = vpop.f32.mrb[0].mxu0
    %v1817 = vpop.f32.mrb[0].mxu0
    %v1818 = vadd.f32 0.0, %v1817
    %v1819 = vpop.f32.mrb[0].mxu0
    %1820 = vdwg.mxu0
    %v1821 = vadd.f32 %v1709, %v1815
    %v1822 = vadd.f32 %v1712, %v1818
    %s1823 = scalar_lea.vmem %s29, 64
    %v1824 = vld [vmem:[%s1823] sm:$0xf]
    %v1825 = vld [vmem:[%s1823 + $0x4] sm:$0xf]
    %v1826 = vld [vmem:[%s1823 + $0x8] sm:$0xf]
    %v1827 = vld [vmem:[%s1823 + $0xc] sm:$0xf]
    %v1828 = vld [vmem:[%s1823 + $0x10] sm:$0xf]
    %v1829 = vld [vmem:[%s1823 + $0x14] sm:$0xf]
    %v1830 = vld [vmem:[%s1823 + $0x18] sm:$0xf]
    %v1831 = vld [vmem:[%s1823 + $0x1c] sm:$0xf]
    %v1832 = vld [vmem:[%s1823 + $0x20] sm:$0xf]
    %v1833 = vld [vmem:[%s1823 + $0x24] sm:$0xf]
    %v1834 = vld [vmem:[%s1823 + $0x28] sm:$0xf]
    %v1835 = vld [vmem:[%s1823 + $0x2c] sm:$0xf]
    %v1836 = vld [vmem:[%s1823 + $0x30] sm:$0xf]
    %v1837 = vld [vmem:[%s1823 + $0x34] sm:$0xf]
    %v1838 = vld [vmem:[%s1823 + $0x38] sm:$0xf]
    %v1839 = vld [vmem:[%s1823 + $0x3c] sm:$0xf]
    %s1840 = scalar_lea.vmem %s29, 192
    %v1841 = vld [vmem:[%s1840] sm:$0xf]
    %v1842 = vld [vmem:[%s1840 + $0x4] sm:$0xf]
    %v1843 = vld [vmem:[%s1840 + $0x8] sm:$0xf]
    %v1844 = vld [vmem:[%s1840 + $0xc] sm:$0xf]
    %v1845 = vld [vmem:[%s1840 + $0x10] sm:$0xf]
    %v1846 = vld [vmem:[%s1840 + $0x14] sm:$0xf]
    %v1847 = vld [vmem:[%s1840 + $0x18] sm:$0xf]
    %v1848 = vld [vmem:[%s1840 + $0x1c] sm:$0xf]
    %v1849 = vld [vmem:[%s1840 + $0x20] sm:$0xf]
    %v1850 = vld [vmem:[%s1840 + $0x24] sm:$0xf]
    %v1851 = vld [vmem:[%s1840 + $0x28] sm:$0xf]
    %v1852 = vld [vmem:[%s1840 + $0x2c] sm:$0xf]
    %v1853 = vld [vmem:[%s1840 + $0x30] sm:$0xf]
    %v1854 = vld [vmem:[%s1840 + $0x34] sm:$0xf]
    %v1855 = vld [vmem:[%s1840 + $0x38] sm:$0xf]
    %v1856 = vld [vmem:[%s1840 + $0x3c] sm:$0xf]
    %v1873 = vunpack.c.l.b16 %v1841
    %v1874 = vunpack.c.l.b16 %v1842
    %v1875 = vunpack.c.l.b16 %v1843
    %v1876 = vunpack.c.l.b16 %v1844
    %v1877 = vunpack.c.l.b16 %v1845
    %v1878 = vunpack.c.l.b16 %v1846
    %v1879 = vunpack.c.l.b16 %v1847
    %v1880 = vunpack.c.l.b16 %v1848
    %v1881 = vunpack.c.l.b16 %v1849
    %v1882 = vunpack.c.l.b16 %v1850
    %v1883 = vunpack.c.l.b16 %v1851
    %v1884 = vunpack.c.l.b16 %v1852
    %v1885 = vunpack.c.l.b16 %v1853
    %v1886 = vunpack.c.l.b16 %v1854
    %v1887 = vunpack.c.l.b16 %v1855
    %v1888 = vunpack.c.l.b16 %v1856
    %v1889 = vpack.c.b16 %v1874, %v1873
    %v1890 = vpack.c.b16 %v1876, %v1875
    %v1891 = vpack.c.b16 %v1878, %v1877
    %v1892 = vpack.c.b16 %v1880, %v1879
    %v1893 = vpack.c.b16 %v1882, %v1881
    %v1894 = vpack.c.b16 %v1884, %v1883
    %v1895 = vpack.c.b16 %v1886, %v1885
    %v1896 = vpack.c.b16 %v1888, %v1887
    %1905 = vmatprep.subr.bf16.mxu0 0
    %1906 = vmatpush1.bf16.msra.mxu0 %v1889
    %1907 = vmatprep.subr.bf16.mxu0 0
    %1908 = vmatpush1.bf16.msra.mxu0 %v1890
    %1909 = vmatprep.subr.bf16.mxu0 0
    %1910 = vmatpush1.bf16.msra.mxu0 %v1891
    %1911 = vmatprep.subr.bf16.mxu0 0
    %1912 = vmatpush1.bf16.msra.mxu0 %v1892
    %1913 = vmatprep.subr.bf16.mxu0 0
    %1914 = vmatpush1.bf16.msra.mxu0 %v1893
    %1915 = vmatprep.subr.bf16.mxu0 0
    %1916 = vmatpush1.bf16.msra.mxu0 %v1894
    %1917 = vmatprep.subr.bf16.mxu0 0
    %1918 = vmatpush1.bf16.msra.mxu0 %v1895
    %1919 = vmatprep.subr.bf16.mxu0 0
    %1920 = vmatpush1.bf16.msra.mxu0 %v1896
    %1921 = vmatprep.subr.bf16.mxu0 0
    %1922 = vmatpush1.bf16.msra.mxu0 0
    %1923 = vmatprep.subr.bf16.mxu0 0
    %1924 = vmatpush1.bf16.msra.mxu0 0
    %1925 = vmatprep.subr.bf16.mxu0 0
    %1926 = vmatpush1.bf16.msra.mxu0 0
    %1927 = vmatprep.subr.bf16.mxu0 0
    %1928 = vmatpush1.bf16.msra.mxu0 0
    %1929 = vmatprep.subr.bf16.mxu0 0
    %1930 = vmatpush1.bf16.msra.mxu0 0
    %1931 = vmatprep.subr.bf16.mxu0 0
    %1932 = vmatpush1.bf16.msra.mxu0 0
    %1933 = vmatprep.subr.bf16.mxu0 0
    %1934 = vmatpush1.bf16.msra.mxu0 0
    %1935 = vmatprep.subr.bf16.mxu0 0
    %1936 = vmatpush1.bf16.msra.mxu0 0
    %1937 = vmatprep.mubr.bf16.mxu0 0
    %1938 = vmatmul.mubr.bf16.gmra.mrb[0].mxu0 %v1484
    %v1939 = vpop.f32.mrb[0].mxu0
    %v1940 = vadd.f32 0.0, %v1939
    %v1941 = vpop.f32.mrb[0].mxu0
    %v1942 = vpop.f32.mrb[0].mxu0
    %v1943 = vadd.f32 0.0, %v1942
    %v1944 = vpop.f32.mrb[0].mxu0
    %1945 = vdwg.mxu0
    %v1962 = vunpack.c.l.b16 %v1824
    %v1963 = vunpack.c.l.b16 %v1825
    %v1964 = vunpack.c.l.b16 %v1826
    %v1965 = vunpack.c.l.b16 %v1827
    %v1966 = vunpack.c.l.b16 %v1828
    %v1967 = vunpack.c.l.b16 %v1829
    %v1968 = vunpack.c.l.b16 %v1830
    %v1969 = vunpack.c.l.b16 %v1831
    %v1970 = vunpack.c.l.b16 %v1832
    %v1971 = vunpack.c.l.b16 %v1833
    %v1972 = vunpack.c.l.b16 %v1834
    %v1973 = vunpack.c.l.b16 %v1835
    %v1974 = vunpack.c.l.b16 %v1836
    %v1975 = vunpack.c.l.b16 %v1837
    %v1976 = vunpack.c.l.b16 %v1838
    %v1977 = vunpack.c.l.b16 %v1839
    %v1978 = vpack.c.b16 %v1963, %v1962
    %v1979 = vpack.c.b16 %v1965, %v1964
    %v1980 = vpack.c.b16 %v1967, %v1966
    %v1981 = vpack.c.b16 %v1969, %v1968
    %v1982 = vpack.c.b16 %v1971, %v1970
    %v1983 = vpack.c.b16 %v1973, %v1972
    %v1984 = vpack.c.b16 %v1975, %v1974
    %v1985 = vpack.c.b16 %v1977, %v1976
    %1994 = vmatprep.subr.bf16.mxu0 0
    %1995 = vmatpush1.bf16.msra.mxu0 %v1978
    %1996 = vmatprep.subr.bf16.mxu0 0
    %1997 = vmatpush1.bf16.msra.mxu0 %v1979
    %1998 = vmatprep.subr.bf16.mxu0 0
    %1999 = vmatpush1.bf16.msra.mxu0 %v1980
    %2000 = vmatprep.subr.bf16.mxu0 0
    %2001 = vmatpush1.bf16.msra.mxu0 %v1981
    %2002 = vmatprep.subr.bf16.mxu0 0
    %2003 = vmatpush1.bf16.msra.mxu0 %v1982
    %2004 = vmatprep.subr.bf16.mxu0 0
    %2005 = vmatpush1.bf16.msra.mxu0 %v1983
    %2006 = vmatprep.subr.bf16.mxu0 0
    %2007 = vmatpush1.bf16.msra.mxu0 %v1984
    %2008 = vmatprep.subr.bf16.mxu0 0
    %2009 = vmatpush1.bf16.msra.mxu0 %v1985
    %2010 = vmatprep.subr.bf16.mxu0 0
    %2011 = vmatpush1.bf16.msra.mxu0 0
    %2012 = vmatprep.subr.bf16.mxu0 0
    %2013 = vmatpush1.bf16.msra.mxu0 0
    %2014 = vmatprep.subr.bf16.mxu0 0
    %2015 = vmatpush1.bf16.msra.mxu0 0
    %2016 = vmatprep.subr.bf16.mxu0 0
    %2017 = vmatpush1.bf16.msra.mxu0 0
    %2018 = vmatprep.subr.bf16.mxu0 0
    %2019 = vmatpush1.bf16.msra.mxu0 0
    %2020 = vmatprep.subr.bf16.mxu0 0
    %2021 = vmatpush1.bf16.msra.mxu0 0
    %2022 = vmatprep.subr.bf16.mxu0 0
    %2023 = vmatpush1.bf16.msra.mxu0 0
    %2024 = vmatprep.subr.bf16.mxu0 0
    %2025 = vmatpush1.bf16.msra.mxu0 0
    %2026 = vmatprep.mubr.bf16.mxu0 0
    %2027 = vmatmul.mubr.bf16.gmra.mrb[0].mxu0 %v1483
    %v2028 = vpop.f32.mrb[0].mxu0
    %v2029 = vadd.f32 %v1940, %v2028
    %v2030 = vpop.f32.mrb[0].mxu0
    %v2031 = vpop.f32.mrb[0].mxu0
    %v2032 = vadd.f32 %v1943, %v2031
    %v2033 = vpop.f32.mrb[0].mxu0
    %2034 = vdwg.mxu0
    %s2035 = scalar_lea.vmem %s29, 320
    %v2036 = vld [vmem:[%s2035] sm:$0xf]
    %v2037 = vld [vmem:[%s2035 + $0x4] sm:$0xf]
    %v2038 = vld [vmem:[%s2035 + $0x8] sm:$0xf]
    %v2039 = vld [vmem:[%s2035 + $0xc] sm:$0xf]
    %v2040 = vld [vmem:[%s2035 + $0x10] sm:$0xf]
    %v2041 = vld [vmem:[%s2035 + $0x14] sm:$0xf]
    %v2042 = vld [vmem:[%s2035 + $0x18] sm:$0xf]
    %v2043 = vld [vmem:[%s2035 + $0x1c] sm:$0xf]
    %v2044 = vld [vmem:[%s2035 + $0x20] sm:$0xf]
    %v2045 = vld [vmem:[%s2035 + $0x24] sm:$0xf]
    %v2046 = vld [vmem:[%s2035 + $0x28] sm:$0xf]
    %v2047 = vld [vmem:[%s2035 + $0x2c] sm:$0xf]
    %v2048 = vld [vmem:[%s2035 + $0x30] sm:$0xf]
    %v2049 = vld [vmem:[%s2035 + $0x34] sm:$0xf]
    %v2050 = vld [vmem:[%s2035 + $0x38] sm:$0xf]
    %v2051 = vld [vmem:[%s2035 + $0x3c] sm:$0xf]
    %v2068 = vunpack.c.l.b16 %v2036
    %v2069 = vunpack.c.l.b16 %v2037
    %v2070 = vunpack.c.l.b16 %v2038
    %v2071 = vunpack.c.l.b16 %v2039
    %v2072 = vunpack.c.l.b16 %v2040
    %v2073 = vunpack.c.l.b16 %v2041
    %v2074 = vunpack.c.l.b16 %v2042
    %v2075 = vunpack.c.l.b16 %v2043
    %v2076 = vunpack.c.l.b16 %v2044
    %v2077 = vunpack.c.l.b16 %v2045
    %v2078 = vunpack.c.l.b16 %v2046
    %v2079 = vunpack.c.l.b16 %v2047
    %v2080 = vunpack.c.l.b16 %v2048
    %v2081 = vunpack.c.l.b16 %v2049
    %v2082 = vunpack.c.l.b16 %v2050
    %v2083 = vunpack.c.l.b16 %v2051
    %v2084 = vpack.c.b16 %v2069, %v2068
    %v2085 = vpack.c.b16 %v2071, %v2070
    %v2086 = vpack.c.b16 %v2073, %v2072
    %v2087 = vpack.c.b16 %v2075, %v2074
    %v2088 = vpack.c.b16 %v2077, %v2076
    %v2089 = vpack.c.b16 %v2079, %v2078
    %v2090 = vpack.c.b16 %v2081, %v2080
    %v2091 = vpack.c.b16 %v2083, %v2082
    %2100 = vmatprep.subr.bf16.mxu0 0
    %2101 = vmatpush1.bf16.msra.mxu0 %v2084
    %2102 = vmatprep.subr.bf16.mxu0 0
    %2103 = vmatpush1.bf16.msra.mxu0 %v2085
    %2104 = vmatprep.subr.bf16.mxu0 0
    %2105 = vmatpush1.bf16.msra.mxu0 %v2086
    %2106 = vmatprep.subr.bf16.mxu0 0
    %2107 = vmatpush1.bf16.msra.mxu0 %v2087
    %2108 = vmatprep.subr.bf16.mxu0 0
    %2109 = vmatpush1.bf16.msra.mxu0 %v2088
    %2110 = vmatprep.subr.bf16.mxu0 0
    %2111 = vmatpush1.bf16.msra.mxu0 %v2089
    %2112 = vmatprep.subr.bf16.mxu0 0
    %2113 = vmatpush1.bf16.msra.mxu0 %v2090
    %2114 = vmatprep.subr.bf16.mxu0 0
    %2115 = vmatpush1.bf16.msra.mxu0 %v2091
    %2116 = vmatprep.subr.bf16.mxu0 0
    %2117 = vmatpush1.bf16.msra.mxu0 0
    %2118 = vmatprep.subr.bf16.mxu0 0
    %2119 = vmatpush1.bf16.msra.mxu0 0
    %2120 = vmatprep.subr.bf16.mxu0 0
    %2121 = vmatpush1.bf16.msra.mxu0 0
    %2122 = vmatprep.subr.bf16.mxu0 0
    %2123 = vmatpush1.bf16.msra.mxu0 0
    %2124 = vmatprep.subr.bf16.mxu0 0
    %2125 = vmatpush1.bf16.msra.mxu0 0
    %2126 = vmatprep.subr.bf16.mxu0 0
    %2127 = vmatpush1.bf16.msra.mxu0 0
    %2128 = vmatprep.subr.bf16.mxu0 0
    %2129 = vmatpush1.bf16.msra.mxu0 0
    %2130 = vmatprep.subr.bf16.mxu0 0
    %2131 = vmatpush1.bf16.msra.mxu0 0
    %2132 = vmatprep.mubr.bf16.mxu0 0
    %2133 = vmatmul.mubr.bf16.gmra.mrb[0].mxu0 %v1503
    %v2134 = vpop.f32.mrb[0].mxu0
    %v2135 = vadd.f32 0.0, %v2134
    %v2136 = vpop.f32.mrb[0].mxu0
    %v2137 = vpop.f32.mrb[0].mxu0
    %v2138 = vadd.f32 0.0, %v2137
    %v2139 = vpop.f32.mrb[0].mxu0
    %2140 = vdwg.mxu0
    %v2141 = vadd.f32 %v2029, %v2135
    %v2142 = vadd.f32 %v2032, %v2138
    %v2143 = vmax.f32 %v1821, %v2141
    %v2144 = vmax.f32 %v1822, %v2142
    %v2147 = vrot.slane %v2143, 1
    %v2148 = vrot.slane %v2144, 1
    %v2149 = vsel %vm400, %v2147, %v2148
    %v2152 = vsel %vm400, %v2148, %v2144
    %v2153 = vmax.f32 %v2143, %v2149
    %v2154 = vmax.f32 %v2144, %v2152
    %v2156 = vlaneseq
    %v2157 = vshrl.u32 %v2156, 7
    %v2158 = vsub.s32 0, %v2157
    %v2159 = vrot.slane %v1278, %v2158
    %vm2161 = vcmask 130048
    %v2163 = vsel %vm2161, %v1279, 0
    %2165 = vmatprep.subr.mxu0 0.0
    %2166 = vmatpush1.msra.mxu0 %v2153
    %2167 = vmatprep.subr.mxu0 0.0
    %2168 = vmatpush1.msra.mxu0 %v2154
    %2169 = vmatprep.subr.mxu0 0.0
    %2170 = vmatpush1.msra.mxu0 0.0
    %2171 = vmatprep.subr.mxu0 0.0
    %2172 = vmatpush1.msra.mxu0 0.0
    %2173 = vmatprep.subr.mxu0 0.0
    %2174 = vmatpush1.msra.mxu0 0.0
    %2175 = vmatprep.subr.mxu0 0.0
    %2176 = vmatpush1.msra.mxu0 0.0
    %2177 = vmatprep.subr.mxu0 0.0
    %2178 = vmatpush1.msra.mxu0 0.0
    %2179 = vmatprep.subr.mxu0 0.0
    %2180 = vmatpush1.msra.mxu0 0.0
    %2181 = vmatprep.subr.mxu0 0.0
    %2182 = vmatpush1.msra.mxu0 0.0
    %2183 = vmatprep.subr.mxu0 0.0
    %2184 = vmatpush1.msra.mxu0 0.0
    %2185 = vmatprep.subr.mxu0 0.0
    %2186 = vmatpush1.msra.mxu0 0.0
    %2187 = vmatprep.subr.mxu0 0.0
    %2188 = vmatpush1.msra.mxu0 0.0
    %2189 = vmatprep.subr.mxu0 0.0
    %2190 = vmatpush1.msra.mxu0 0.0
    %2191 = vmatprep.subr.mxu0 0.0
    %2192 = vmatpush1.msra.mxu0 0.0
    %2193 = vmatprep.subr.mxu0 0.0
    %2194 = vmatpush1.msra.mxu0 0.0
    %2195 = vmatprep.subr.mxu0 0.0
    %2196 = vmatpush1.msra.mxu0 0.0
    %2197 = vmatprep.subr.mxu0 0.0
    %2198 = vmatpush1.msra.mxu0 0.0
    %2199 = vmatprep.subr.mxu0 0.0
    %2200 = vmatpush1.msra.mxu0 0.0
    %2201 = vmatprep.subr.mxu0 0.0
    %2202 = vmatpush1.msra.mxu0 0.0
    %2203 = vmatprep.subr.mxu0 0.0
    %2204 = vmatpush1.msra.mxu0 0.0
    %2205 = vmatprep.subr.mxu0 0.0
    %2206 = vmatpush1.msra.mxu0 0.0
    %2207 = vmatprep.subr.mxu0 0.0
    %2208 = vmatpush1.msra.mxu0 0.0
    %2209 = vmatprep.subr.mxu0 0.0
    %2210 = vmatpush1.msra.mxu0 0.0
    %2211 = vmatprep.subr.mxu0 0.0
    %2212 = vmatpush1.msra.mxu0 0.0
    %2213 = vmatprep.subr.mxu0 0.0
    %2214 = vmatpush1.msra.mxu0 0.0
    %2215 = vmatprep.subr.mxu0 0.0
    %2216 = vmatpush1.msra.mxu0 0.0
    %2217 = vmatprep.subr.mxu0 0.0
    %2218 = vmatpush1.msra.mxu0 0.0
    %2219 = vmatprep.subr.mxu0 0.0
    %2220 = vmatpush1.msra.mxu0 0.0
    %2221 = vmatprep.subr.mxu0 0.0
    %2222 = vmatpush1.msra.mxu0 0.0
    %2223 = vmatprep.subr.mxu0 0.0
    %2224 = vmatpush1.msra.mxu0 0.0
    %2225 = vmatprep.subr.mxu0 0.0
    %2226 = vmatpush1.msra.mxu0 0.0
    %2227 = vmatprep.subr.mxu0 0.0
    %2228 = vmatpush1.msra.mxu0 0.0
    %2229 = vmatprep.mubr.f32.mxu0 0.0
    %2230 = vmatmul.mubr.f32.gmra.mrb[0].mxu0 %v2163
    %v2231 = vpop.f32.mrb[0].mxu0
    %v2232 = vadd.f32 %v2159, %v2231
    %v2233 = vpop.f32.mrb[0].mxu0
    %2234 = vdwg.mxu0
    %vm2235 = vcmp.gt.f32.partialorder %v2232, 0.0
    %v2236 = vmin.f32 %v2232, 0.0
    %v2237 = vmul.f32 %v2236, 1.442695
    %v2238 = vpow.pop %v2237
    %v2239 = vsub.f32 %v2238, 1.0
    %v2240 = vsel %vm2235, %v2232, %v2239
    %2241 = vst [vmem:[%s59] sm:$0xff] %v2240
    %v2242 = vld [vmem:[%s35] sm:$0x1]
    %v2243 = vld [vmem:[%s37] sm:$0x1]
    %v2244 = vld [vmem:[%s39] sm:$0xff]
    %v2245 = vld [vmem:[%s39 + $0x8] sm:$0xff]
    %v2246 = vld [vmem:[%s39 + $0x10] sm:$0xff]
    %v2247 = vld [vmem:[%s39 + $0x18] sm:$0xff]
    %v2248 = vld [vmem:[%s39 + $0x20] sm:$0xff]
    %v2249 = vld [vmem:[%s39 + $0x28] sm:$0xff]
    %v2250 = vld [vmem:[%s39 + $0x30] sm:$0xff]
    %v2251 = vld [vmem:[%s39 + $0x38] sm:$0xff]
    %v2252 = vld [vmem:[%s39 + $0x40] sm:$0xff]
    %v2253 = vld [vmem:[%s39 + $0x48] sm:$0xff]
    %v2254 = vld [vmem:[%s39 + $0x50] sm:$0xff]
    %v2255 = vld [vmem:[%s39 + $0x58] sm:$0xff]
    %v2256 = vld [vmem:[%s39 + $0x60] sm:$0xff]
    %v2257 = vld [vmem:[%s39 + $0x68] sm:$0xff]
    %v2258 = vld [vmem:[%s39 + $0x70] sm:$0xff]
    %v2259 = vld [vmem:[%s39 + $0x78] sm:$0xff]
    %v2260 = vld [vmem:[%s41] sm:$0xff]
    %v2261 = vld [vmem:[%s43] sm:$0xff]
    %v2262 = vld [vmem:[%s47] sm:$0x1]
    %v2263 = vld [vmem:[%s49] sm:$0xf]
    %v2264 = vrot.slane %v2240, 4
    %v2265 = vadd.f32 %v2240, %v2264
    %v2266 = vrot.slane %v2265, 2
    %v2267 = vadd.f32 %v2265, %v2266
    %v2268 = vrot.slane %v2267, 1
    %v2269 = vadd.f32 %v2267, %v2268
    %2270 = vmatprep.subr.mxu0 0.0
    %2271 = vmatpush1.msra.mxu0 %v2244
    %2272 = vmatprep.subr.mxu0 0.0
    %2273 = vmatpush1.msra.mxu0 %v2245
    %2274 = vmatprep.subr.mxu0 0.0
    %2275 = vmatpush1.msra.mxu0 %v2246
    %2276 = vmatprep.subr.mxu0 0.0
    %2277 = vmatpush1.msra.mxu0 %v2247
    %2278 = vmatprep.subr.mxu0 0.0
    %2279 = vmatpush1.msra.mxu0 %v2248
    %2280 = vmatprep.subr.mxu0 0.0
    %2281 = vmatpush1.msra.mxu0 %v2249
    %2282 = vmatprep.subr.mxu0 0.0
    %2283 = vmatpush1.msra.mxu0 %v2250
    %2284 = vmatprep.subr.mxu0 0.0
    %2285 = vmatpush1.msra.mxu0 %v2251
    %2286 = vmatprep.subr.mxu0 0.0
    %2287 = vmatpush1.msra.mxu0 %v2252
    %2288 = vmatprep.subr.mxu0 0.0
    %2289 = vmatpush1.msra.mxu0 %v2253
    %2290 = vmatprep.subr.mxu0 0.0
    %2291 = vmatpush1.msra.mxu0 %v2254
    %2292 = vmatprep.subr.mxu0 0.0
    %2293 = vmatpush1.msra.mxu0 %v2255
    %2294 = vmatprep.subr.mxu0 0.0
    %2295 = vmatpush1.msra.mxu0 %v2256
    %2296 = vmatprep.subr.mxu0 0.0
    %2297 = vmatpush1.msra.mxu0 %v2257
    %2298 = vmatprep.subr.mxu0 0.0
    %2299 = vmatpush1.msra.mxu0 %v2258
    %2300 = vmatprep.subr.mxu0 0.0
    %2301 = vmatpush1.msra.mxu0 %v2259
    %2302 = vmatprep.subr.mxu0 0.0
    %2303 = vmatpush1.msra.mxu0 0.0
    %2304 = vmatprep.subr.mxu0 0.0
    %2305 = vmatpush1.msra.mxu0 0.0
    %2306 = vmatprep.subr.mxu0 0.0
    %2307 = vmatpush1.msra.mxu0 0.0
    %2308 = vmatprep.subr.mxu0 0.0
    %2309 = vmatpush1.msra.mxu0 0.0
    %2310 = vmatprep.subr.mxu0 0.0
    %2311 = vmatpush1.msra.mxu0 0.0
    %2312 = vmatprep.subr.mxu0 0.0
    %2313 = vmatpush1.msra.mxu0 0.0
    %2314 = vmatprep.subr.mxu0 0.0
    %2315 = vmatpush1.msra.mxu0 0.0
    %2316 = vmatprep.subr.mxu0 0.0
    %2317 = vmatpush1.msra.mxu0 0.0
    %2318 = vmatprep.subr.mxu0 0.0
    %2319 = vmatpush1.msra.mxu0 0.0
    %2320 = vmatprep.subr.mxu0 0.0
    %2321 = vmatpush1.msra.mxu0 0.0
    %2322 = vmatprep.subr.mxu0 0.0
    %2323 = vmatpush1.msra.mxu0 0.0
    %2324 = vmatprep.subr.mxu0 0.0
    %2325 = vmatpush1.msra.mxu0 0.0
    %2326 = vmatprep.subr.mxu0 0.0
    %2327 = vmatpush1.msra.mxu0 0.0
    %2328 = vmatprep.subr.mxu0 0.0
    %2329 = vmatpush1.msra.mxu0 0.0
    %2330 = vmatprep.subr.mxu0 0.0
    %2331 = vmatpush1.msra.mxu0 0.0
    %2332 = vmatprep.subr.mxu0 0.0
    %2333 = vmatpush1.msra.mxu0 0.0
    %2334 = vmatprep.mubr.f32.mxu0 0.0
    %2335 = vmatmul.mubr.f32.gmra.mrb[0].mxu0 %v2269
    %v2336 = vpop.f32.mrb[0].mxu0
    %v2337 = vadd.f32 0.0, %v2336
    %v2338 = vpop.f32.mrb[0].mxu0
    %2339 = vdwg.mxu0
    %v2340 = vmul.f32 %v2337, 0.03125
    %v2341 = vlaneseq
    %v2342 = vshrl.u32 %v2341, 7
    %v2343 = vsub.s32 0, %v2342
    %v2344 = vrot.slane %v2340, %v2343
    %v2345 = vsub.f32 %v2240, %v2344
    %v2346 = vmul.f32 %v2345, %v2345
    %v2347 = vrot.slane %v2346, 4
    %v2348 = vadd.f32 %v2346, %v2347
    %v2349 = vrot.slane %v2348, 2
    %v2350 = vadd.f32 %v2348, %v2349
    %v2351 = vrot.slane %v2350, 1
    %v2352 = vadd.f32 %v2350, %v2351
    %2353 = vmatprep.subr.mxu0 0.0
    %2354 = vmatpush1.msra.mxu0 %v2244
    %2355 = vmatprep.subr.mxu0 0.0
    %2356 = vmatpush1.msra.mxu0 %v2245
    %2357 = vmatprep.subr.mxu0 0.0
    %2358 = vmatpush1.msra.mxu0 %v2246
    %2359 = vmatprep.subr.mxu0 0.0
    %2360 = vmatpush1.msra.mxu0 %v2247
    %2361 = vmatprep.subr.mxu0 0.0
    %2362 = vmatpush1.msra.mxu0 %v2248
    %2363 = vmatprep.subr.mxu0 0.0
    %2364 = vmatpush1.msra.mxu0 %v2249
    %2365 = vmatprep.subr.mxu0 0.0
    %2366 = vmatpush1.msra.mxu0 %v2250
    %2367 = vmatprep.subr.mxu0 0.0
    %2368 = vmatpush1.msra.mxu0 %v2251
    %2369 = vmatprep.subr.mxu0 0.0
    %2370 = vmatpush1.msra.mxu0 %v2252
    %2371 = vmatprep.subr.mxu0 0.0
    %2372 = vmatpush1.msra.mxu0 %v2253
    %2373 = vmatprep.subr.mxu0 0.0
    %2374 = vmatpush1.msra.mxu0 %v2254
    %2375 = vmatprep.subr.mxu0 0.0
    %2376 = vmatpush1.msra.mxu0 %v2255
    %2377 = vmatprep.subr.mxu0 0.0
    %2378 = vmatpush1.msra.mxu0 %v2256
    %2379 = vmatprep.subr.mxu0 0.0
    %2380 = vmatpush1.msra.mxu0 %v2257
    %2381 = vmatprep.subr.mxu0 0.0
    %2382 = vmatpush1.msra.mxu0 %v2258
    %2383 = vmatprep.subr.mxu0 0.0
    %2384 = vmatpush1.msra.mxu0 %v2259
    %2385 = vmatprep.subr.mxu0 0.0
    %2386 = vmatpush1.msra.mxu0 0.0
    %2387 = vmatprep.subr.mxu0 0.0
    %2388 = vmatpush1.msra.mxu0 0.0
    %2389 = vmatprep.subr.mxu0 0.0
    %2390 = vmatpush1.msra.mxu0 0.0
    %2391 = vmatprep.subr.mxu0 0.0
    %2392 = vmatpush1.msra.mxu0 0.0
    %2393 = vmatprep.subr.mxu0 0.0
    %2394 = vmatpush1.msra.mxu0 0.0
    %2395 = vmatprep.subr.mxu0 0.0
    %2396 = vmatpush1.msra.mxu0 0.0
    %2397 = vmatprep.subr.mxu0 0.0
    %2398 = vmatpush1.msra.mxu0 0.0
    %2399 = vmatprep.subr.mxu0 0.0
    %2400 = vmatpush1.msra.mxu0 0.0
    %2401 = vmatprep.subr.mxu0 0.0
    %2402 = vmatpush1.msra.mxu0 0.0
    %2403 = vmatprep.subr.mxu0 0.0
    %2404 = vmatpush1.msra.mxu0 0.0
    %2405 = vmatprep.subr.mxu0 0.0
    %2406 = vmatpush1.msra.mxu0 0.0
    %2407 = vmatprep.subr.mxu0 0.0
    %2408 = vmatpush1.msra.mxu0 0.0
    %2409 = vmatprep.subr.mxu0 0.0
    %2410 = vmatpush1.msra.mxu0 0.0
    %2411 = vmatprep.subr.mxu0 0.0
    %2412 = vmatpush1.msra.mxu0 0.0
    %2413 = vmatprep.subr.mxu0 0.0
    %2414 = vmatpush1.msra.mxu0 0.0
    %2415 = vmatprep.subr.mxu0 0.0
    %2416 = vmatpush1.msra.mxu0 0.0
    %2417 = vmatprep.mubr.f32.mxu0 0.0
    %2418 = vmatmul.mubr.f32.gmra.mrb[0].mxu0 %v2352
    %v2419 = vpop.f32.mrb[0].mxu0
    %v2420 = vadd.f32 0.0, %v2419
    %v2421 = vpop.f32.mrb[0].mxu0
    %2422 = vdwg.mxu0
    %v2423 = vmul.f32 %v2420, 0.03125
    %v2424 = vadd.f32 %v2423, 1e-05
    %v2425 = vrsqrt.pop %v2424
    %v2426 = vmul.f32 %v2242, %v2425
    %v2428 = vlaneseq
    %v2429 = vshrl.u32 %v2428, 7
    %v2430 = vsub.s32 0, %v2429
    %v2431 = vrot.slane %v2426, %v2430
    %v2433 = vmul.f32 %v2345, %v2431
    %v2435 = vlaneseq
    %v2436 = vshrl.u32 %v2435, 7
    %v2437 = vsub.s32 0, %v2436
    %v2438 = vrot.slane %v2243, %v2437
    %v2440 = vadd.f32 %v2433, %v2438
    %v2442 = vrot.slane %v2440, 7
    %v2444 = vsel %vm359, 0.0, %v2442
    %2446 = vset.pattern.permute.xlu0 0
    %2447 = vperm.xlu0 %2446, %v2260
    %v2448 = vpop.permute.xlu0 %2447
    %v2450 = vmul.f32 %v2444, %v2448
    %v2451 = vpack.c.bf16 %v2450, %v2450
    %v2452 = vpack.c.bf16 %v2440, %v2440
    %v2453 = vrot.slane %v2440, 1
    %v2455 = vsel %vm400, %v2453, 0.0
    %2457 = vset.pattern.permute.xlu0 0
    %2458 = vperm.xlu0 %2457, %v2261
    %v2459 = vpop.permute.xlu0 %2458
    %v2461 = vmul.f32 %v2455, %v2459
    %v2462 = vpack.c.bf16 %v2461, %v2461
    %v2463 = vld [vmem:[%s45] sm:$0xf]
    %v2464 = vld [vmem:[%s45 + $0x4] sm:$0xf]
    %v2465 = vld [vmem:[%s45 + $0x8] sm:$0xf]
    %v2466 = vld [vmem:[%s45 + $0xc] sm:$0xf]
    %v2467 = vld [vmem:[%s45 + $0x10] sm:$0xf]
    %v2468 = vld [vmem:[%s45 + $0x14] sm:$0xf]
    %v2469 = vld [vmem:[%s45 + $0x18] sm:$0xf]
    %v2470 = vld [vmem:[%s45 + $0x1c] sm:$0xf]
    %v2471 = vld [vmem:[%s45 + $0x20] sm:$0xf]
    %v2472 = vld [vmem:[%s45 + $0x24] sm:$0xf]
    %v2473 = vld [vmem:[%s45 + $0x28] sm:$0xf]
    %v2474 = vld [vmem:[%s45 + $0x2c] sm:$0xf]
    %v2475 = vld [vmem:[%s45 + $0x30] sm:$0xf]
    %v2476 = vld [vmem:[%s45 + $0x34] sm:$0xf]
    %v2477 = vld [vmem:[%s45 + $0x38] sm:$0xf]
    %v2478 = vld [vmem:[%s45 + $0x3c] sm:$0xf]
    %s2479 = scalar_lea.vmem %s45, 128
    %v2480 = vld [vmem:[%s2479] sm:$0xf]
    %v2481 = vld [vmem:[%s2479 + $0x4] sm:$0xf]
    %v2482 = vld [vmem:[%s2479 + $0x8] sm:$0xf]
    %v2483 = vld [vmem:[%s2479 + $0xc] sm:$0xf]
    %v2484 = vld [vmem:[%s2479 + $0x10] sm:$0xf]
    %v2485 = vld [vmem:[%s2479 + $0x14] sm:$0xf]
    %v2486 = vld [vmem:[%s2479 + $0x18] sm:$0xf]
    %v2487 = vld [vmem:[%s2479 + $0x1c] sm:$0xf]
    %v2488 = vld [vmem:[%s2479 + $0x20] sm:$0xf]
    %v2489 = vld [vmem:[%s2479 + $0x24] sm:$0xf]
    %v2490 = vld [vmem:[%s2479 + $0x28] sm:$0xf]
    %v2491 = vld [vmem:[%s2479 + $0x2c] sm:$0xf]
    %v2492 = vld [vmem:[%s2479 + $0x30] sm:$0xf]
    %v2493 = vld [vmem:[%s2479 + $0x34] sm:$0xf]
    %v2494 = vld [vmem:[%s2479 + $0x38] sm:$0xf]
    %v2495 = vld [vmem:[%s2479 + $0x3c] sm:$0xf]
    %v2512 = vunpack.c.l.b16 %v2480
    %v2513 = vunpack.c.l.b16 %v2481
    %v2514 = vunpack.c.l.b16 %v2482
    %v2515 = vunpack.c.l.b16 %v2483
    %v2516 = vunpack.c.l.b16 %v2484
    %v2517 = vunpack.c.l.b16 %v2485
    %v2518 = vunpack.c.l.b16 %v2486
    %v2519 = vunpack.c.l.b16 %v2487
    %v2520 = vunpack.c.l.b16 %v2488
    %v2521 = vunpack.c.l.b16 %v2489
    %v2522 = vunpack.c.l.b16 %v2490
    %v2523 = vunpack.c.l.b16 %v2491
    %v2524 = vunpack.c.l.b16 %v2492
    %v2525 = vunpack.c.l.b16 %v2493
    %v2526 = vunpack.c.l.b16 %v2494
    %v2527 = vunpack.c.l.b16 %v2495
    %v2528 = vpack.c.b16 %v2513, %v2512
    %v2529 = vpack.c.b16 %v2515, %v2514
    %v2530 = vpack.c.b16 %v2517, %v2516
    %v2531 = vpack.c.b16 %v2519, %v2518
    %v2532 = vpack.c.b16 %v2521, %v2520
    %v2533 = vpack.c.b16 %v2523, %v2522
    %v2534 = vpack.c.b16 %v2525, %v2524
    %v2535 = vpack.c.b16 %v2527, %v2526
    %2544 = vmatprep.subr.bf16.mxu0 0
    %2545 = vmatpush1.bf16.msra.mxu0 %v2528
    %2546 = vmatprep.subr.bf16.mxu0 0
    %2547 = vmatpush1.bf16.msra.mxu0 %v2529
    %2548 = vmatprep.subr.bf16.mxu0 0
    %2549 = vmatpush1.bf16.msra.mxu0 %v2530
    %2550 = vmatprep.subr.bf16.mxu0 0
    %2551 = vmatpush1.bf16.msra.mxu0 %v2531
    %2552 = vmatprep.subr.bf16.mxu0 0
    %2553 = vmatpush1.bf16.msra.mxu0 %v2532
    %2554 = vmatprep.subr.bf16.mxu0 0
    %2555 = vmatpush1.bf16.msra.mxu0 %v2533
    %2556 = vmatprep.subr.bf16.mxu0 0
    %2557 = vmatpush1.bf16.msra.mxu0 %v2534
    %2558 = vmatprep.subr.bf16.mxu0 0
    %2559 = vmatpush1.bf16.msra.mxu0 %v2535
    %2560 = vmatprep.subr.bf16.mxu0 0
    %2561 = vmatpush1.bf16.msra.mxu0 0
    %2562 = vmatprep.subr.bf16.mxu0 0
    %2563 = vmatpush1.bf16.msra.mxu0 0
    %2564 = vmatprep.subr.bf16.mxu0 0
    %2565 = vmatpush1.bf16.msra.mxu0 0
    %2566 = vmatprep.subr.bf16.mxu0 0
    %2567 = vmatpush1.bf16.msra.mxu0 0
    %2568 = vmatprep.subr.bf16.mxu0 0
    %2569 = vmatpush1.bf16.msra.mxu0 0
    %2570 = vmatprep.subr.bf16.mxu0 0
    %2571 = vmatpush1.bf16.msra.mxu0 0
    %2572 = vmatprep.subr.bf16.mxu0 0
    %2573 = vmatpush1.bf16.msra.mxu0 0
    %2574 = vmatprep.subr.bf16.mxu0 0
    %2575 = vmatpush1.bf16.msra.mxu0 0
    %2576 = vmatprep.mubr.bf16.mxu0 0
    %2577 = vmatmul.mubr.bf16.gmra.mrb[0].mxu0 %v2452
    %v2578 = vpop.f32.mrb[0].mxu0
    %v2579 = vadd.f32 0.0, %v2578
    %v2580 = vpop.f32.mrb[0].mxu0
    %v2581 = vpop.f32.mrb[0].mxu0
    %v2582 = vpop.f32.mrb[0].mxu0
    %2583 = vdwg.mxu0
    %v2600 = vunpack.c.l.b16 %v2463
    %v2601 = vunpack.c.l.b16 %v2464
    %v2602 = vunpack.c.l.b16 %v2465
    %v2603 = vunpack.c.l.b16 %v2466
    %v2604 = vunpack.c.l.b16 %v2467
    %v2605 = vunpack.c.l.b16 %v2468
    %v2606 = vunpack.c.l.b16 %v2469
    %v2607 = vunpack.c.l.b16 %v2470
    %v2608 = vunpack.c.l.b16 %v2471
    %v2609 = vunpack.c.l.b16 %v2472
    %v2610 = vunpack.c.l.b16 %v2473
    %v2611 = vunpack.c.l.b16 %v2474
    %v2612 = vunpack.c.l.b16 %v2475
    %v2613 = vunpack.c.l.b16 %v2476
    %v2614 = vunpack.c.l.b16 %v2477
    %v2615 = vunpack.c.l.b16 %v2478
    %v2616 = vpack.c.b16 %v2601, %v2600
    %v2617 = vpack.c.b16 %v2603, %v2602
    %v2618 = vpack.c.b16 %v2605, %v2604
    %v2619 = vpack.c.b16 %v2607, %v2606
    %v2620 = vpack.c.b16 %v2609, %v2608
    %v2621 = vpack.c.b16 %v2611, %v2610
    %v2622 = vpack.c.b16 %v2613, %v2612
    %v2623 = vpack.c.b16 %v2615, %v2614
    %2632 = vmatprep.subr.bf16.mxu0 0
    %2633 = vmatpush1.bf16.msra.mxu0 %v2616
    %2634 = vmatprep.subr.bf16.mxu0 0
    %2635 = vmatpush1.bf16.msra.mxu0 %v2617
    %2636 = vmatprep.subr.bf16.mxu0 0
    %2637 = vmatpush1.bf16.msra.mxu0 %v2618
    %2638 = vmatprep.subr.bf16.mxu0 0
    %2639 = vmatpush1.bf16.msra.mxu0 %v2619
    %2640 = vmatprep.subr.bf16.mxu0 0
    %2641 = vmatpush1.bf16.msra.mxu0 %v2620
    %2642 = vmatprep.subr.bf16.mxu0 0
    %2643 = vmatpush1.bf16.msra.mxu0 %v2621
    %2644 = vmatprep.subr.bf16.mxu0 0
    %2645 = vmatpush1.bf16.msra.mxu0 %v2622
    %2646 = vmatprep.subr.bf16.mxu0 0
    %2647 = vmatpush1.bf16.msra.mxu0 %v2623
    %2648 = vmatprep.subr.bf16.mxu0 0
    %2649 = vmatpush1.bf16.msra.mxu0 0
    %2650 = vmatprep.subr.bf16.mxu0 0
    %2651 = vmatpush1.bf16.msra.mxu0 0
    %2652 = vmatprep.subr.bf16.mxu0 0
    %2653 = vmatpush1.bf16.msra.mxu0 0
    %2654 = vmatprep.subr.bf16.mxu0 0
    %2655 = vmatpush1.bf16.msra.mxu0 0
    %2656 = vmatprep.subr.bf16.mxu0 0
    %2657 = vmatpush1.bf16.msra.mxu0 0
    %2658 = vmatprep.subr.bf16.mxu0 0
    %2659 = vmatpush1.bf16.msra.mxu0 0
    %2660 = vmatprep.subr.bf16.mxu0 0
    %2661 = vmatpush1.bf16.msra.mxu0 0
    %2662 = vmatprep.subr.bf16.mxu0 0
    %2663 = vmatpush1.bf16.msra.mxu0 0
    %2664 = vmatprep.mubr.bf16.mxu0 0
    %2665 = vmatmul.mubr.bf16.gmra.mrb[0].mxu0 %v2451
    %v2666 = vpop.f32.mrb[0].mxu0
    %v2667 = vadd.f32 %v2579, %v2666
    %v2668 = vpop.f32.mrb[0].mxu0
    %v2669 = vpop.f32.mrb[0].mxu0
    %v2670 = vpop.f32.mrb[0].mxu0
    %2671 = vdwg.mxu0
    %s2672 = scalar_lea.vmem %s45, 256
    %v2673 = vld [vmem:[%s2672] sm:$0xf]
    %v2674 = vld [vmem:[%s2672 + $0x4] sm:$0xf]
    %v2675 = vld [vmem:[%s2672 + $0x8] sm:$0xf]
    %v2676 = vld [vmem:[%s2672 + $0xc] sm:$0xf]
    %v2677 = vld [vmem:[%s2672 + $0x10] sm:$0xf]
    %v2678 = vld [vmem:[%s2672 + $0x14] sm:$0xf]
    %v2679 = vld [vmem:[%s2672 + $0x18] sm:$0xf]
    %v2680 = vld [vmem:[%s2672 + $0x1c] sm:$0xf]
    %v2681 = vld [vmem:[%s2672 + $0x20] sm:$0xf]
    %v2682 = vld [vmem:[%s2672 + $0x24] sm:$0xf]
    %v2683 = vld [vmem:[%s2672 + $0x28] sm:$0xf]
    %v2684 = vld [vmem:[%s2672 + $0x2c] sm:$0xf]
    %v2685 = vld [vmem:[%s2672 + $0x30] sm:$0xf]
    %v2686 = vld [vmem:[%s2672 + $0x34] sm:$0xf]
    %v2687 = vld [vmem:[%s2672 + $0x38] sm:$0xf]
    %v2688 = vld [vmem:[%s2672 + $0x3c] sm:$0xf]
    %v2705 = vunpack.c.l.b16 %v2673
    %v2706 = vunpack.c.l.b16 %v2674
    %v2707 = vunpack.c.l.b16 %v2675
    %v2708 = vunpack.c.l.b16 %v2676
    %v2709 = vunpack.c.l.b16 %v2677
    %v2710 = vunpack.c.l.b16 %v2678
    %v2711 = vunpack.c.l.b16 %v2679
    %v2712 = vunpack.c.l.b16 %v2680
    %v2713 = vunpack.c.l.b16 %v2681
    %v2714 = vunpack.c.l.b16 %v2682
    %v2715 = vunpack.c.l.b16 %v2683
    %v2716 = vunpack.c.l.b16 %v2684
    %v2717 = vunpack.c.l.b16 %v2685
    %v2718 = vunpack.c.l.b16 %v2686
    %v2719 = vunpack.c.l.b16 %v2687
    %v2720 = vunpack.c.l.b16 %v2688
    %v2721 = vpack.c.b16 %v2706, %v2705
    %v2722 = vpack.c.b16 %v2708, %v2707
    %v2723 = vpack.c.b16 %v2710, %v2709
    %v2724 = vpack.c.b16 %v2712, %v2711
    %v2725 = vpack.c.b16 %v2714, %v2713
    %v2726 = vpack.c.b16 %v2716, %v2715
    %v2727 = vpack.c.b16 %v2718, %v2717
    %v2728 = vpack.c.b16 %v2720, %v2719
    %2737 = vmatprep.subr.bf16.mxu0 0
    %2738 = vmatpush1.bf16.msra.mxu0 %v2721
    %2739 = vmatprep.subr.bf16.mxu0 0
    %2740 = vmatpush1.bf16.msra.mxu0 %v2722
    %2741 = vmatprep.subr.bf16.mxu0 0
    %2742 = vmatpush1.bf16.msra.mxu0 %v2723
    %2743 = vmatprep.subr.bf16.mxu0 0
    %2744 = vmatpush1.bf16.msra.mxu0 %v2724
    %2745 = vmatprep.subr.bf16.mxu0 0
    %2746 = vmatpush1.bf16.msra.mxu0 %v2725
    %2747 = vmatprep.subr.bf16.mxu0 0
    %2748 = vmatpush1.bf16.msra.mxu0 %v2726
    %2749 = vmatprep.subr.bf16.mxu0 0
    %2750 = vmatpush1.bf16.msra.mxu0 %v2727
    %2751 = vmatprep.subr.bf16.mxu0 0
    %2752 = vmatpush1.bf16.msra.mxu0 %v2728
    %2753 = vmatprep.subr.bf16.mxu0 0
    %2754 = vmatpush1.bf16.msra.mxu0 0
    %2755 = vmatprep.subr.bf16.mxu0 0
    %2756 = vmatpush1.bf16.msra.mxu0 0
    %2757 = vmatprep.subr.bf16.mxu0 0
    %2758 = vmatpush1.bf16.msra.mxu0 0
    %2759 = vmatprep.subr.bf16.mxu0 0
    %2760 = vmatpush1.bf16.msra.mxu0 0
    %2761 = vmatprep.subr.bf16.mxu0 0
    %2762 = vmatpush1.bf16.msra.mxu0 0
    %2763 = vmatprep.subr.bf16.mxu0 0
    %2764 = vmatpush1.bf16.msra.mxu0 0
    %2765 = vmatprep.subr.bf16.mxu0 0
    %2766 = vmatpush1.bf16.msra.mxu0 0
    %2767 = vmatprep.subr.bf16.mxu0 0
    %2768 = vmatpush1.bf16.msra.mxu0 0
    %2769 = vmatprep.mubr.bf16.mxu0 0
    %2770 = vmatmul.mubr.bf16.gmra.mrb[0].mxu0 %v2462
    %v2771 = vpop.f32.mrb[0].mxu0
    %v2772 = vadd.f32 0.0, %v2771
    %v2773 = vpop.f32.mrb[0].mxu0
    %v2774 = vpop.f32.mrb[0].mxu0
    %v2775 = vpop.f32.mrb[0].mxu0
    %2776 = vdwg.mxu0
    %v2777 = vadd.f32 %v2667, %v2772
    %s2778 = scalar_lea.vmem %s45, 64
    %v2779 = vld [vmem:[%s2778] sm:$0xf]
    %v2780 = vld [vmem:[%s2778 + $0x4] sm:$0xf]
    %v2781 = vld [vmem:[%s2778 + $0x8] sm:$0xf]
    %v2782 = vld [vmem:[%s2778 + $0xc] sm:$0xf]
    %v2783 = vld [vmem:[%s2778 + $0x10] sm:$0xf]
    %v2784 = vld [vmem:[%s2778 + $0x14] sm:$0xf]
    %v2785 = vld [vmem:[%s2778 + $0x18] sm:$0xf]
    %v2786 = vld [vmem:[%s2778 + $0x1c] sm:$0xf]
    %v2787 = vld [vmem:[%s2778 + $0x20] sm:$0xf]
    %v2788 = vld [vmem:[%s2778 + $0x24] sm:$0xf]
    %v2789 = vld [vmem:[%s2778 + $0x28] sm:$0xf]
    %v2790 = vld [vmem:[%s2778 + $0x2c] sm:$0xf]
    %v2791 = vld [vmem:[%s2778 + $0x30] sm:$0xf]
    %v2792 = vld [vmem:[%s2778 + $0x34] sm:$0xf]
    %v2793 = vld [vmem:[%s2778 + $0x38] sm:$0xf]
    %v2794 = vld [vmem:[%s2778 + $0x3c] sm:$0xf]
    %s2795 = scalar_lea.vmem %s45, 192
    %v2796 = vld [vmem:[%s2795] sm:$0xf]
    %v2797 = vld [vmem:[%s2795 + $0x4] sm:$0xf]
    %v2798 = vld [vmem:[%s2795 + $0x8] sm:$0xf]
    %v2799 = vld [vmem:[%s2795 + $0xc] sm:$0xf]
    %v2800 = vld [vmem:[%s2795 + $0x10] sm:$0xf]
    %v2801 = vld [vmem:[%s2795 + $0x14] sm:$0xf]
    %v2802 = vld [vmem:[%s2795 + $0x18] sm:$0xf]
    %v2803 = vld [vmem:[%s2795 + $0x1c] sm:$0xf]
    %v2804 = vld [vmem:[%s2795 + $0x20] sm:$0xf]
    %v2805 = vld [vmem:[%s2795 + $0x24] sm:$0xf]
    %v2806 = vld [vmem:[%s2795 + $0x28] sm:$0xf]
    %v2807 = vld [vmem:[%s2795 + $0x2c] sm:$0xf]
    %v2808 = vld [vmem:[%s2795 + $0x30] sm:$0xf]
    %v2809 = vld [vmem:[%s2795 + $0x34] sm:$0xf]
    %v2810 = vld [vmem:[%s2795 + $0x38] sm:$0xf]
    %v2811 = vld [vmem:[%s2795 + $0x3c] sm:$0xf]
    %v2828 = vunpack.c.l.b16 %v2796
    %v2829 = vunpack.c.l.b16 %v2797
    %v2830 = vunpack.c.l.b16 %v2798
    %v2831 = vunpack.c.l.b16 %v2799
    %v2832 = vunpack.c.l.b16 %v2800
    %v2833 = vunpack.c.l.b16 %v2801
    %v2834 = vunpack.c.l.b16 %v2802
    %v2835 = vunpack.c.l.b16 %v2803
    %v2836 = vunpack.c.l.b16 %v2804
    %v2837 = vunpack.c.l.b16 %v2805
    %v2838 = vunpack.c.l.b16 %v2806
    %v2839 = vunpack.c.l.b16 %v2807
    %v2840 = vunpack.c.l.b16 %v2808
    %v2841 = vunpack.c.l.b16 %v2809
    %v2842 = vunpack.c.l.b16 %v2810
    %v2843 = vunpack.c.l.b16 %v2811
    %v2844 = vpack.c.b16 %v2829, %v2828
    %v2845 = vpack.c.b16 %v2831, %v2830
    %v2846 = vpack.c.b16 %v2833, %v2832
    %v2847 = vpack.c.b16 %v2835, %v2834
    %v2848 = vpack.c.b16 %v2837, %v2836
    %v2849 = vpack.c.b16 %v2839, %v2838
    %v2850 = vpack.c.b16 %v2841, %v2840
    %v2851 = vpack.c.b16 %v2843, %v2842
    %2860 = vmatprep.subr.bf16.mxu0 0
    %2861 = vmatpush1.bf16.msra.mxu0 %v2844
    %2862 = vmatprep.subr.bf16.mxu0 0
    %2863 = vmatpush1.bf16.msra.mxu0 %v2845
    %2864 = vmatprep.subr.bf16.mxu0 0
    %2865 = vmatpush1.bf16.msra.mxu0 %v2846
    %2866 = vmatprep.subr.bf16.mxu0 0
    %2867 = vmatpush1.bf16.msra.mxu0 %v2847
    %2868 = vmatprep.subr.bf16.mxu0 0
    %2869 = vmatpush1.bf16.msra.mxu0 %v2848
    %2870 = vmatprep.subr.bf16.mxu0 0
    %2871 = vmatpush1.bf16.msra.mxu0 %v2849
    %2872 = vmatprep.subr.bf16.mxu0 0
    %2873 = vmatpush1.bf16.msra.mxu0 %v2850
    %2874 = vmatprep.subr.bf16.mxu0 0
    %2875 = vmatpush1.bf16.msra.mxu0 %v2851
    %2876 = vmatprep.subr.bf16.mxu0 0
    %2877 = vmatpush1.bf16.msra.mxu0 0
    %2878 = vmatprep.subr.bf16.mxu0 0
    %2879 = vmatpush1.bf16.msra.mxu0 0
    %2880 = vmatprep.subr.bf16.mxu0 0
    %2881 = vmatpush1.bf16.msra.mxu0 0
    %2882 = vmatprep.subr.bf16.mxu0 0
    %2883 = vmatpush1.bf16.msra.mxu0 0
    %2884 = vmatprep.subr.bf16.mxu0 0
    %2885 = vmatpush1.bf16.msra.mxu0 0
    %2886 = vmatprep.subr.bf16.mxu0 0
    %2887 = vmatpush1.bf16.msra.mxu0 0
    %2888 = vmatprep.subr.bf16.mxu0 0
    %2889 = vmatpush1.bf16.msra.mxu0 0
    %2890 = vmatprep.subr.bf16.mxu0 0
    %2891 = vmatpush1.bf16.msra.mxu0 0
    %2892 = vmatprep.mubr.bf16.mxu0 0
    %2893 = vmatmul.mubr.bf16.gmra.mrb[0].mxu0 %v2452
    %v2894 = vpop.f32.mrb[0].mxu0
    %v2895 = vadd.f32 0.0, %v2894
    %v2896 = vpop.f32.mrb[0].mxu0
    %v2897 = vpop.f32.mrb[0].mxu0
    %v2898 = vpop.f32.mrb[0].mxu0
    %2899 = vdwg.mxu0
    %v2916 = vunpack.c.l.b16 %v2779
    %v2917 = vunpack.c.l.b16 %v2780
    %v2918 = vunpack.c.l.b16 %v2781
    %v2919 = vunpack.c.l.b16 %v2782
    %v2920 = vunpack.c.l.b16 %v2783
    %v2921 = vunpack.c.l.b16 %v2784
    %v2922 = vunpack.c.l.b16 %v2785
    %v2923 = vunpack.c.l.b16 %v2786
    %v2924 = vunpack.c.l.b16 %v2787
    %v2925 = vunpack.c.l.b16 %v2788
    %v2926 = vunpack.c.l.b16 %v2789
    %v2927 = vunpack.c.l.b16 %v2790
    %v2928 = vunpack.c.l.b16 %v2791
    %v2929 = vunpack.c.l.b16 %v2792
    %v2930 = vunpack.c.l.b16 %v2793
    %v2931 = vunpack.c.l.b16 %v2794
    %v2932 = vpack.c.b16 %v2917, %v2916
    %v2933 = vpack.c.b16 %v2919, %v2918
    %v2934 = vpack.c.b16 %v2921, %v2920
    %v2935 = vpack.c.b16 %v2923, %v2922
    %v2936 = vpack.c.b16 %v2925, %v2924
    %v2937 = vpack.c.b16 %v2927, %v2926
    %v2938 = vpack.c.b16 %v2929, %v2928
    %v2939 = vpack.c.b16 %v2931, %v2930
    %2948 = vmatprep.subr.bf16.mxu0 0
    %2949 = vmatpush1.bf16.msra.mxu0 %v2932
    %2950 = vmatprep.subr.bf16.mxu0 0
    %2951 = vmatpush1.bf16.msra.mxu0 %v2933
    %2952 = vmatprep.subr.bf16.mxu0 0
    %2953 = vmatpush1.bf16.msra.mxu0 %v2934
    %2954 = vmatprep.subr.bf16.mxu0 0
    %2955 = vmatpush1.bf16.msra.mxu0 %v2935
    %2956 = vmatprep.subr.bf16.mxu0 0
    %2957 = vmatpush1.bf16.msra.mxu0 %v2936
    %2958 = vmatprep.subr.bf16.mxu0 0
    %2959 = vmatpush1.bf16.msra.mxu0 %v2937
    %2960 = vmatprep.subr.bf16.mxu0 0
    %2961 = vmatpush1.bf16.msra.mxu0 %v2938
    %2962 = vmatprep.subr.bf16.mxu0 0
    %2963 = vmatpush1.bf16.msra.mxu0 %v2939
    %2964 = vmatprep.subr.bf16.mxu0 0
    %2965 = vmatpush1.bf16.msra.mxu0 0
    %2966 = vmatprep.subr.bf16.mxu0 0
    %2967 = vmatpush1.bf16.msra.mxu0 0
    %2968 = vmatprep.subr.bf16.mxu0 0
    %2969 = vmatpush1.bf16.msra.mxu0 0
    %2970 = vmatprep.subr.bf16.mxu0 0
    %2971 = vmatpush1.bf16.msra.mxu0 0
    %2972 = vmatprep.subr.bf16.mxu0 0
    %2973 = vmatpush1.bf16.msra.mxu0 0
    %2974 = vmatprep.subr.bf16.mxu0 0
    %2975 = vmatpush1.bf16.msra.mxu0 0
    %2976 = vmatprep.subr.bf16.mxu0 0
    %2977 = vmatpush1.bf16.msra.mxu0 0
    %2978 = vmatprep.subr.bf16.mxu0 0
    %2979 = vmatpush1.bf16.msra.mxu0 0
    %2980 = vmatprep.mubr.bf16.mxu0 0
    %2981 = vmatmul.mubr.bf16.gmra.mrb[0].mxu0 %v2451
    %v2982 = vpop.f32.mrb[0].mxu0
    %v2983 = vadd.f32 %v2895, %v2982
    %v2984 = vpop.f32.mrb[0].mxu0
    %v2985 = vpop.f32.mrb[0].mxu0
    %v2986 = vpop.f32.mrb[0].mxu0
    %2987 = vdwg.mxu0
    %s2988 = scalar_lea.vmem %s45, 320
    %v2989 = vld [vmem:[%s2988] sm:$0xf]
    %v2990 = vld [vmem:[%s2988 + $0x4] sm:$0xf]
    %v2991 = vld [vmem:[%s2988 + $0x8] sm:$0xf]
    %v2992 = vld [vmem:[%s2988 + $0xc] sm:$0xf]
    %v2993 = vld [vmem:[%s2988 + $0x10] sm:$0xf]
    %v2994 = vld [vmem:[%s2988 + $0x14] sm:$0xf]
    %v2995 = vld [vmem:[%s2988 + $0x18] sm:$0xf]
    %v2996 = vld [vmem:[%s2988 + $0x1c] sm:$0xf]
    %v2997 = vld [vmem:[%s2988 + $0x20] sm:$0xf]
    %v2998 = vld [vmem:[%s2988 + $0x24] sm:$0xf]
    %v2999 = vld [vmem:[%s2988 + $0x28] sm:$0xf]
    %v3000 = vld [vmem:[%s2988 + $0x2c] sm:$0xf]
    %v3001 = vld [vmem:[%s2988 + $0x30] sm:$0xf]
    %v3002 = vld [vmem:[%s2988 + $0x34] sm:$0xf]
    %v3003 = vld [vmem:[%s2988 + $0x38] sm:$0xf]
    %v3004 = vld [vmem:[%s2988 + $0x3c] sm:$0xf]
    %v3021 = vunpack.c.l.b16 %v2989
    %v3022 = vunpack.c.l.b16 %v2990
    %v3023 = vunpack.c.l.b16 %v2991
    %v3024 = vunpack.c.l.b16 %v2992
    %v3025 = vunpack.c.l.b16 %v2993
    %v3026 = vunpack.c.l.b16 %v2994
    %v3027 = vunpack.c.l.b16 %v2995
    %v3028 = vunpack.c.l.b16 %v2996
    %v3029 = vunpack.c.l.b16 %v2997
    %v3030 = vunpack.c.l.b16 %v2998
    %v3031 = vunpack.c.l.b16 %v2999
    %v3032 = vunpack.c.l.b16 %v3000
    %v3033 = vunpack.c.l.b16 %v3001
    %v3034 = vunpack.c.l.b16 %v3002
    %v3035 = vunpack.c.l.b16 %v3003
    %v3036 = vunpack.c.l.b16 %v3004
    %v3037 = vpack.c.b16 %v3022, %v3021
    %v3038 = vpack.c.b16 %v3024, %v3023
    %v3039 = vpack.c.b16 %v3026, %v3025
    %v3040 = vpack.c.b16 %v3028, %v3027
    %v3041 = vpack.c.b16 %v3030, %v3029
    %v3042 = vpack.c.b16 %v3032, %v3031
    %v3043 = vpack.c.b16 %v3034, %v3033
    %v3044 = vpack.c.b16 %v3036, %v3035
    %3053 = vmatprep.subr.bf16.mxu0 0
    %3054 = vmatpush1.bf16.msra.mxu0 %v3037
    %3055 = vmatprep.subr.bf16.mxu0 0
    %3056 = vmatpush1.bf16.msra.mxu0 %v3038
    %3057 = vmatprep.subr.bf16.mxu0 0
    %3058 = vmatpush1.bf16.msra.mxu0 %v3039
    %3059 = vmatprep.subr.bf16.mxu0 0
    %3060 = vmatpush1.bf16.msra.mxu0 %v3040
    %3061 = vmatprep.subr.bf16.mxu0 0
    %3062 = vmatpush1.bf16.msra.mxu0 %v3041
    %3063 = vmatprep.subr.bf16.mxu0 0
    %3064 = vmatpush1.bf16.msra.mxu0 %v3042
    %3065 = vmatprep.subr.bf16.mxu0 0
    %3066 = vmatpush1.bf16.msra.mxu0 %v3043
    %3067 = vmatprep.subr.bf16.mxu0 0
    %3068 = vmatpush1.bf16.msra.mxu0 %v3044
    %3069 = vmatprep.subr.bf16.mxu0 0
    %3070 = vmatpush1.bf16.msra.mxu0 0
    %3071 = vmatprep.subr.bf16.mxu0 0
    %3072 = vmatpush1.bf16.msra.mxu0 0
    %3073 = vmatprep.subr.bf16.mxu0 0
    %3074 = vmatpush1.bf16.msra.mxu0 0
    %3075 = vmatprep.subr.bf16.mxu0 0
    %3076 = vmatpush1.bf16.msra.mxu0 0
    %3077 = vmatprep.subr.bf16.mxu0 0
    %3078 = vmatpush1.bf16.msra.mxu0 0
    %3079 = vmatprep.subr.bf16.mxu0 0
    %3080 = vmatpush1.bf16.msra.mxu0 0
    %3081 = vmatprep.subr.bf16.mxu0 0
    %3082 = vmatpush1.bf16.msra.mxu0 0
    %3083 = vmatprep.subr.bf16.mxu0 0
    %3084 = vmatpush1.bf16.msra.mxu0 0
    %3085 = vmatprep.mubr.bf16.mxu0 0
    %3086 = vmatmul.mubr.bf16.gmra.mrb[0].mxu0 %v2462
    %v3087 = vpop.f32.mrb[0].mxu0
    %v3088 = vadd.f32 0.0, %v3087
    %v3089 = vpop.f32.mrb[0].mxu0
    %v3090 = vpop.f32.mrb[0].mxu0
    %v3091 = vpop.f32.mrb[0].mxu0
    %3092 = vdwg.mxu0
    %v3093 = vadd.f32 %v2983, %v3088
    %v3094 = vmax.f32 %v2777, %v3093
    %v3096 = vrot.slane %v3094, 1
    %v3098 = vsel %vm400, %v3096, %v3094
    %v3099 = vmax.f32 %v3094, %v3098
    %v3101 = vlaneseq
    %v3102 = vshrl.u32 %v3101, 7
    %v3103 = vsub.s32 0, %v3102
    %v3104 = vrot.slane %v2262, %v3103
    %vm3106 = vcmask 64512
    %v3108 = vsel %vm3106, %v2263, 0
    %3110 = vmatprep.subr.mxu0 0.0
    %3111 = vmatpush1.msra.mxu0 %v3099
    %3112 = vmatprep.subr.mxu0 0.0
    %3113 = vmatpush1.msra.mxu0 0.0
    %3114 = vmatprep.subr.mxu0 0.0
    %3115 = vmatpush1.msra.mxu0 0.0
    %3116 = vmatprep.subr.mxu0 0.0
    %3117 = vmatpush1.msra.mxu0 0.0
    %3118 = vmatprep.subr.mxu0 0.0
    %3119 = vmatpush1.msra.mxu0 0.0
    %3120 = vmatprep.subr.mxu0 0.0
    %3121 = vmatpush1.msra.mxu0 0.0
    %3122 = vmatprep.subr.mxu0 0.0
    %3123 = vmatpush1.msra.mxu0 0.0
    %3124 = vmatprep.subr.mxu0 0.0
    %3125 = vmatpush1.msra.mxu0 0.0
    %3126 = vmatprep.subr.mxu0 0.0
    %3127 = vmatpush1.msra.mxu0 0.0
    %3128 = vmatprep.subr.mxu0 0.0
    %3129 = vmatpush1.msra.mxu0 0.0
    %3130 = vmatprep.subr.mxu0 0.0
    %3131 = vmatpush1.msra.mxu0 0.0
    %3132 = vmatprep.subr.mxu0 0.0
    %3133 = vmatpush1.msra.mxu0 0.0
    %3134 = vmatprep.subr.mxu0 0.0
    %3135 = vmatpush1.msra.mxu0 0.0
    %3136 = vmatprep.subr.mxu0 0.0
    %3137 = vmatpush1.msra.mxu0 0.0
    %3138 = vmatprep.subr.mxu0 0.0
    %3139 = vmatpush1.msra.mxu0 0.0
    %3140 = vmatprep.subr.mxu0 0.0
    %3141 = vmatpush1.msra.mxu0 0.0
    %3142 = vmatprep.subr.mxu0 0.0
    %3143 = vmatpush1.msra.mxu0 0.0
    %3144 = vmatprep.subr.mxu0 0.0
    %3145 = vmatpush1.msra.mxu0 0.0
    %3146 = vmatprep.subr.mxu0 0.0
    %3147 = vmatpush1.msra.mxu0 0.0
    %3148 = vmatprep.subr.mxu0 0.0
    %3149 = vmatpush1.msra.mxu0 0.0
    %3150 = vmatprep.subr.mxu0 0.0
    %3151 = vmatpush1.msra.mxu0 0.0
    %3152 = vmatprep.subr.mxu0 0.0
    %3153 = vmatpush1.msra.mxu0 0.0
    %3154 = vmatprep.subr.mxu0 0.0
    %3155 = vmatpush1.msra.mxu0 0.0
    %3156 = vmatprep.subr.mxu0 0.0
    %3157 = vmatpush1.msra.mxu0 0.0
    %3158 = vmatprep.subr.mxu0 0.0
    %3159 = vmatpush1.msra.mxu0 0.0
    %3160 = vmatprep.subr.mxu0 0.0
    %3161 = vmatpush1.msra.mxu0 0.0
    %3162 = vmatprep.subr.mxu0 0.0
    %3163 = vmatpush1.msra.mxu0 0.0
    %3164 = vmatprep.subr.mxu0 0.0
    %3165 = vmatpush1.msra.mxu0 0.0
    %3166 = vmatprep.subr.mxu0 0.0
    %3167 = vmatpush1.msra.mxu0 0.0
    %3168 = vmatprep.subr.mxu0 0.0
    %3169 = vmatpush1.msra.mxu0 0.0
    %3170 = vmatprep.subr.mxu0 0.0
    %3171 = vmatpush1.msra.mxu0 0.0
    %3172 = vmatprep.subr.mxu0 0.0
    %3173 = vmatpush1.msra.mxu0 0.0
    %3174 = vmatprep.mubr.f32.mxu0 0.0
    %3175 = vmatmul.mubr.f32.gmra.mrb[0].mxu0 %v3108
    %v3176 = vpop.f32.mrb[0].mxu0
    %v3177 = vadd.f32 %v3104, %v3176
    %v3178 = vpop.f32.mrb[0].mxu0
    %3179 = vdwg.mxu0
    %vm3180 = vcmp.gt.f32.partialorder %v3177, 0.0
    %v3181 = vmin.f32 %v3177, 0.0
    %v3182 = vmul.f32 %v3181, 1.442695
    %v3183 = vpow.pop %v3182
    %v3184 = vsub.f32 %v3183, 1.0
    %v3185 = vsel %vm3180, %v3177, %v3184
    %3186 = vst [vmem:[%s61] sm:$0xf] %v3185
    %v3187 = vld [vmem:[%s51] sm:$0xf]
    %vm3188 = vcmask 31744
    %v3190 = vsel %vm3188, %v3187, 0
    %vm3192 = vcmask 1043456
    %v3194 = vsel %vm3192, %v3185, 0
    %3196 = vmatprep.subr.mxu0 0.0
    %3197 = vmatpush1.msra.mxu0 %v3194
    %3198 = vmatprep.subr.mxu0 0.0
    %3199 = vmatpush1.msra.mxu0 0.0
    %3200 = vmatprep.subr.mxu0 0.0
    %3201 = vmatpush1.msra.mxu0 0.0
    %3202 = vmatprep.subr.mxu0 0.0
    %3203 = vmatpush1.msra.mxu0 0.0
    %3204 = vmatprep.subr.mxu0 0.0
    %3205 = vmatpush1.msra.mxu0 0.0
    %3206 = vmatprep.subr.mxu0 0.0
    %3207 = vmatpush1.msra.mxu0 0.0
    %3208 = vmatprep.subr.mxu0 0.0
    %3209 = vmatpush1.msra.mxu0 0.0
    %3210 = vmatprep.subr.mxu0 0.0
    %3211 = vmatpush1.msra.mxu0 0.0
    %3212 = vmatprep.subr.mxu0 0.0
    %3213 = vmatpush1.msra.mxu0 0.0
    %3214 = vmatprep.subr.mxu0 0.0
    %3215 = vmatpush1.msra.mxu0 0.0
    %3216 = vmatprep.subr.mxu0 0.0
    %3217 = vmatpush1.msra.mxu0 0.0
    %3218 = vmatprep.subr.mxu0 0.0
    %3219 = vmatpush1.msra.mxu0 0.0
    %3220 = vmatprep.subr.mxu0 0.0
    %3221 = vmatpush1.msra.mxu0 0.0
    %3222 = vmatprep.subr.mxu0 0.0
    %3223 = vmatpush1.msra.mxu0 0.0
    %3224 = vmatprep.subr.mxu0 0.0
    %3225 = vmatpush1.msra.mxu0 0.0
    %3226 = vmatprep.subr.mxu0 0.0
    %3227 = vmatpush1.msra.mxu0 0.0
    %3228 = vmatprep.subr.mxu0 0.0
    %3229 = vmatpush1.msra.mxu0 0.0
    %3230 = vmatprep.subr.mxu0 0.0
    %3231 = vmatpush1.msra.mxu0 0.0
    %3232 = vmatprep.subr.mxu0 0.0
    %3233 = vmatpush1.msra.mxu0 0.0
    %3234 = vmatprep.subr.mxu0 0.0
    %3235 = vmatpush1.msra.mxu0 0.0
    %3236 = vmatprep.subr.mxu0 0.0
    %3237 = vmatpush1.msra.mxu0 0.0
    %3238 = vmatprep.subr.mxu0 0.0
    %3239 = vmatpush1.msra.mxu0 0.0
    %3240 = vmatprep.subr.mxu0 0.0
    %3241 = vmatpush1.msra.mxu0 0.0
    %3242 = vmatprep.subr.mxu0 0.0
    %3243 = vmatpush1.msra.mxu0 0.0
    %3244 = vmatprep.subr.mxu0 0.0
    %3245 = vmatpush1.msra.mxu0 0.0
    %3246 = vmatprep.subr.mxu0 0.0
    %3247 = vmatpush1.msra.mxu0 0.0
    %3248 = vmatprep.subr.mxu0 0.0
    %3249 = vmatpush1.msra.mxu0 0.0
    %3250 = vmatprep.subr.mxu0 0.0
    %3251 = vmatpush1.msra.mxu0 0.0
    %3252 = vmatprep.subr.mxu0 0.0
    %3253 = vmatpush1.msra.mxu0 0.0
    %3254 = vmatprep.subr.mxu0 0.0
    %3255 = vmatpush1.msra.mxu0 0.0
    %3256 = vmatprep.subr.mxu0 0.0
    %3257 = vmatpush1.msra.mxu0 0.0
    %3258 = vmatprep.subr.mxu0 0.0
    %3259 = vmatpush1.msra.mxu0 0.0
    %3260 = vmatprep.mubr.f32.mxu0 0.0
    %3261 = vmatmul.mubr.f32.gmra.mrb[0].mxu0 %v3190
    %v3262 = vpop.f32.mrb[0].mxu0
    %v3263 = vadd.f32 0.0, %v3262
    %v3264 = vpop.f32.mrb[0].mxu0
    %3265 = vdwg.mxu0
    %v3267 = vrot.slane %v3263, 2
    %v3269 = vpack.c.bf16 %v3263, %v3263
    %v3270 = vpack.c.bf16 %v3267, %v3267
    %v3271 = vld [vmem:[%s53] sm:$0xf]
    %v3272 = vld [vmem:[%s53 + $0x4] sm:$0xf]
    %v3273 = vld [vmem:[%s53 + $0x8] sm:$0xf]
    %v3274 = vld [vmem:[%s53 + $0xc] sm:$0xf]
    %v3275 = vld [vmem:[%s53 + $0x10] sm:$0xf]
    %v3276 = vld [vmem:[%s53 + $0x14] sm:$0xf]
    %v3277 = vld [vmem:[%s53 + $0x18] sm:$0xf]
    %v3278 = vld [vmem:[%s53 + $0x1c] sm:$0xf]
    %v3279 = vld [vmem:[%s53 + $0x20] sm:$0xf]
    %v3280 = vld [vmem:[%s53 + $0x24] sm:$0xf]
    %v3281 = vld [vmem:[%s53 + $0x28] sm:$0xf]
    %v3282 = vld [vmem:[%s53 + $0x2c] sm:$0xf]
    %v3283 = vld [vmem:[%s53 + $0x30] sm:$0xf]
    %v3284 = vld [vmem:[%s53 + $0x34] sm:$0xf]
    %v3285 = vld [vmem:[%s53 + $0x38] sm:$0xf]
    %v3286 = vld [vmem:[%s53 + $0x3c] sm:$0xf]
    %v3287 = vld [vmem:[%s53 + $0x40] sm:$0xf]
    %v3288 = vld [vmem:[%s53 + $0x44] sm:$0xf]
    %v3289 = vld [vmem:[%s53 + $0x48] sm:$0xf]
    %v3290 = vld [vmem:[%s53 + $0x4c] sm:$0xf]
    %v3291 = vld [vmem:[%s53 + $0x50] sm:$0xf]
    %v3292 = vld [vmem:[%s53 + $0x54] sm:$0xf]
    %v3293 = vld [vmem:[%s53 + $0x58] sm:$0xf]
    %v3294 = vld [vmem:[%s53 + $0x5c] sm:$0xf]
    %v3295 = vld [vmem:[%s53 + $0x60] sm:$0xf]
    %v3296 = vld [vmem:[%s53 + $0x64] sm:$0xf]
    %v3297 = vld [vmem:[%s53 + $0x68] sm:$0xf]
    %v3298 = vld [vmem:[%s53 + $0x6c] sm:$0xf]
    %v3299 = vld [vmem:[%s53 + $0x70] sm:$0xf]
    %v3300 = vld [vmem:[%s53 + $0x74] sm:$0xf]
    %v3301 = vld [vmem:[%s53 + $0x78] sm:$0xf]
    %v3302 = vld [vmem:[%s53 + $0x7c] sm:$0xf]
    %v3303 = vld [vmem:[%s55] sm:$0x1]
    %v3305 = vlaneseq
    %v3306 = vshrl.u32 %v3305, 7
    %v3307 = vsub.s32 0, %v3306
    %v3308 = vrot.slane %v3303, %v3307
    %v3342 = vunpack.c.l.b16 %v3271
    %v3343 = vunpack.c.l.b16 %v3272
    %v3344 = vunpack.c.l.b16 %v3273
    %v3345 = vunpack.c.l.b16 %v3274
    %v3346 = vunpack.c.l.b16 %v3275
    %v3347 = vunpack.c.l.b16 %v3276
    %v3348 = vunpack.c.l.b16 %v3277
    %v3349 = vunpack.c.l.b16 %v3278
    %v3350 = vunpack.c.l.b16 %v3279
    %v3351 = vunpack.c.l.b16 %v3280
    %v3352 = vunpack.c.l.b16 %v3281
    %v3353 = vunpack.c.l.b16 %v3282
    %v3354 = vunpack.c.l.b16 %v3283
    %v3355 = vunpack.c.l.b16 %v3284
    %v3356 = vunpack.c.l.b16 %v3285
    %v3357 = vunpack.c.l.b16 %v3286
    %v3358 = vunpack.c.l.b16 %v3287
    %v3359 = vunpack.c.l.b16 %v3288
    %v3360 = vunpack.c.l.b16 %v3289
    %v3361 = vunpack.c.l.b16 %v3290
    %v3362 = vunpack.c.l.b16 %v3291
    %v3363 = vunpack.c.l.b16 %v3292
    %v3364 = vunpack.c.l.b16 %v3293
    %v3365 = vunpack.c.l.b16 %v3294
    %v3366 = vunpack.c.l.b16 %v3295
    %v3367 = vunpack.c.l.b16 %v3296
    %v3368 = vunpack.c.l.b16 %v3297
    %v3369 = vunpack.c.l.b16 %v3298
    %v3370 = vunpack.c.l.b16 %v3299
    %v3371 = vunpack.c.l.b16 %v3300
    %v3372 = vunpack.c.l.b16 %v3301
    %v3373 = vunpack.c.l.b16 %v3302
    %v3374 = vpack.c.b16 %v3343, %v3342
    %v3375 = vpack.c.b16 %v3345, %v3344
    %v3376 = vpack.c.b16 %v3347, %v3346
    %v3377 = vpack.c.b16 %v3349, %v3348
    %v3378 = vpack.c.b16 %v3351, %v3350
    %v3379 = vpack.c.b16 %v3353, %v3352
    %v3380 = vpack.c.b16 %v3355, %v3354
    %v3381 = vpack.c.b16 %v3357, %v3356
    %v3382 = vpack.c.b16 %v3359, %v3358
    %v3383 = vpack.c.b16 %v3361, %v3360
    %v3384 = vpack.c.b16 %v3363, %v3362
    %v3385 = vpack.c.b16 %v3365, %v3364
    %v3386 = vpack.c.b16 %v3367, %v3366
    %v3387 = vpack.c.b16 %v3369, %v3368
    %v3388 = vpack.c.b16 %v3371, %v3370
    %v3389 = vpack.c.b16 %v3373, %v3372
    %3406 = vmatprep.subr.bf16.mxu0 0
    %3407 = vmatpush1.bf16.msra.mxu0 %v3374
    %3408 = vmatprep.subr.bf16.mxu0 0
    %3409 = vmatpush1.bf16.msra.mxu0 %v3375
    %3410 = vmatprep.subr.bf16.mxu0 0
    %3411 = vmatpush1.bf16.msra.mxu0 %v3376
    %3412 = vmatprep.subr.bf16.mxu0 0
    %3413 = vmatpush1.bf16.msra.mxu0 %v3377
    %3414 = vmatprep.subr.bf16.mxu0 0
    %3415 = vmatpush1.bf16.msra.mxu0 %v3378
    %3416 = vmatprep.subr.bf16.mxu0 0
    %3417 = vmatpush1.bf16.msra.mxu0 %v3379
    %3418 = vmatprep.subr.bf16.mxu0 0
    %3419 = vmatpush1.bf16.msra.mxu0 %v3380
    %3420 = vmatprep.subr.bf16.mxu0 0
    %3421 = vmatpush1.bf16.msra.mxu0 %v3381
    %3422 = vmatprep.subr.bf16.mxu0 0
    %3423 = vmatpush1.bf16.msra.mxu0 %v3382
    %3424 = vmatprep.subr.bf16.mxu0 0
    %3425 = vmatpush1.bf16.msra.mxu0 %v3383
    %3426 = vmatprep.subr.bf16.mxu0 0
    %3427 = vmatpush1.bf16.msra.mxu0 %v3384
    %3428 = vmatprep.subr.bf16.mxu0 0
    %3429 = vmatpush1.bf16.msra.mxu0 %v3385
    %3430 = vmatprep.subr.bf16.mxu0 0
    %3431 = vmatpush1.bf16.msra.mxu0 %v3386
    %3432 = vmatprep.subr.bf16.mxu0 0
    %3433 = vmatpush1.bf16.msra.mxu0 %v3387
    %3434 = vmatprep.subr.bf16.mxu0 0
    %3435 = vmatpush1.bf16.msra.mxu0 %v3388
    %3436 = vmatprep.subr.bf16.mxu0 0
    %3437 = vmatpush1.bf16.msra.mxu0 %v3389
    %3438 = vmatprep.mubr.bf16.mxu0 %v3270
    %3439 = vmatmul.mubr.bf16.gmra.mrb[0].mxu0 %v3269
    %v3440 = vpop.f32.mrb[0].mxu0
    %v3441 = vadd.f32 %v3308, %v3440
    %v3442 = vpop.f32.mrb[0].mxu0
    %v3443 = vpop.f32.mrb[0].mxu0
    %v3444 = vpop.f32.mrb[0].mxu0
    %3445 = vdwg.mxu0
    %3446 = vst [vmem:[#allocation2] sm:$0x3] %v3441
    // Predicated region
    $region114: #{unit_cnn_encoder.1} parent=1 // pred_check
      _
    $region115: #{unit_cnn_encoder.1} parent=1 // pred_check_branch
      %3448 = sbr.rel (0) target = $region117
    $region116: #{unit_cnn_encoder.1} parent=1 // pred_region
      _
    $region117: #{unit_cnn_encoder.1} parent=1 // pred_fallthru
      _
    // Predicated region
    $region118: #{unit_cnn_encoder.1} parent=1 // pred_check
      _
    $region119: #{unit_cnn_encoder.1} parent=1 // pred_check_branch
      %3450 = sbr.rel (0) target = $region121
    $region120: #{unit_cnn_encoder.1} parent=1 // pred_region
      _
    $region121: #{unit_cnn_encoder.1} parent=1 // pred_fallthru
      _
    // Predicated region
    $region122: #{unit_cnn_encoder.1} parent=1 // pred_check
      _
    $region123: #{unit_cnn_encoder.1} parent=1 // pred_check_branch
      %3452 = sbr.rel (0) target = $region125
    $region124: #{unit_cnn_encoder.1} parent=1 // pred_region
      _
    $region125: #{unit_cnn_encoder.1} parent=1 // pred_fallthru
      _
    // Predicated region
    $region126: #{unit_cnn_encoder.1} parent=1 // pred_check
      _
    $region127: #{unit_cnn_encoder.1} parent=1 // pred_check_branch
      %3454 = sbr.rel (0) target = $region129
    $region128: #{unit_cnn_encoder.1} parent=1 // pred_region
      %s3456 = ssub.s32 32, 32
      %3457 = vsyncadd [#allocation3], %s3456
      %s3459 = sshll.u32 [#allocation2], 4
      %s3460 = int_to_ptr.vmem [resolvable:$true] %s3459
      %3462 = dma.vmem_to_hbm [thread:$0]  %s3460, 32, %s63, [#allocation3]
    $region129: #{unit_cnn_encoder.1} parent=1 // pred_fallthru
      _
    // Predicated region
    $region130: #{unit_cnn_encoder.1} parent=1 // pred_check
      _
    $region131: #{unit_cnn_encoder.1} parent=1 // pred_check_branch
      %3464 = sbr.rel (0) target = $region133
    $region132: #{unit_cnn_encoder.1} parent=1 // pred_region
      _
    $region133: #{unit_cnn_encoder.1} parent=1 // pred_fallthru
      _
    // Predicated region
    $region134: #{unit_cnn_encoder.1} parent=1 // pred_check
      _
    $region135: #{unit_cnn_encoder.1} parent=1 // pred_check_branch
      %3466 = sbr.rel (0) target = $region137
    $region136: #{unit_cnn_encoder.1} parent=1 // pred_region
      _
    $region137: #{unit_cnn_encoder.1} parent=1 // pred_fallthru
      _
    // Predicated region
    $region138: #{unit_cnn_encoder.1} parent=1 // pred_check
      _
    $region139: #{unit_cnn_encoder.1} parent=1 // pred_check_branch
      %3468 = sbr.rel (0) target = $region141
    $region140: #{unit_cnn_encoder.1} parent=1 // pred_region
      _
    $region141: #{unit_cnn_encoder.1} parent=1 // pred_fallthru
      _
    // Predicated region
    $region142: #{unit_cnn_encoder.1} parent=1 // pred_check
      _
    $region143: #{unit_cnn_encoder.1} parent=1 // pred_check_branch
      %3470 = sbr.rel (0) target = $region145
    $region144: #{unit_cnn_encoder.1} parent=1 // pred_region
      %3471 = dma.done [#allocation3], 32
    $region145: #{unit_cnn_encoder.1} parent=1 // pred_fallthru
      _
    %3472 = vsyncpa [#allocation3], 1

</llo_original>
